<compile_context>
chip_gen: v7x
topology: tpu7x:2x2x1
jax: 0.10.0
libtpu: 0.0.40
codegen_flags: <defaults>
</compile_context>

<pallas_src>
import jax
import jax.numpy as jnp
from jax.experimental import pallas as pl
from jax.experimental.pallas import tpu as pltpu


def _ap_mp_kernel(w_ref, shift_ref, x_ref, out_ref):
    # w_ref:     (C*C*9,) f32 SMEM -- Conv2d(C, C, 3, bias=False) weights (OIHW,
    #                                 flattened), pre-multiplied by the folded BN
    #                                 scale of their output channel.
    # shift_ref: (C,)     f32 SMEM -- beta - running_mean * scale
    # x_ref:     (Bt, C, H, W) VMEM, native dtype
    # out_ref:   (Bt, C, H, W) VMEM, same dtype as x
    Bt, C, H, W = x_ref.shape
    f32 = jnp.float32

    # Parity / border masks, computed once and reused by every batch element.
    row = jax.lax.broadcasted_iota(jnp.int32, (H, W), 0)
    col = jax.lax.broadcasted_iota(jnp.int32, (H, W), 1)
    row_even = (row & 1) == 0
    col_even = (col & 1) == 0
    row_first, row_last = row == 0, row == H - 1
    col_first, col_last = col == 0, col == W - 1

    # Zero-padded shift-by-one neighbours (the conv halo), built from rolls plus
    # border masks -- no padded copy of x is ever materialised.
    def nbr_ym1(a):  # a[y-1, x]; zero at y == 0
        return jnp.where(row_first, 0.0, jnp.roll(a, 1, axis=-2))

    def nbr_yp1(a):  # a[y+1, x]; zero at y == H-1
        return jnp.where(row_last, 0.0, jnp.roll(a, -1, axis=-2))

    def nbr_xm1(a):  # a[y, x-1]; zero at x == 0
        return jnp.where(col_first, 0.0, jnp.roll(a, 1, axis=-1))

    def nbr_xp1(a):  # a[y, x+1]; zero at x == W-1
        return jnp.where(col_last, 0.0, jnp.roll(a, -1, axis=-1))

    # 2x2-block partners (the circular wrap of the roll is never selected by the
    # parity masks because H and W are even).
    def h_partner(a):
        return jnp.where(col_even, jnp.roll(a, -1, axis=-1), jnp.roll(a, 1, axis=-1))

    def v_partner(a):
        return jnp.where(row_even, jnp.roll(a, -1, axis=-2), jnp.roll(a, 1, axis=-2))

    for b in range(Bt):
        # ---- CBR3X3: 3x3 conv + folded BN + ReLU, unrolled on the VPU ----------
        # One tap live at a time, C_out independent accumulators (ILP); the BN
        # shift is the accumulator init and the BN scale is already in w_ref.
        xs = [x_ref[b, c].astype(f32) for c in range(C)]       # reused for x * att
        accs = [jnp.full((H, W), shift_ref[co], f32) for co in range(C)]
        for ci in range(C):
            p = xs[ci]
            rows = (nbr_ym1(p), p, nbr_yp1(p))
            for dy in range(3):
                r = rows[dy]
                taps = (nbr_xm1(r), r, nbr_xp1(r))
                for dx in range(3):
                    tap = taps[dx]
                    for co in range(C):
                        accs[co] = accs[co] + w_ref[((co * C + ci) * 3 + dy) * 3 + dx] * tap

        # ---- 2x2 avg/max pool (stride 2) at full resolution + channel L2 norm --
        # Every pixel gathers the other three members of its own 2x2 block, so
        # the pooled maps are block-constant full-res maps (== nearest-upsampled).
        sq = jnp.zeros((H, W), f32)
        for co in range(C):
            a = jnp.maximum(accs[co], 0.0)                     # ReLU
            ah = h_partner(a)
            av = v_partner(a)
            ad = h_partner(av)                                 # diagonal partner
            apool = (a + ah + av + ad) * 0.25                  # avg-pool
            mpool = jnp.maximum(jnp.maximum(a, ah), jnp.maximum(av, ad))  # max-pool
            d = apool - mpool
            sq = sq + d * d
        by = jnp.sqrt(sq)      # ||avgpool - maxpool||_2 over channels

        # ---- bilinear x2 upsample (align_corners=False), separable -------------
        # Each output pixel mixes its own (block) source with weight 0.75 and the
        # neighbouring source row/column with weight 0.25, clamped at the border.
        nb_r = jnp.where(row_even, jnp.roll(by, 1, axis=-2), jnp.roll(by, -1, axis=-2))
        nb_r = jnp.where(row_first | row_last, by, nb_r)
        t = 0.75 * by + 0.25 * nb_r
        nb_c = jnp.where(col_even, jnp.roll(t, 1, axis=-1), jnp.roll(t, -1, axis=-1))
        nb_c = jnp.where(col_first | col_last, t, nb_c)
        edge = 0.75 * t + 0.25 * nb_c

        att = jax.nn.sigmoid(edge)                             # exp on the EUP slot

        # ---- out = x * sigmoid(edge), broadcast over channels -------------------
        for c in range(C):
            out_ref[b, c] = (xs[c] * att).astype(out_ref.dtype)


def _pick_batch_block(B, C, H, W, itemsize):
    """Batch images per grid step: keep >=2 (parallel) grid steps so both v7x
    TensorCores stay busy, amortise per-step pipeline overhead at larger batch,
    and keep the double-buffered in/out blocks well inside VMEM budgets."""
    if B < 2:
        return 1
    per_img = 2 * 2 * C * H * W * itemsize        # in + out, double-buffered
    budget = 8 * 1024 * 1024
    bt = B // 2
    while bt > 1 and (B % bt != 0 or bt * per_img > budget):
        bt -= 1
    return max(bt, 1)


def ap_mp_forward(x, conv_w, bn_gamma, bn_beta, bn_mean, bn_var, *,
                  eps=1e-5, batch_block=None):
    """x: (B, C, H, W). conv_w: (C, C, 3, 3). BN params: (C,) each (eval mode)."""
    B, C, H, W = x.shape
    assert H % 2 == 0 and W % 2 == 0, "AP_MP pooling/upsampling assumes even H, W"
    assert conv_w.shape == (C, C, 3, 3)

    f32 = jnp.float32
    scale = bn_gamma.astype(f32) / jnp.sqrt(bn_var.astype(f32) + eps)
    shift = bn_beta.astype(f32) - bn_mean.astype(f32) * scale
    # Fold the BN scale into the conv weights (per output channel), flatten OIHW.
    w_folded = (conv_w.astype(f32) * scale[:, None, None, None]).reshape(-1)

    Bt = batch_block if batch_block is not None else _pick_batch_block(
        B, C, H, W, x.dtype.itemsize)
    assert B % Bt == 0, "batch block must divide the batch"

    out = pl.pallas_call(
        _ap_mp_kernel,
        out_shape=jax.ShapeDtypeStruct((B, C, H, W), x.dtype),
        grid=(B // Bt,),
        in_specs=[
            pl.BlockSpec(memory_space=pltpu.MemorySpace.SMEM),    # folded conv weights
            pl.BlockSpec(memory_space=pltpu.MemorySpace.SMEM),    # folded BN shift
            pl.BlockSpec((Bt, C, H, W), lambda i: (i, 0, 0, 0)),  # x, native dtype
        ],
        out_specs=pl.BlockSpec((Bt, C, H, W), lambda i: (i, 0, 0, 0)),
        compiler_params=pltpu.CompilerParams(
            dimension_semantics=("parallel",),
            vmem_limit_bytes=32 * 1024 * 1024,   # explicit: v5e default scope is 16 MiB
        ),
    )(w_folded, shift, x)
    return out


# ----------------------------- pure-JAX reference -------------------------------
def _bilinear_up2(x):
    """F.interpolate(scale_factor=2, mode='bilinear', align_corners=False)."""
    _, _, h, w = x.shape

    def axis_idx(n):
        src = (jnp.arange(2 * n) + 0.5) / 2.0 - 0.5
        i0 = jnp.floor(src)
        frac = src - i0
        i0 = i0.astype(jnp.int32)
        lo = jnp.clip(i0, 0, n - 1)
        hi = jnp.clip(i0 + 1, 0, n - 1)
        return lo, hi, frac

    ylo, yhi, fy = axis_idx(h)
    xlo, xhi, fx = axis_idx(w)
    g = lambda yy, xx: x[:, :, yy[:, None], xx[None, :]]
    fx = fx[None, None, None, :]
    fy = fy[None, None, :, None]
    top = g(ylo, xlo) * (1.0 - fx) + g(ylo, xhi) * fx
    bot = g(yhi, xlo) * (1.0 - fx) + g(yhi, xhi) * fx
    return top * (1.0 - fy) + bot * fy


def _reference(x, conv_w, bn_gamma, bn_beta, bn_mean, bn_var, *, eps=1e-5):
    y = jax.lax.conv_general_dilated(
        x, conv_w, window_strides=(1, 1), padding=((1, 1), (1, 1)),
        dimension_numbers=("NCHW", "OIHW", "NCHW"))
    scale = bn_gamma / jnp.sqrt(bn_var + eps)
    y = y * scale[None, :, None, None] + (bn_beta - bn_mean * scale)[None, :, None, None]
    y = jnp.maximum(y, 0.0)
    ap = jax.lax.reduce_window(y, 0.0, jax.lax.add,
                               (1, 1, 2, 2), (1, 1, 2, 2), "VALID") / 4.0
    mp = jax.lax.reduce_window(y, -jnp.inf, jax.lax.max,
                               (1, 1, 2, 2), (1, 1, 2, 2), "VALID")
    by = jnp.sqrt(jnp.sum(jnp.abs(ap - mp) ** 2, axis=1, keepdims=True))
    edge = _bilinear_up2(by)
    return x * jax.nn.sigmoid(edge)


if __name__ == "__main__":
    key = jax.random.PRNGKey(0)
    k_x, k_w, k_g, k_b, k_m, k_v = jax.random.split(key, 6)

    B, C, H, W = 2, 4, 16, 16
    x = jax.random.normal(k_x, (B, C, H, W), dtype=jnp.float32)

    # Deterministic synthetic checkpoint (Conv2d(C, C, 3, bias=False) + BN stats).
    conv_w = jax.random.normal(k_w, (C, C, 3, 3), dtype=jnp.float32) * 0.2
    bn_gamma = 1.0 + 0.1 * jax.random.normal(k_g, (C,), dtype=jnp.float32)
    bn_beta = 0.1 * jax.random.normal(k_b, (C,), dtype=jnp.float32)
    bn_mean = 0.1 * jax.random.normal(k_m, (C,), dtype=jnp.float32)
    bn_var = jnp.abs(1.0 + 0.1 * jax.random.normal(k_v, (C,), dtype=jnp.float32))

    out = ap_mp_forward(x, conv_w, bn_gamma, bn_beta, bn_mean, bn_var)
    jax.block_until_ready(out)

    ref = _reference(x, conv_w, bn_gamma, bn_beta, bn_mean, bn_var)
    assert out.shape == (B, C, H, W)
    max_err = float(jnp.max(jnp.abs(out - ref)))
    assert jnp.allclose(out, ref, atol=2e-5, rtol=2e-5), f"mismatch, max_err={max_err}"
    print("KERNEL_OK")
</pallas_src>

<mosaic_0001>
module attributes {stable_mosaic.version = 11 : i64} {
  func.func @_ap_mp_kernel(%arg0: i32, %arg1: memref<144xf32, #tpu.memory_space<smem>>, %arg2: memref<4xf32, #tpu.memory_space<smem>>, %arg3: memref<1x4x16x16xf32, #tpu.memory_space<vmem>>, %arg4: memref<1x4x16x16xf32, #tpu.memory_space<vmem>>) attributes {dimension_semantics = [#tpu.dimension_semantics<parallel>], iteration_bounds = array<i64: 2>, scalar_prefetch = 0 : i64, scratch_operands = 0 : i64, tpu.core_type = #tpu.core_type<tc>, window_params = [{transform_indices = @transform_0, window_bounds = array<i64: 144>}, {transform_indices = @transform_1, window_bounds = array<i64: 4>}, {transform_indices = @transform_2, window_bounds = array<i64: 1, 4, 16, 16>}, {transform_indices = @transform_3, window_bounds = array<i64: 1, 4, 16, 16>}]} {
    %0 = tpu.iota {dimensions = array<i32: 0>} : vector<16x16xi32>
    %1 = tpu.iota {dimensions = array<i32: 1>} : vector<16x16xi32>
    %c1_i32 = arith.constant 1 : i32
    %2 = vector.broadcast %c1_i32 : i32 to vector<16x16xi32>
    %3 = arith.andi %0, %2 : vector<16x16xi32>
    %c0_i32 = arith.constant 0 : i32
    %4 = vector.broadcast %c0_i32 : i32 to vector<16x16xi32>
    %5 = arith.cmpi eq, %3, %4 : vector<16x16xi32>
    %c1_i32_0 = arith.constant 1 : i32
    %6 = vector.broadcast %c1_i32_0 : i32 to vector<16x16xi32>
    %7 = arith.andi %1, %6 : vector<16x16xi32>
    %c0_i32_1 = arith.constant 0 : i32
    %8 = vector.broadcast %c0_i32_1 : i32 to vector<16x16xi32>
    %9 = arith.cmpi eq, %7, %8 : vector<16x16xi32>
    %c0_i32_2 = arith.constant 0 : i32
    %10 = vector.broadcast %c0_i32_2 : i32 to vector<16x16xi32>
    %11 = arith.cmpi eq, %0, %10 : vector<16x16xi32>
    %c15_i32 = arith.constant 15 : i32
    %12 = vector.broadcast %c15_i32 : i32 to vector<16x16xi32>
    %13 = arith.cmpi eq, %0, %12 : vector<16x16xi32>
    %c0_i32_3 = arith.constant 0 : i32
    %14 = vector.broadcast %c0_i32_3 : i32 to vector<16x16xi32>
    %15 = arith.cmpi eq, %1, %14 : vector<16x16xi32>
    %c15_i32_4 = arith.constant 15 : i32
    %16 = vector.broadcast %c15_i32_4 : i32 to vector<16x16xi32>
    %17 = arith.cmpi eq, %1, %16 : vector<16x16xi32>
    %c0 = arith.constant 0 : index
    %c0_5 = arith.constant 0 : index
    %c0_6 = arith.constant 0 : index
    %c0_7 = arith.constant 0 : index
    %18 = vector.load %arg3[%c0, %c0_5, %c0_6, %c0_7] : memref<1x4x16x16xf32, #tpu.memory_space<vmem>>, vector<1x1x16x16xf32>
    %19 = vector.shape_cast %18 : vector<1x1x16x16xf32> to vector<16x16xf32>
    %c0_8 = arith.constant 0 : index
    %c1 = arith.constant 1 : index
    %c0_9 = arith.constant 0 : index
    %c0_10 = arith.constant 0 : index
    %20 = vector.load %arg3[%c0_8, %c1, %c0_9, %c0_10] : memref<1x4x16x16xf32, #tpu.memory_space<vmem>>, vector<1x1x16x16xf32>
    %21 = vector.shape_cast %20 : vector<1x1x16x16xf32> to vector<16x16xf32>
    %c0_11 = arith.constant 0 : index
    %c2 = arith.constant 2 : index
    %c0_12 = arith.constant 0 : index
    %c0_13 = arith.constant 0 : index
    %22 = vector.load %arg3[%c0_11, %c2, %c0_12, %c0_13] : memref<1x4x16x16xf32, #tpu.memory_space<vmem>>, vector<1x1x16x16xf32>
    %23 = vector.shape_cast %22 : vector<1x1x16x16xf32> to vector<16x16xf32>
    %c0_14 = arith.constant 0 : index
    %c3 = arith.constant 3 : index
    %c0_15 = arith.constant 0 : index
    %c0_16 = arith.constant 0 : index
    %24 = vector.load %arg3[%c0_14, %c3, %c0_15, %c0_16] : memref<1x4x16x16xf32, #tpu.memory_space<vmem>>, vector<1x1x16x16xf32>
    %25 = vector.shape_cast %24 : vector<1x1x16x16xf32> to vector<16x16xf32>
    %c0_17 = arith.constant 0 : index
    %26 = memref.load %arg2[%c0_17] : memref<4xf32, #tpu.memory_space<smem>>
    %27 = vector.broadcast %26 : f32 to vector<16x16xf32>
    %c1_18 = arith.constant 1 : index
    %28 = memref.load %arg2[%c1_18] : memref<4xf32, #tpu.memory_space<smem>>
    %29 = vector.broadcast %28 : f32 to vector<16x16xf32>
    %c2_19 = arith.constant 2 : index
    %30 = memref.load %arg2[%c2_19] : memref<4xf32, #tpu.memory_space<smem>>
    %31 = vector.broadcast %30 : f32 to vector<16x16xf32>
    %c3_20 = arith.constant 3 : index
    %32 = memref.load %arg2[%c3_20] : memref<4xf32, #tpu.memory_space<smem>>
    %33 = vector.broadcast %32 : f32 to vector<16x16xf32>
    %34 = vector.extract_strided_slice %19 {offsets = [15, 0], sizes = [1, 16], strides = [1, 1]} : vector<16x16xf32> to vector<1x16xf32>
    %35 = vector.extract_strided_slice %19 {offsets = [0, 0], sizes = [15, 16], strides = [1, 1]} : vector<16x16xf32> to vector<15x16xf32>
    %36 = tpu.concatenate %34, %35 in 0 : vector<1x16xf32>, vector<15x16xf32> -> vector<16x16xf32>
    %cst = arith.constant 0.000000e+00 : f32
    %37 = vector.broadcast %cst : f32 to vector<16x16xf32>
    %38 = arith.select %11, %37, %36 : vector<16x16xi1>, vector<16x16xf32>
    %39 = vector.extract_strided_slice %19 {offsets = [1, 0], sizes = [15, 16], strides = [1, 1]} : vector<16x16xf32> to vector<15x16xf32>
    %40 = vector.extract_strided_slice %19 {offsets = [0, 0], sizes = [1, 16], strides = [1, 1]} : vector<16x16xf32> to vector<1x16xf32>
    %41 = tpu.concatenate %39, %40 in 0 : vector<15x16xf32>, vector<1x16xf32> -> vector<16x16xf32>
    %cst_21 = arith.constant 0.000000e+00 : f32
    %42 = vector.broadcast %cst_21 : f32 to vector<16x16xf32>
    %43 = arith.select %13, %42, %41 : vector<16x16xi1>, vector<16x16xf32>
    %44 = vector.extract_strided_slice %38 {offsets = [0, 15], sizes = [16, 1], strides = [1, 1]} : vector<16x16xf32> to vector<16x1xf32>
    %45 = vector.extract_strided_slice %38 {offsets = [0, 0], sizes = [16, 15], strides = [1, 1]} : vector<16x16xf32> to vector<16x15xf32>
    %46 = tpu.concatenate %44, %45 in 1 : vector<16x1xf32>, vector<16x15xf32> -> vector<16x16xf32>
    %cst_22 = arith.constant 0.000000e+00 : f32
    %47 = vector.broadcast %cst_22 : f32 to vector<16x16xf32>
    %48 = arith.select %15, %47, %46 : vector<16x16xi1>, vector<16x16xf32>
    %49 = vector.extract_strided_slice %38 {offsets = [0, 1], sizes = [16, 15], strides = [1, 1]} : vector<16x16xf32> to vector<16x15xf32>
    %50 = vector.extract_strided_slice %38 {offsets = [0, 0], sizes = [16, 1], strides = [1, 1]} : vector<16x16xf32> to vector<16x1xf32>
    %51 = tpu.concatenate %49, %50 in 1 : vector<16x15xf32>, vector<16x1xf32> -> vector<16x16xf32>
    %cst_23 = arith.constant 0.000000e+00 : f32
    %52 = vector.broadcast %cst_23 : f32 to vector<16x16xf32>
    %53 = arith.select %17, %52, %51 : vector<16x16xi1>, vector<16x16xf32>
    %c0_24 = arith.constant 0 : index
    %54 = memref.load %arg1[%c0_24] : memref<144xf32, #tpu.memory_space<smem>>
    %55 = vector.broadcast %54 : f32 to vector<16x16xf32>
    %56 = arith.mulf %55, %48 : vector<16x16xf32>
    %57 = arith.addf %27, %56 : vector<16x16xf32>
    %c36 = arith.constant 36 : index
    %58 = memref.load %arg1[%c36] : memref<144xf32, #tpu.memory_space<smem>>
    %59 = vector.broadcast %58 : f32 to vector<16x16xf32>
    %60 = arith.mulf %59, %48 : vector<16x16xf32>
    %61 = arith.addf %29, %60 : vector<16x16xf32>
    %c72 = arith.constant 72 : index
    %62 = memref.load %arg1[%c72] : memref<144xf32, #tpu.memory_space<smem>>
    %63 = vector.broadcast %62 : f32 to vector<16x16xf32>
    %64 = arith.mulf %63, %48 : vector<16x16xf32>
    %65 = arith.addf %31, %64 : vector<16x16xf32>
    %c108 = arith.constant 108 : index
    %66 = memref.load %arg1[%c108] : memref<144xf32, #tpu.memory_space<smem>>
    %67 = vector.broadcast %66 : f32 to vector<16x16xf32>
    %68 = arith.mulf %67, %48 : vector<16x16xf32>
    %69 = arith.addf %33, %68 : vector<16x16xf32>
    %c1_25 = arith.constant 1 : index
    %70 = memref.load %arg1[%c1_25] : memref<144xf32, #tpu.memory_space<smem>>
    %71 = vector.broadcast %70 : f32 to vector<16x16xf32>
    %72 = arith.mulf %71, %38 : vector<16x16xf32>
    %73 = arith.addf %57, %72 : vector<16x16xf32>
    %c37 = arith.constant 37 : index
    %74 = memref.load %arg1[%c37] : memref<144xf32, #tpu.memory_space<smem>>
    %75 = vector.broadcast %74 : f32 to vector<16x16xf32>
    %76 = arith.mulf %75, %38 : vector<16x16xf32>
    %77 = arith.addf %61, %76 : vector<16x16xf32>
    %c73 = arith.constant 73 : index
    %78 = memref.load %arg1[%c73] : memref<144xf32, #tpu.memory_space<smem>>
    %79 = vector.broadcast %78 : f32 to vector<16x16xf32>
    %80 = arith.mulf %79, %38 : vector<16x16xf32>
    %81 = arith.addf %65, %80 : vector<16x16xf32>
    %c109 = arith.constant 109 : index
    %82 = memref.load %arg1[%c109] : memref<144xf32, #tpu.memory_space<smem>>
    %83 = vector.broadcast %82 : f32 to vector<16x16xf32>
    %84 = arith.mulf %83, %38 : vector<16x16xf32>
    %85 = arith.addf %69, %84 : vector<16x16xf32>
    %c2_26 = arith.constant 2 : index
    %86 = memref.load %arg1[%c2_26] : memref<144xf32, #tpu.memory_space<smem>>
    %87 = vector.broadcast %86 : f32 to vector<16x16xf32>
    %88 = arith.mulf %87, %53 : vector<16x16xf32>
    %89 = arith.addf %73, %88 : vector<16x16xf32>
    %c38 = arith.constant 38 : index
    %90 = memref.load %arg1[%c38] : memref<144xf32, #tpu.memory_space<smem>>
    %91 = vector.broadcast %90 : f32 to vector<16x16xf32>
    %92 = arith.mulf %91, %53 : vector<16x16xf32>
    %93 = arith.addf %77, %92 : vector<16x16xf32>
    %c74 = arith.constant 74 : index
    %94 = memref.load %arg1[%c74] : memref<144xf32, #tpu.memory_space<smem>>
    %95 = vector.broadcast %94 : f32 to vector<16x16xf32>
    %96 = arith.mulf %95, %53 : vector<16x16xf32>
    %97 = arith.addf %81, %96 : vector<16x16xf32>
    %c110 = arith.constant 110 : index
    %98 = memref.load %arg1[%c110] : memref<144xf32, #tpu.memory_space<smem>>
    %99 = vector.broadcast %98 : f32 to vector<16x16xf32>
    %100 = arith.mulf %99, %53 : vector<16x16xf32>
    %101 = arith.addf %85, %100 : vector<16x16xf32>
    %102 = vector.extract_strided_slice %19 {offsets = [0, 15], sizes = [16, 1], strides = [1, 1]} : vector<16x16xf32> to vector<16x1xf32>
    %103 = vector.extract_strided_slice %19 {offsets = [0, 0], sizes = [16, 15], strides = [1, 1]} : vector<16x16xf32> to vector<16x15xf32>
    %104 = tpu.concatenate %102, %103 in 1 : vector<16x1xf32>, vector<16x15xf32> -> vector<16x16xf32>
    %cst_27 = arith.constant 0.000000e+00 : f32
    %105 = vector.broadcast %cst_27 : f32 to vector<16x16xf32>
    %106 = arith.select %15, %105, %104 : vector<16x16xi1>, vector<16x16xf32>
    %107 = vector.extract_strided_slice %19 {offsets = [0, 1], sizes = [16, 15], strides = [1, 1]} : vector<16x16xf32> to vector<16x15xf32>
    %108 = vector.extract_strided_slice %19 {offsets = [0, 0], sizes = [16, 1], strides = [1, 1]} : vector<16x16xf32> to vector<16x1xf32>
    %109 = tpu.concatenate %107, %108 in 1 : vector<16x15xf32>, vector<16x1xf32> -> vector<16x16xf32>
    %cst_28 = arith.constant 0.000000e+00 : f32
    %110 = vector.broadcast %cst_28 : f32 to vector<16x16xf32>
    %111 = arith.select %17, %110, %109 : vector<16x16xi1>, vector<16x16xf32>
    %c3_29 = arith.constant 3 : index
    %112 = memref.load %arg1[%c3_29] : memref<144xf32, #tpu.memory_space<smem>>
    %113 = vector.broadcast %112 : f32 to vector<16x16xf32>
    %114 = arith.mulf %113, %106 : vector<16x16xf32>
    %115 = arith.addf %89, %114 : vector<16x16xf32>
    %c39 = arith.constant 39 : index
    %116 = memref.load %arg1[%c39] : memref<144xf32, #tpu.memory_space<smem>>
    %117 = vector.broadcast %116 : f32 to vector<16x16xf32>
    %118 = arith.mulf %117, %106 : vector<16x16xf32>
    %119 = arith.addf %93, %118 : vector<16x16xf32>
    %c75 = arith.constant 75 : index
    %120 = memref.load %arg1[%c75] : memref<144xf32, #tpu.memory_space<smem>>
    %121 = vector.broadcast %120 : f32 to vector<16x16xf32>
    %122 = arith.mulf %121, %106 : vector<16x16xf32>
    %123 = arith.addf %97, %122 : vector<16x16xf32>
    %c111 = arith.constant 111 : index
    %124 = memref.load %arg1[%c111] : memref<144xf32, #tpu.memory_space<smem>>
    %125 = vector.broadcast %124 : f32 to vector<16x16xf32>
    %126 = arith.mulf %125, %106 : vector<16x16xf32>
    %127 = arith.addf %101, %126 : vector<16x16xf32>
    %c4 = arith.constant 4 : index
    %128 = memref.load %arg1[%c4] : memref<144xf32, #tpu.memory_space<smem>>
    %129 = vector.broadcast %128 : f32 to vector<16x16xf32>
    %130 = arith.mulf %129, %19 : vector<16x16xf32>
    %131 = arith.addf %115, %130 : vector<16x16xf32>
    %c40 = arith.constant 40 : index
    %132 = memref.load %arg1[%c40] : memref<144xf32, #tpu.memory_space<smem>>
    %133 = vector.broadcast %132 : f32 to vector<16x16xf32>
    %134 = arith.mulf %133, %19 : vector<16x16xf32>
    %135 = arith.addf %119, %134 : vector<16x16xf32>
    %c76 = arith.constant 76 : index
    %136 = memref.load %arg1[%c76] : memref<144xf32, #tpu.memory_space<smem>>
    %137 = vector.broadcast %136 : f32 to vector<16x16xf32>
    %138 = arith.mulf %137, %19 : vector<16x16xf32>
    %139 = arith.addf %123, %138 : vector<16x16xf32>
    %c112 = arith.constant 112 : index
    %140 = memref.load %arg1[%c112] : memref<144xf32, #tpu.memory_space<smem>>
    %141 = vector.broadcast %140 : f32 to vector<16x16xf32>
    %142 = arith.mulf %141, %19 : vector<16x16xf32>
    %143 = arith.addf %127, %142 : vector<16x16xf32>
    %c5 = arith.constant 5 : index
    %144 = memref.load %arg1[%c5] : memref<144xf32, #tpu.memory_space<smem>>
    %145 = vector.broadcast %144 : f32 to vector<16x16xf32>
    %146 = arith.mulf %145, %111 : vector<16x16xf32>
    %147 = arith.addf %131, %146 : vector<16x16xf32>
    %c41 = arith.constant 41 : index
    %148 = memref.load %arg1[%c41] : memref<144xf32, #tpu.memory_space<smem>>
    %149 = vector.broadcast %148 : f32 to vector<16x16xf32>
    %150 = arith.mulf %149, %111 : vector<16x16xf32>
    %151 = arith.addf %135, %150 : vector<16x16xf32>
    %c77 = arith.constant 77 : index
    %152 = memref.load %arg1[%c77] : memref<144xf32, #tpu.memory_space<smem>>
    %153 = vector.broadcast %152 : f32 to vector<16x16xf32>
    %154 = arith.mulf %153, %111 : vector<16x16xf32>
    %155 = arith.addf %139, %154 : vector<16x16xf32>
    %c113 = arith.constant 113 : index
    %156 = memref.load %arg1[%c113] : memref<144xf32, #tpu.memory_space<smem>>
    %157 = vector.broadcast %156 : f32 to vector<16x16xf32>
    %158 = arith.mulf %157, %111 : vector<16x16xf32>
    %159 = arith.addf %143, %158 : vector<16x16xf32>
    %160 = vector.extract_strided_slice %43 {offsets = [0, 15], sizes = [16, 1], strides = [1, 1]} : vector<16x16xf32> to vector<16x1xf32>
    %161 = vector.extract_strided_slice %43 {offsets = [0, 0], sizes = [16, 15], strides = [1, 1]} : vector<16x16xf32> to vector<16x15xf32>
    %162 = tpu.concatenate %160, %161 in 1 : vector<16x1xf32>, vector<16x15xf32> -> vector<16x16xf32>
    %cst_30 = arith.constant 0.000000e+00 : f32
    %163 = vector.broadcast %cst_30 : f32 to vector<16x16xf32>
    %164 = arith.select %15, %163, %162 : vector<16x16xi1>, vector<16x16xf32>
    %165 = vector.extract_strided_slice %43 {offsets = [0, 1], sizes = [16, 15], strides = [1, 1]} : vector<16x16xf32> to vector<16x15xf32>
    %166 = vector.extract_strided_slice %43 {offsets = [0, 0], sizes = [16, 1], strides = [1, 1]} : vector<16x16xf32> to vector<16x1xf32>
    %167 = tpu.concatenate %165, %166 in 1 : vector<16x15xf32>, vector<16x1xf32> -> vector<16x16xf32>
    %cst_31 = arith.constant 0.000000e+00 : f32
    %168 = vector.broadcast %cst_31 : f32 to vector<16x16xf32>
    %169 = arith.select %17, %168, %167 : vector<16x16xi1>, vector<16x16xf32>
    %c6 = arith.constant 6 : index
    %170 = memref.load %arg1[%c6] : memref<144xf32, #tpu.memory_space<smem>>
    %171 = vector.broadcast %170 : f32 to vector<16x16xf32>
    %172 = arith.mulf %171, %164 : vector<16x16xf32>
    %173 = arith.addf %147, %172 : vector<16x16xf32>
    %c42 = arith.constant 42 : index
    %174 = memref.load %arg1[%c42] : memref<144xf32, #tpu.memory_space<smem>>
    %175 = vector.broadcast %174 : f32 to vector<16x16xf32>
    %176 = arith.mulf %175, %164 : vector<16x16xf32>
    %177 = arith.addf %151, %176 : vector<16x16xf32>
    %c78 = arith.constant 78 : index
    %178 = memref.load %arg1[%c78] : memref<144xf32, #tpu.memory_space<smem>>
    %179 = vector.broadcast %178 : f32 to vector<16x16xf32>
    %180 = arith.mulf %179, %164 : vector<16x16xf32>
    %181 = arith.addf %155, %180 : vector<16x16xf32>
    %c114 = arith.constant 114 : index
    %182 = memref.load %arg1[%c114] : memref<144xf32, #tpu.memory_space<smem>>
    %183 = vector.broadcast %182 : f32 to vector<16x16xf32>
    %184 = arith.mulf %183, %164 : vector<16x16xf32>
    %185 = arith.addf %159, %184 : vector<16x16xf32>
    %c7 = arith.constant 7 : index
    %186 = memref.load %arg1[%c7] : memref<144xf32, #tpu.memory_space<smem>>
    %187 = vector.broadcast %186 : f32 to vector<16x16xf32>
    %188 = arith.mulf %187, %43 : vector<16x16xf32>
    %189 = arith.addf %173, %188 : vector<16x16xf32>
    %c43 = arith.constant 43 : index
    %190 = memref.load %arg1[%c43] : memref<144xf32, #tpu.memory_space<smem>>
    %191 = vector.broadcast %190 : f32 to vector<16x16xf32>
    %192 = arith.mulf %191, %43 : vector<16x16xf32>
    %193 = arith.addf %177, %192 : vector<16x16xf32>
    %c79 = arith.constant 79 : index
    %194 = memref.load %arg1[%c79] : memref<144xf32, #tpu.memory_space<smem>>
    %195 = vector.broadcast %194 : f32 to vector<16x16xf32>
    %196 = arith.mulf %195, %43 : vector<16x16xf32>
    %197 = arith.addf %181, %196 : vector<16x16xf32>
    %c115 = arith.constant 115 : index
    %198 = memref.load %arg1[%c115] : memref<144xf32, #tpu.memory_space<smem>>
    %199 = vector.broadcast %198 : f32 to vector<16x16xf32>
    %200 = arith.mulf %199, %43 : vector<16x16xf32>
    %201 = arith.addf %185, %200 : vector<16x16xf32>
    %c8 = arith.constant 8 : index
    %202 = memref.load %arg1[%c8] : memref<144xf32, #tpu.memory_space<smem>>
    %203 = vector.broadcast %202 : f32 to vector<16x16xf32>
    %204 = arith.mulf %203, %169 : vector<16x16xf32>
    %205 = arith.addf %189, %204 : vector<16x16xf32>
    %c44 = arith.constant 44 : index
    %206 = memref.load %arg1[%c44] : memref<144xf32, #tpu.memory_space<smem>>
    %207 = vector.broadcast %206 : f32 to vector<16x16xf32>
    %208 = arith.mulf %207, %169 : vector<16x16xf32>
    %209 = arith.addf %193, %208 : vector<16x16xf32>
    %c80 = arith.constant 80 : index
    %210 = memref.load %arg1[%c80] : memref<144xf32, #tpu.memory_space<smem>>
    %211 = vector.broadcast %210 : f32 to vector<16x16xf32>
    %212 = arith.mulf %211, %169 : vector<16x16xf32>
    %213 = arith.addf %197, %212 : vector<16x16xf32>
    %c116 = arith.constant 116 : index
    %214 = memref.load %arg1[%c116] : memref<144xf32, #tpu.memory_space<smem>>
    %215 = vector.broadcast %214 : f32 to vector<16x16xf32>
    %216 = arith.mulf %215, %169 : vector<16x16xf32>
    %217 = arith.addf %201, %216 : vector<16x16xf32>
    %218 = vector.extract_strided_slice %21 {offsets = [15, 0], sizes = [1, 16], strides = [1, 1]} : vector<16x16xf32> to vector<1x16xf32>
    %219 = vector.extract_strided_slice %21 {offsets = [0, 0], sizes = [15, 16], strides = [1, 1]} : vector<16x16xf32> to vector<15x16xf32>
    %220 = tpu.concatenate %218, %219 in 0 : vector<1x16xf32>, vector<15x16xf32> -> vector<16x16xf32>
    %cst_32 = arith.constant 0.000000e+00 : f32
    %221 = vector.broadcast %cst_32 : f32 to vector<16x16xf32>
    %222 = arith.select %11, %221, %220 : vector<16x16xi1>, vector<16x16xf32>
    %223 = vector.extract_strided_slice %21 {offsets = [1, 0], sizes = [15, 16], strides = [1, 1]} : vector<16x16xf32> to vector<15x16xf32>
    %224 = vector.extract_strided_slice %21 {offsets = [0, 0], sizes = [1, 16], strides = [1, 1]} : vector<16x16xf32> to vector<1x16xf32>
    %225 = tpu.concatenate %223, %224 in 0 : vector<15x16xf32>, vector<1x16xf32> -> vector<16x16xf32>
    %cst_33 = arith.constant 0.000000e+00 : f32
    %226 = vector.broadcast %cst_33 : f32 to vector<16x16xf32>
    %227 = arith.select %13, %226, %225 : vector<16x16xi1>, vector<16x16xf32>
    %228 = vector.extract_strided_slice %222 {offsets = [0, 15], sizes = [16, 1], strides = [1, 1]} : vector<16x16xf32> to vector<16x1xf32>
    %229 = vector.extract_strided_slice %222 {offsets = [0, 0], sizes = [16, 15], strides = [1, 1]} : vector<16x16xf32> to vector<16x15xf32>
    %230 = tpu.concatenate %228, %229 in 1 : vector<16x1xf32>, vector<16x15xf32> -> vector<16x16xf32>
    %cst_34 = arith.constant 0.000000e+00 : f32
    %231 = vector.broadcast %cst_34 : f32 to vector<16x16xf32>
    %232 = arith.select %15, %231, %230 : vector<16x16xi1>, vector<16x16xf32>
    %233 = vector.extract_strided_slice %222 {offsets = [0, 1], sizes = [16, 15], strides = [1, 1]} : vector<16x16xf32> to vector<16x15xf32>
    %234 = vector.extract_strided_slice %222 {offsets = [0, 0], sizes = [16, 1], strides = [1, 1]} : vector<16x16xf32> to vector<16x1xf32>
    %235 = tpu.concatenate %233, %234 in 1 : vector<16x15xf32>, vector<16x1xf32> -> vector<16x16xf32>
    %cst_35 = arith.constant 0.000000e+00 : f32
    %236 = vector.broadcast %cst_35 : f32 to vector<16x16xf32>
    %237 = arith.select %17, %236, %235 : vector<16x16xi1>, vector<16x16xf32>
    %c9 = arith.constant 9 : index
    %238 = memref.load %arg1[%c9] : memref<144xf32, #tpu.memory_space<smem>>
    %239 = vector.broadcast %238 : f32 to vector<16x16xf32>
    %240 = arith.mulf %239, %232 : vector<16x16xf32>
    %241 = arith.addf %205, %240 : vector<16x16xf32>
    %c45 = arith.constant 45 : index
    %242 = memref.load %arg1[%c45] : memref<144xf32, #tpu.memory_space<smem>>
    %243 = vector.broadcast %242 : f32 to vector<16x16xf32>
    %244 = arith.mulf %243, %232 : vector<16x16xf32>
    %245 = arith.addf %209, %244 : vector<16x16xf32>
    %c81 = arith.constant 81 : index
    %246 = memref.load %arg1[%c81] : memref<144xf32, #tpu.memory_space<smem>>
    %247 = vector.broadcast %246 : f32 to vector<16x16xf32>
    %248 = arith.mulf %247, %232 : vector<16x16xf32>
    %249 = arith.addf %213, %248 : vector<16x16xf32>
    %c117 = arith.constant 117 : index
    %250 = memref.load %arg1[%c117] : memref<144xf32, #tpu.memory_space<smem>>
    %251 = vector.broadcast %250 : f32 to vector<16x16xf32>
    %252 = arith.mulf %251, %232 : vector<16x16xf32>
    %253 = arith.addf %217, %252 : vector<16x16xf32>
    %c10 = arith.constant 10 : index
    %254 = memref.load %arg1[%c10] : memref<144xf32, #tpu.memory_space<smem>>
    %255 = vector.broadcast %254 : f32 to vector<16x16xf32>
    %256 = arith.mulf %255, %222 : vector<16x16xf32>
    %257 = arith.addf %241, %256 : vector<16x16xf32>
    %c46 = arith.constant 46 : index
    %258 = memref.load %arg1[%c46] : memref<144xf32, #tpu.memory_space<smem>>
    %259 = vector.broadcast %258 : f32 to vector<16x16xf32>
    %260 = arith.mulf %259, %222 : vector<16x16xf32>
    %261 = arith.addf %245, %260 : vector<16x16xf32>
    %c82 = arith.constant 82 : index
    %262 = memref.load %arg1[%c82] : memref<144xf32, #tpu.memory_space<smem>>
    %263 = vector.broadcast %262 : f32 to vector<16x16xf32>
    %264 = arith.mulf %263, %222 : vector<16x16xf32>
    %265 = arith.addf %249, %264 : vector<16x16xf32>
    %c118 = arith.constant 118 : index
    %266 = memref.load %arg1[%c118] : memref<144xf32, #tpu.memory_space<smem>>
    %267 = vector.broadcast %266 : f32 to vector<16x16xf32>
    %268 = arith.mulf %267, %222 : vector<16x16xf32>
    %269 = arith.addf %253, %268 : vector<16x16xf32>
    %c11 = arith.constant 11 : index
    %270 = memref.load %arg1[%c11] : memref<144xf32, #tpu.memory_space<smem>>
    %271 = vector.broadcast %270 : f32 to vector<16x16xf32>
    %272 = arith.mulf %271, %237 : vector<16x16xf32>
    %273 = arith.addf %257, %272 : vector<16x16xf32>
    %c47 = arith.constant 47 : index
    %274 = memref.load %arg1[%c47] : memref<144xf32, #tpu.memory_space<smem>>
    %275 = vector.broadcast %274 : f32 to vector<16x16xf32>
    %276 = arith.mulf %275, %237 : vector<16x16xf32>
    %277 = arith.addf %261, %276 : vector<16x16xf32>
    %c83 = arith.constant 83 : index
    %278 = memref.load %arg1[%c83] : memref<144xf32, #tpu.memory_space<smem>>
    %279 = vector.broadcast %278 : f32 to vector<16x16xf32>
    %280 = arith.mulf %279, %237 : vector<16x16xf32>
    %281 = arith.addf %265, %280 : vector<16x16xf32>
    %c119 = arith.constant 119 : index
    %282 = memref.load %arg1[%c119] : memref<144xf32, #tpu.memory_space<smem>>
    %283 = vector.broadcast %282 : f32 to vector<16x16xf32>
    %284 = arith.mulf %283, %237 : vector<16x16xf32>
    %285 = arith.addf %269, %284 : vector<16x16xf32>
    %286 = vector.extract_strided_slice %21 {offsets = [0, 15], sizes = [16, 1], strides = [1, 1]} : vector<16x16xf32> to vector<16x1xf32>
    %287 = vector.extract_strided_slice %21 {offsets = [0, 0], sizes = [16, 15], strides = [1, 1]} : vector<16x16xf32> to vector<16x15xf32>
    %288 = tpu.concatenate %286, %287 in 1 : vector<16x1xf32>, vector<16x15xf32> -> vector<16x16xf32>
    %cst_36 = arith.constant 0.000000e+00 : f32
    %289 = vector.broadcast %cst_36 : f32 to vector<16x16xf32>
    %290 = arith.select %15, %289, %288 : vector<16x16xi1>, vector<16x16xf32>
    %291 = vector.extract_strided_slice %21 {offsets = [0, 1], sizes = [16, 15], strides = [1, 1]} : vector<16x16xf32> to vector<16x15xf32>
    %292 = vector.extract_strided_slice %21 {offsets = [0, 0], sizes = [16, 1], strides = [1, 1]} : vector<16x16xf32> to vector<16x1xf32>
    %293 = tpu.concatenate %291, %292 in 1 : vector<16x15xf32>, vector<16x1xf32> -> vector<16x16xf32>
    %cst_37 = arith.constant 0.000000e+00 : f32
    %294 = vector.broadcast %cst_37 : f32 to vector<16x16xf32>
    %295 = arith.select %17, %294, %293 : vector<16x16xi1>, vector<16x16xf32>
    %c12 = arith.constant 12 : index
    %296 = memref.load %arg1[%c12] : memref<144xf32, #tpu.memory_space<smem>>
    %297 = vector.broadcast %296 : f32 to vector<16x16xf32>
    %298 = arith.mulf %297, %290 : vector<16x16xf32>
    %299 = arith.addf %273, %298 : vector<16x16xf32>
    %c48 = arith.constant 48 : index
    %300 = memref.load %arg1[%c48] : memref<144xf32, #tpu.memory_space<smem>>
    %301 = vector.broadcast %300 : f32 to vector<16x16xf32>
    %302 = arith.mulf %301, %290 : vector<16x16xf32>
    %303 = arith.addf %277, %302 : vector<16x16xf32>
    %c84 = arith.constant 84 : index
    %304 = memref.load %arg1[%c84] : memref<144xf32, #tpu.memory_space<smem>>
    %305 = vector.broadcast %304 : f32 to vector<16x16xf32>
    %306 = arith.mulf %305, %290 : vector<16x16xf32>
    %307 = arith.addf %281, %306 : vector<16x16xf32>
    %c120 = arith.constant 120 : index
    %308 = memref.load %arg1[%c120] : memref<144xf32, #tpu.memory_space<smem>>
    %309 = vector.broadcast %308 : f32 to vector<16x16xf32>
    %310 = arith.mulf %309, %290 : vector<16x16xf32>
    %311 = arith.addf %285, %310 : vector<16x16xf32>
    %c13 = arith.constant 13 : index
    %312 = memref.load %arg1[%c13] : memref<144xf32, #tpu.memory_space<smem>>
    %313 = vector.broadcast %312 : f32 to vector<16x16xf32>
    %314 = arith.mulf %313, %21 : vector<16x16xf32>
    %315 = arith.addf %299, %314 : vector<16x16xf32>
    %c49 = arith.constant 49 : index
    %316 = memref.load %arg1[%c49] : memref<144xf32, #tpu.memory_space<smem>>
    %317 = vector.broadcast %316 : f32 to vector<16x16xf32>
    %318 = arith.mulf %317, %21 : vector<16x16xf32>
    %319 = arith.addf %303, %318 : vector<16x16xf32>
    %c85 = arith.constant 85 : index
    %320 = memref.load %arg1[%c85] : memref<144xf32, #tpu.memory_space<smem>>
    %321 = vector.broadcast %320 : f32 to vector<16x16xf32>
    %322 = arith.mulf %321, %21 : vector<16x16xf32>
    %323 = arith.addf %307, %322 : vector<16x16xf32>
    %c121 = arith.constant 121 : index
    %324 = memref.load %arg1[%c121] : memref<144xf32, #tpu.memory_space<smem>>
    %325 = vector.broadcast %324 : f32 to vector<16x16xf32>
    %326 = arith.mulf %325, %21 : vector<16x16xf32>
    %327 = arith.addf %311, %326 : vector<16x16xf32>
    %c14 = arith.constant 14 : index
    %328 = memref.load %arg1[%c14] : memref<144xf32, #tpu.memory_space<smem>>
    %329 = vector.broadcast %328 : f32 to vector<16x16xf32>
    %330 = arith.mulf %329, %295 : vector<16x16xf32>
    %331 = arith.addf %315, %330 : vector<16x16xf32>
    %c50 = arith.constant 50 : index
    %332 = memref.load %arg1[%c50] : memref<144xf32, #tpu.memory_space<smem>>
    %333 = vector.broadcast %332 : f32 to vector<16x16xf32>
    %334 = arith.mulf %333, %295 : vector<16x16xf32>
    %335 = arith.addf %319, %334 : vector<16x16xf32>
    %c86 = arith.constant 86 : index
    %336 = memref.load %arg1[%c86] : memref<144xf32, #tpu.memory_space<smem>>
    %337 = vector.broadcast %336 : f32 to vector<16x16xf32>
    %338 = arith.mulf %337, %295 : vector<16x16xf32>
    %339 = arith.addf %323, %338 : vector<16x16xf32>
    %c122 = arith.constant 122 : index
    %340 = memref.load %arg1[%c122] : memref<144xf32, #tpu.memory_space<smem>>
    %341 = vector.broadcast %340 : f32 to vector<16x16xf32>
    %342 = arith.mulf %341, %295 : vector<16x16xf32>
    %343 = arith.addf %327, %342 : vector<16x16xf32>
    %344 = vector.extract_strided_slice %227 {offsets = [0, 15], sizes = [16, 1], strides = [1, 1]} : vector<16x16xf32> to vector<16x1xf32>
    %345 = vector.extract_strided_slice %227 {offsets = [0, 0], sizes = [16, 15], strides = [1, 1]} : vector<16x16xf32> to vector<16x15xf32>
    %346 = tpu.concatenate %344, %345 in 1 : vector<16x1xf32>, vector<16x15xf32> -> vector<16x16xf32>
    %cst_38 = arith.constant 0.000000e+00 : f32
    %347 = vector.broadcast %cst_38 : f32 to vector<16x16xf32>
    %348 = arith.select %15, %347, %346 : vector<16x16xi1>, vector<16x16xf32>
    %349 = vector.extract_strided_slice %227 {offsets = [0, 1], sizes = [16, 15], strides = [1, 1]} : vector<16x16xf32> to vector<16x15xf32>
    %350 = vector.extract_strided_slice %227 {offsets = [0, 0], sizes = [16, 1], strides = [1, 1]} : vector<16x16xf32> to vector<16x1xf32>
    %351 = tpu.concatenate %349, %350 in 1 : vector<16x15xf32>, vector<16x1xf32> -> vector<16x16xf32>
    %cst_39 = arith.constant 0.000000e+00 : f32
    %352 = vector.broadcast %cst_39 : f32 to vector<16x16xf32>
    %353 = arith.select %17, %352, %351 : vector<16x16xi1>, vector<16x16xf32>
    %c15 = arith.constant 15 : index
    %354 = memref.load %arg1[%c15] : memref<144xf32, #tpu.memory_space<smem>>
    %355 = vector.broadcast %354 : f32 to vector<16x16xf32>
    %356 = arith.mulf %355, %348 : vector<16x16xf32>
    %357 = arith.addf %331, %356 : vector<16x16xf32>
    %c51 = arith.constant 51 : index
    %358 = memref.load %arg1[%c51] : memref<144xf32, #tpu.memory_space<smem>>
    %359 = vector.broadcast %358 : f32 to vector<16x16xf32>
    %360 = arith.mulf %359, %348 : vector<16x16xf32>
    %361 = arith.addf %335, %360 : vector<16x16xf32>
    %c87 = arith.constant 87 : index
    %362 = memref.load %arg1[%c87] : memref<144xf32, #tpu.memory_space<smem>>
    %363 = vector.broadcast %362 : f32 to vector<16x16xf32>
    %364 = arith.mulf %363, %348 : vector<16x16xf32>
    %365 = arith.addf %339, %364 : vector<16x16xf32>
    %c123 = arith.constant 123 : index
    %366 = memref.load %arg1[%c123] : memref<144xf32, #tpu.memory_space<smem>>
    %367 = vector.broadcast %366 : f32 to vector<16x16xf32>
    %368 = arith.mulf %367, %348 : vector<16x16xf32>
    %369 = arith.addf %343, %368 : vector<16x16xf32>
    %c16 = arith.constant 16 : index
    %370 = memref.load %arg1[%c16] : memref<144xf32, #tpu.memory_space<smem>>
    %371 = vector.broadcast %370 : f32 to vector<16x16xf32>
    %372 = arith.mulf %371, %227 : vector<16x16xf32>
    %373 = arith.addf %357, %372 : vector<16x16xf32>
    %c52 = arith.constant 52 : index
    %374 = memref.load %arg1[%c52] : memref<144xf32, #tpu.memory_space<smem>>
    %375 = vector.broadcast %374 : f32 to vector<16x16xf32>
    %376 = arith.mulf %375, %227 : vector<16x16xf32>
    %377 = arith.addf %361, %376 : vector<16x16xf32>
    %c88 = arith.constant 88 : index
    %378 = memref.load %arg1[%c88] : memref<144xf32, #tpu.memory_space<smem>>
    %379 = vector.broadcast %378 : f32 to vector<16x16xf32>
    %380 = arith.mulf %379, %227 : vector<16x16xf32>
    %381 = arith.addf %365, %380 : vector<16x16xf32>
    %c124 = arith.constant 124 : index
    %382 = memref.load %arg1[%c124] : memref<144xf32, #tpu.memory_space<smem>>
    %383 = vector.broadcast %382 : f32 to vector<16x16xf32>
    %384 = arith.mulf %383, %227 : vector<16x16xf32>
    %385 = arith.addf %369, %384 : vector<16x16xf32>
    %c17 = arith.constant 17 : index
    %386 = memref.load %arg1[%c17] : memref<144xf32, #tpu.memory_space<smem>>
    %387 = vector.broadcast %386 : f32 to vector<16x16xf32>
    %388 = arith.mulf %387, %353 : vector<16x16xf32>
    %389 = arith.addf %373, %388 : vector<16x16xf32>
    %c53 = arith.constant 53 : index
    %390 = memref.load %arg1[%c53] : memref<144xf32, #tpu.memory_space<smem>>
    %391 = vector.broadcast %390 : f32 to vector<16x16xf32>
    %392 = arith.mulf %391, %353 : vector<16x16xf32>
    %393 = arith.addf %377, %392 : vector<16x16xf32>
    %c89 = arith.constant 89 : index
    %394 = memref.load %arg1[%c89] : memref<144xf32, #tpu.memory_space<smem>>
    %395 = vector.broadcast %394 : f32 to vector<16x16xf32>
    %396 = arith.mulf %395, %353 : vector<16x16xf32>
    %397 = arith.addf %381, %396 : vector<16x16xf32>
    %c125 = arith.constant 125 : index
    %398 = memref.load %arg1[%c125] : memref<144xf32, #tpu.memory_space<smem>>
    %399 = vector.broadcast %398 : f32 to vector<16x16xf32>
    %400 = arith.mulf %399, %353 : vector<16x16xf32>
    %401 = arith.addf %385, %400 : vector<16x16xf32>
    %402 = vector.extract_strided_slice %23 {offsets = [15, 0], sizes = [1, 16], strides = [1, 1]} : vector<16x16xf32> to vector<1x16xf32>
    %403 = vector.extract_strided_slice %23 {offsets = [0, 0], sizes = [15, 16], strides = [1, 1]} : vector<16x16xf32> to vector<15x16xf32>
    %404 = tpu.concatenate %402, %403 in 0 : vector<1x16xf32>, vector<15x16xf32> -> vector<16x16xf32>
    %cst_40 = arith.constant 0.000000e+00 : f32
    %405 = vector.broadcast %cst_40 : f32 to vector<16x16xf32>
    %406 = arith.select %11, %405, %404 : vector<16x16xi1>, vector<16x16xf32>
    %407 = vector.extract_strided_slice %23 {offsets = [1, 0], sizes = [15, 16], strides = [1, 1]} : vector<16x16xf32> to vector<15x16xf32>
    %408 = vector.extract_strided_slice %23 {offsets = [0, 0], sizes = [1, 16], strides = [1, 1]} : vector<16x16xf32> to vector<1x16xf32>
    %409 = tpu.concatenate %407, %408 in 0 : vector<15x16xf32>, vector<1x16xf32> -> vector<16x16xf32>
    %cst_41 = arith.constant 0.000000e+00 : f32
    %410 = vector.broadcast %cst_41 : f32 to vector<16x16xf32>
    %411 = arith.select %13, %410, %409 : vector<16x16xi1>, vector<16x16xf32>
    %412 = vector.extract_strided_slice %406 {offsets = [0, 15], sizes = [16, 1], strides = [1, 1]} : vector<16x16xf32> to vector<16x1xf32>
    %413 = vector.extract_strided_slice %406 {offsets = [0, 0], sizes = [16, 15], strides = [1, 1]} : vector<16x16xf32> to vector<16x15xf32>
    %414 = tpu.concatenate %412, %413 in 1 : vector<16x1xf32>, vector<16x15xf32> -> vector<16x16xf32>
    %cst_42 = arith.constant 0.000000e+00 : f32
    %415 = vector.broadcast %cst_42 : f32 to vector<16x16xf32>
    %416 = arith.select %15, %415, %414 : vector<16x16xi1>, vector<16x16xf32>
    %417 = vector.extract_strided_slice %406 {offsets = [0, 1], sizes = [16, 15], strides = [1, 1]} : vector<16x16xf32> to vector<16x15xf32>
    %418 = vector.extract_strided_slice %406 {offsets = [0, 0], sizes = [16, 1], strides = [1, 1]} : vector<16x16xf32> to vector<16x1xf32>
    %419 = tpu.concatenate %417, %418 in 1 : vector<16x15xf32>, vector<16x1xf32> -> vector<16x16xf32>
    %cst_43 = arith.constant 0.000000e+00 : f32
    %420 = vector.broadcast %cst_43 : f32 to vector<16x16xf32>
    %421 = arith.select %17, %420, %419 : vector<16x16xi1>, vector<16x16xf32>
    %c18 = arith.constant 18 : index
    %422 = memref.load %arg1[%c18] : memref<144xf32, #tpu.memory_space<smem>>
    %423 = vector.broadcast %422 : f32 to vector<16x16xf32>
    %424 = arith.mulf %423, %416 : vector<16x16xf32>
    %425 = arith.addf %389, %424 : vector<16x16xf32>
    %c54 = arith.constant 54 : index
    %426 = memref.load %arg1[%c54] : memref<144xf32, #tpu.memory_space<smem>>
    %427 = vector.broadcast %426 : f32 to vector<16x16xf32>
    %428 = arith.mulf %427, %416 : vector<16x16xf32>
    %429 = arith.addf %393, %428 : vector<16x16xf32>
    %c90 = arith.constant 90 : index
    %430 = memref.load %arg1[%c90] : memref<144xf32, #tpu.memory_space<smem>>
    %431 = vector.broadcast %430 : f32 to vector<16x16xf32>
    %432 = arith.mulf %431, %416 : vector<16x16xf32>
    %433 = arith.addf %397, %432 : vector<16x16xf32>
    %c126 = arith.constant 126 : index
    %434 = memref.load %arg1[%c126] : memref<144xf32, #tpu.memory_space<smem>>
    %435 = vector.broadcast %434 : f32 to vector<16x16xf32>
    %436 = arith.mulf %435, %416 : vector<16x16xf32>
    %437 = arith.addf %401, %436 : vector<16x16xf32>
    %c19 = arith.constant 19 : index
    %438 = memref.load %arg1[%c19] : memref<144xf32, #tpu.memory_space<smem>>
    %439 = vector.broadcast %438 : f32 to vector<16x16xf32>
    %440 = arith.mulf %439, %406 : vector<16x16xf32>
    %441 = arith.addf %425, %440 : vector<16x16xf32>
    %c55 = arith.constant 55 : index
    %442 = memref.load %arg1[%c55] : memref<144xf32, #tpu.memory_space<smem>>
    %443 = vector.broadcast %442 : f32 to vector<16x16xf32>
    %444 = arith.mulf %443, %406 : vector<16x16xf32>
    %445 = arith.addf %429, %444 : vector<16x16xf32>
    %c91 = arith.constant 91 : index
    %446 = memref.load %arg1[%c91] : memref<144xf32, #tpu.memory_space<smem>>
    %447 = vector.broadcast %446 : f32 to vector<16x16xf32>
    %448 = arith.mulf %447, %406 : vector<16x16xf32>
    %449 = arith.addf %433, %448 : vector<16x16xf32>
    %c127 = arith.constant 127 : index
    %450 = memref.load %arg1[%c127] : memref<144xf32, #tpu.memory_space<smem>>
    %451 = vector.broadcast %450 : f32 to vector<16x16xf32>
    %452 = arith.mulf %451, %406 : vector<16x16xf32>
    %453 = arith.addf %437, %452 : vector<16x16xf32>
    %c20 = arith.constant 20 : index
    %454 = memref.load %arg1[%c20] : memref<144xf32, #tpu.memory_space<smem>>
    %455 = vector.broadcast %454 : f32 to vector<16x16xf32>
    %456 = arith.mulf %455, %421 : vector<16x16xf32>
    %457 = arith.addf %441, %456 : vector<16x16xf32>
    %c56 = arith.constant 56 : index
    %458 = memref.load %arg1[%c56] : memref<144xf32, #tpu.memory_space<smem>>
    %459 = vector.broadcast %458 : f32 to vector<16x16xf32>
    %460 = arith.mulf %459, %421 : vector<16x16xf32>
    %461 = arith.addf %445, %460 : vector<16x16xf32>
    %c92 = arith.constant 92 : index
    %462 = memref.load %arg1[%c92] : memref<144xf32, #tpu.memory_space<smem>>
    %463 = vector.broadcast %462 : f32 to vector<16x16xf32>
    %464 = arith.mulf %463, %421 : vector<16x16xf32>
    %465 = arith.addf %449, %464 : vector<16x16xf32>
    %c128 = arith.constant 128 : index
    %466 = memref.load %arg1[%c128] : memref<144xf32, #tpu.memory_space<smem>>
    %467 = vector.broadcast %466 : f32 to vector<16x16xf32>
    %468 = arith.mulf %467, %421 : vector<16x16xf32>
    %469 = arith.addf %453, %468 : vector<16x16xf32>
    %470 = vector.extract_strided_slice %23 {offsets = [0, 15], sizes = [16, 1], strides = [1, 1]} : vector<16x16xf32> to vector<16x1xf32>
    %471 = vector.extract_strided_slice %23 {offsets = [0, 0], sizes = [16, 15], strides = [1, 1]} : vector<16x16xf32> to vector<16x15xf32>
    %472 = tpu.concatenate %470, %471 in 1 : vector<16x1xf32>, vector<16x15xf32> -> vector<16x16xf32>
    %cst_44 = arith.constant 0.000000e+00 : f32
    %473 = vector.broadcast %cst_44 : f32 to vector<16x16xf32>
    %474 = arith.select %15, %473, %472 : vector<16x16xi1>, vector<16x16xf32>
    %475 = vector.extract_strided_slice %23 {offsets = [0, 1], sizes = [16, 15], strides = [1, 1]} : vector<16x16xf32> to vector<16x15xf32>
    %476 = vector.extract_strided_slice %23 {offsets = [0, 0], sizes = [16, 1], strides = [1, 1]} : vector<16x16xf32> to vector<16x1xf32>
    %477 = tpu.concatenate %475, %476 in 1 : vector<16x15xf32>, vector<16x1xf32> -> vector<16x16xf32>
    %cst_45 = arith.constant 0.000000e+00 : f32
    %478 = vector.broadcast %cst_45 : f32 to vector<16x16xf32>
    %479 = arith.select %17, %478, %477 : vector<16x16xi1>, vector<16x16xf32>
    %c21 = arith.constant 21 : index
    %480 = memref.load %arg1[%c21] : memref<144xf32, #tpu.memory_space<smem>>
    %481 = vector.broadcast %480 : f32 to vector<16x16xf32>
    %482 = arith.mulf %481, %474 : vector<16x16xf32>
    %483 = arith.addf %457, %482 : vector<16x16xf32>
    %c57 = arith.constant 57 : index
    %484 = memref.load %arg1[%c57] : memref<144xf32, #tpu.memory_space<smem>>
    %485 = vector.broadcast %484 : f32 to vector<16x16xf32>
    %486 = arith.mulf %485, %474 : vector<16x16xf32>
    %487 = arith.addf %461, %486 : vector<16x16xf32>
    %c93 = arith.constant 93 : index
    %488 = memref.load %arg1[%c93] : memref<144xf32, #tpu.memory_space<smem>>
    %489 = vector.broadcast %488 : f32 to vector<16x16xf32>
    %490 = arith.mulf %489, %474 : vector<16x16xf32>
    %491 = arith.addf %465, %490 : vector<16x16xf32>
    %c129 = arith.constant 129 : index
    %492 = memref.load %arg1[%c129] : memref<144xf32, #tpu.memory_space<smem>>
    %493 = vector.broadcast %492 : f32 to vector<16x16xf32>
    %494 = arith.mulf %493, %474 : vector<16x16xf32>
    %495 = arith.addf %469, %494 : vector<16x16xf32>
    %c22 = arith.constant 22 : index
    %496 = memref.load %arg1[%c22] : memref<144xf32, #tpu.memory_space<smem>>
    %497 = vector.broadcast %496 : f32 to vector<16x16xf32>
    %498 = arith.mulf %497, %23 : vector<16x16xf32>
    %499 = arith.addf %483, %498 : vector<16x16xf32>
    %c58 = arith.constant 58 : index
    %500 = memref.load %arg1[%c58] : memref<144xf32, #tpu.memory_space<smem>>
    %501 = vector.broadcast %500 : f32 to vector<16x16xf32>
    %502 = arith.mulf %501, %23 : vector<16x16xf32>
    %503 = arith.addf %487, %502 : vector<16x16xf32>
    %c94 = arith.constant 94 : index
    %504 = memref.load %arg1[%c94] : memref<144xf32, #tpu.memory_space<smem>>
    %505 = vector.broadcast %504 : f32 to vector<16x16xf32>
    %506 = arith.mulf %505, %23 : vector<16x16xf32>
    %507 = arith.addf %491, %506 : vector<16x16xf32>
    %c130 = arith.constant 130 : index
    %508 = memref.load %arg1[%c130] : memref<144xf32, #tpu.memory_space<smem>>
    %509 = vector.broadcast %508 : f32 to vector<16x16xf32>
    %510 = arith.mulf %509, %23 : vector<16x16xf32>
    %511 = arith.addf %495, %510 : vector<16x16xf32>
    %c23 = arith.constant 23 : index
    %512 = memref.load %arg1[%c23] : memref<144xf32, #tpu.memory_space<smem>>
    %513 = vector.broadcast %512 : f32 to vector<16x16xf32>
    %514 = arith.mulf %513, %479 : vector<16x16xf32>
    %515 = arith.addf %499, %514 : vector<16x16xf32>
    %c59 = arith.constant 59 : index
    %516 = memref.load %arg1[%c59] : memref<144xf32, #tpu.memory_space<smem>>
    %517 = vector.broadcast %516 : f32 to vector<16x16xf32>
    %518 = arith.mulf %517, %479 : vector<16x16xf32>
    %519 = arith.addf %503, %518 : vector<16x16xf32>
    %c95 = arith.constant 95 : index
    %520 = memref.load %arg1[%c95] : memref<144xf32, #tpu.memory_space<smem>>
    %521 = vector.broadcast %520 : f32 to vector<16x16xf32>
    %522 = arith.mulf %521, %479 : vector<16x16xf32>
    %523 = arith.addf %507, %522 : vector<16x16xf32>
    %c131 = arith.constant 131 : index
    %524 = memref.load %arg1[%c131] : memref<144xf32, #tpu.memory_space<smem>>
    %525 = vector.broadcast %524 : f32 to vector<16x16xf32>
    %526 = arith.mulf %525, %479 : vector<16x16xf32>
    %527 = arith.addf %511, %526 : vector<16x16xf32>
    %528 = vector.extract_strided_slice %411 {offsets = [0, 15], sizes = [16, 1], strides = [1, 1]} : vector<16x16xf32> to vector<16x1xf32>
    %529 = vector.extract_strided_slice %411 {offsets = [0, 0], sizes = [16, 15], strides = [1, 1]} : vector<16x16xf32> to vector<16x15xf32>
    %530 = tpu.concatenate %528, %529 in 1 : vector<16x1xf32>, vector<16x15xf32> -> vector<16x16xf32>
    %cst_46 = arith.constant 0.000000e+00 : f32
    %531 = vector.broadcast %cst_46 : f32 to vector<16x16xf32>
    %532 = arith.select %15, %531, %530 : vector<16x16xi1>, vector<16x16xf32>
    %533 = vector.extract_strided_slice %411 {offsets = [0, 1], sizes = [16, 15], strides = [1, 1]} : vector<16x16xf32> to vector<16x15xf32>
    %534 = vector.extract_strided_slice %411 {offsets = [0, 0], sizes = [16, 1], strides = [1, 1]} : vector<16x16xf32> to vector<16x1xf32>
    %535 = tpu.concatenate %533, %534 in 1 : vector<16x15xf32>, vector<16x1xf32> -> vector<16x16xf32>
    %cst_47 = arith.constant 0.000000e+00 : f32
    %536 = vector.broadcast %cst_47 : f32 to vector<16x16xf32>
    %537 = arith.select %17, %536, %535 : vector<16x16xi1>, vector<16x16xf32>
    %c24 = arith.constant 24 : index
    %538 = memref.load %arg1[%c24] : memref<144xf32, #tpu.memory_space<smem>>
    %539 = vector.broadcast %538 : f32 to vector<16x16xf32>
    %540 = arith.mulf %539, %532 : vector<16x16xf32>
    %541 = arith.addf %515, %540 : vector<16x16xf32>
    %c60 = arith.constant 60 : index
    %542 = memref.load %arg1[%c60] : memref<144xf32, #tpu.memory_space<smem>>
    %543 = vector.broadcast %542 : f32 to vector<16x16xf32>
    %544 = arith.mulf %543, %532 : vector<16x16xf32>
    %545 = arith.addf %519, %544 : vector<16x16xf32>
    %c96 = arith.constant 96 : index
    %546 = memref.load %arg1[%c96] : memref<144xf32, #tpu.memory_space<smem>>
    %547 = vector.broadcast %546 : f32 to vector<16x16xf32>
    %548 = arith.mulf %547, %532 : vector<16x16xf32>
    %549 = arith.addf %523, %548 : vector<16x16xf32>
    %c132 = arith.constant 132 : index
    %550 = memref.load %arg1[%c132] : memref<144xf32, #tpu.memory_space<smem>>
    %551 = vector.broadcast %550 : f32 to vector<16x16xf32>
    %552 = arith.mulf %551, %532 : vector<16x16xf32>
    %553 = arith.addf %527, %552 : vector<16x16xf32>
    %c25 = arith.constant 25 : index
    %554 = memref.load %arg1[%c25] : memref<144xf32, #tpu.memory_space<smem>>
    %555 = vector.broadcast %554 : f32 to vector<16x16xf32>
    %556 = arith.mulf %555, %411 : vector<16x16xf32>
    %557 = arith.addf %541, %556 : vector<16x16xf32>
    %c61 = arith.constant 61 : index
    %558 = memref.load %arg1[%c61] : memref<144xf32, #tpu.memory_space<smem>>
    %559 = vector.broadcast %558 : f32 to vector<16x16xf32>
    %560 = arith.mulf %559, %411 : vector<16x16xf32>
    %561 = arith.addf %545, %560 : vector<16x16xf32>
    %c97 = arith.constant 97 : index
    %562 = memref.load %arg1[%c97] : memref<144xf32, #tpu.memory_space<smem>>
    %563 = vector.broadcast %562 : f32 to vector<16x16xf32>
    %564 = arith.mulf %563, %411 : vector<16x16xf32>
    %565 = arith.addf %549, %564 : vector<16x16xf32>
    %c133 = arith.constant 133 : index
    %566 = memref.load %arg1[%c133] : memref<144xf32, #tpu.memory_space<smem>>
    %567 = vector.broadcast %566 : f32 to vector<16x16xf32>
    %568 = arith.mulf %567, %411 : vector<16x16xf32>
    %569 = arith.addf %553, %568 : vector<16x16xf32>
    %c26 = arith.constant 26 : index
    %570 = memref.load %arg1[%c26] : memref<144xf32, #tpu.memory_space<smem>>
    %571 = vector.broadcast %570 : f32 to vector<16x16xf32>
    %572 = arith.mulf %571, %537 : vector<16x16xf32>
    %573 = arith.addf %557, %572 : vector<16x16xf32>
    %c62 = arith.constant 62 : index
    %574 = memref.load %arg1[%c62] : memref<144xf32, #tpu.memory_space<smem>>
    %575 = vector.broadcast %574 : f32 to vector<16x16xf32>
    %576 = arith.mulf %575, %537 : vector<16x16xf32>
    %577 = arith.addf %561, %576 : vector<16x16xf32>
    %c98 = arith.constant 98 : index
    %578 = memref.load %arg1[%c98] : memref<144xf32, #tpu.memory_space<smem>>
    %579 = vector.broadcast %578 : f32 to vector<16x16xf32>
    %580 = arith.mulf %579, %537 : vector<16x16xf32>
    %581 = arith.addf %565, %580 : vector<16x16xf32>
    %c134 = arith.constant 134 : index
    %582 = memref.load %arg1[%c134] : memref<144xf32, #tpu.memory_space<smem>>
    %583 = vector.broadcast %582 : f32 to vector<16x16xf32>
    %584 = arith.mulf %583, %537 : vector<16x16xf32>
    %585 = arith.addf %569, %584 : vector<16x16xf32>
    %586 = vector.extract_strided_slice %25 {offsets = [15, 0], sizes = [1, 16], strides = [1, 1]} : vector<16x16xf32> to vector<1x16xf32>
    %587 = vector.extract_strided_slice %25 {offsets = [0, 0], sizes = [15, 16], strides = [1, 1]} : vector<16x16xf32> to vector<15x16xf32>
    %588 = tpu.concatenate %586, %587 in 0 : vector<1x16xf32>, vector<15x16xf32> -> vector<16x16xf32>
    %cst_48 = arith.constant 0.000000e+00 : f32
    %589 = vector.broadcast %cst_48 : f32 to vector<16x16xf32>
    %590 = arith.select %11, %589, %588 : vector<16x16xi1>, vector<16x16xf32>
    %591 = vector.extract_strided_slice %25 {offsets = [1, 0], sizes = [15, 16], strides = [1, 1]} : vector<16x16xf32> to vector<15x16xf32>
    %592 = vector.extract_strided_slice %25 {offsets = [0, 0], sizes = [1, 16], strides = [1, 1]} : vector<16x16xf32> to vector<1x16xf32>
    %593 = tpu.concatenate %591, %592 in 0 : vector<15x16xf32>, vector<1x16xf32> -> vector<16x16xf32>
    %cst_49 = arith.constant 0.000000e+00 : f32
    %594 = vector.broadcast %cst_49 : f32 to vector<16x16xf32>
    %595 = arith.select %13, %594, %593 : vector<16x16xi1>, vector<16x16xf32>
    %596 = vector.extract_strided_slice %590 {offsets = [0, 15], sizes = [16, 1], strides = [1, 1]} : vector<16x16xf32> to vector<16x1xf32>
    %597 = vector.extract_strided_slice %590 {offsets = [0, 0], sizes = [16, 15], strides = [1, 1]} : vector<16x16xf32> to vector<16x15xf32>
    %598 = tpu.concatenate %596, %597 in 1 : vector<16x1xf32>, vector<16x15xf32> -> vector<16x16xf32>
    %cst_50 = arith.constant 0.000000e+00 : f32
    %599 = vector.broadcast %cst_50 : f32 to vector<16x16xf32>
    %600 = arith.select %15, %599, %598 : vector<16x16xi1>, vector<16x16xf32>
    %601 = vector.extract_strided_slice %590 {offsets = [0, 1], sizes = [16, 15], strides = [1, 1]} : vector<16x16xf32> to vector<16x15xf32>
    %602 = vector.extract_strided_slice %590 {offsets = [0, 0], sizes = [16, 1], strides = [1, 1]} : vector<16x16xf32> to vector<16x1xf32>
    %603 = tpu.concatenate %601, %602 in 1 : vector<16x15xf32>, vector<16x1xf32> -> vector<16x16xf32>
    %cst_51 = arith.constant 0.000000e+00 : f32
    %604 = vector.broadcast %cst_51 : f32 to vector<16x16xf32>
    %605 = arith.select %17, %604, %603 : vector<16x16xi1>, vector<16x16xf32>
    %c27 = arith.constant 27 : index
    %606 = memref.load %arg1[%c27] : memref<144xf32, #tpu.memory_space<smem>>
    %607 = vector.broadcast %606 : f32 to vector<16x16xf32>
    %608 = arith.mulf %607, %600 : vector<16x16xf32>
    %609 = arith.addf %573, %608 : vector<16x16xf32>
    %c63 = arith.constant 63 : index
    %610 = memref.load %arg1[%c63] : memref<144xf32, #tpu.memory_space<smem>>
    %611 = vector.broadcast %610 : f32 to vector<16x16xf32>
    %612 = arith.mulf %611, %600 : vector<16x16xf32>
    %613 = arith.addf %577, %612 : vector<16x16xf32>
    %c99 = arith.constant 99 : index
    %614 = memref.load %arg1[%c99] : memref<144xf32, #tpu.memory_space<smem>>
    %615 = vector.broadcast %614 : f32 to vector<16x16xf32>
    %616 = arith.mulf %615, %600 : vector<16x16xf32>
    %617 = arith.addf %581, %616 : vector<16x16xf32>
    %c135 = arith.constant 135 : index
    %618 = memref.load %arg1[%c135] : memref<144xf32, #tpu.memory_space<smem>>
    %619 = vector.broadcast %618 : f32 to vector<16x16xf32>
    %620 = arith.mulf %619, %600 : vector<16x16xf32>
    %621 = arith.addf %585, %620 : vector<16x16xf32>
    %c28 = arith.constant 28 : index
    %622 = memref.load %arg1[%c28] : memref<144xf32, #tpu.memory_space<smem>>
    %623 = vector.broadcast %622 : f32 to vector<16x16xf32>
    %624 = arith.mulf %623, %590 : vector<16x16xf32>
    %625 = arith.addf %609, %624 : vector<16x16xf32>
    %c64 = arith.constant 64 : index
    %626 = memref.load %arg1[%c64] : memref<144xf32, #tpu.memory_space<smem>>
    %627 = vector.broadcast %626 : f32 to vector<16x16xf32>
    %628 = arith.mulf %627, %590 : vector<16x16xf32>
    %629 = arith.addf %613, %628 : vector<16x16xf32>
    %c100 = arith.constant 100 : index
    %630 = memref.load %arg1[%c100] : memref<144xf32, #tpu.memory_space<smem>>
    %631 = vector.broadcast %630 : f32 to vector<16x16xf32>
    %632 = arith.mulf %631, %590 : vector<16x16xf32>
    %633 = arith.addf %617, %632 : vector<16x16xf32>
    %c136 = arith.constant 136 : index
    %634 = memref.load %arg1[%c136] : memref<144xf32, #tpu.memory_space<smem>>
    %635 = vector.broadcast %634 : f32 to vector<16x16xf32>
    %636 = arith.mulf %635, %590 : vector<16x16xf32>
    %637 = arith.addf %621, %636 : vector<16x16xf32>
    %c29 = arith.constant 29 : index
    %638 = memref.load %arg1[%c29] : memref<144xf32, #tpu.memory_space<smem>>
    %639 = vector.broadcast %638 : f32 to vector<16x16xf32>
    %640 = arith.mulf %639, %605 : vector<16x16xf32>
    %641 = arith.addf %625, %640 : vector<16x16xf32>
    %c65 = arith.constant 65 : index
    %642 = memref.load %arg1[%c65] : memref<144xf32, #tpu.memory_space<smem>>
    %643 = vector.broadcast %642 : f32 to vector<16x16xf32>
    %644 = arith.mulf %643, %605 : vector<16x16xf32>
    %645 = arith.addf %629, %644 : vector<16x16xf32>
    %c101 = arith.constant 101 : index
    %646 = memref.load %arg1[%c101] : memref<144xf32, #tpu.memory_space<smem>>
    %647 = vector.broadcast %646 : f32 to vector<16x16xf32>
    %648 = arith.mulf %647, %605 : vector<16x16xf32>
    %649 = arith.addf %633, %648 : vector<16x16xf32>
    %c137 = arith.constant 137 : index
    %650 = memref.load %arg1[%c137] : memref<144xf32, #tpu.memory_space<smem>>
    %651 = vector.broadcast %650 : f32 to vector<16x16xf32>
    %652 = arith.mulf %651, %605 : vector<16x16xf32>
    %653 = arith.addf %637, %652 : vector<16x16xf32>
    %654 = vector.extract_strided_slice %25 {offsets = [0, 15], sizes = [16, 1], strides = [1, 1]} : vector<16x16xf32> to vector<16x1xf32>
    %655 = vector.extract_strided_slice %25 {offsets = [0, 0], sizes = [16, 15], strides = [1, 1]} : vector<16x16xf32> to vector<16x15xf32>
    %656 = tpu.concatenate %654, %655 in 1 : vector<16x1xf32>, vector<16x15xf32> -> vector<16x16xf32>
    %cst_52 = arith.constant 0.000000e+00 : f32
    %657 = vector.broadcast %cst_52 : f32 to vector<16x16xf32>
    %658 = arith.select %15, %657, %656 : vector<16x16xi1>, vector<16x16xf32>
    %659 = vector.extract_strided_slice %25 {offsets = [0, 1], sizes = [16, 15], strides = [1, 1]} : vector<16x16xf32> to vector<16x15xf32>
    %660 = vector.extract_strided_slice %25 {offsets = [0, 0], sizes = [16, 1], strides = [1, 1]} : vector<16x16xf32> to vector<16x1xf32>
    %661 = tpu.concatenate %659, %660 in 1 : vector<16x15xf32>, vector<16x1xf32> -> vector<16x16xf32>
    %cst_53 = arith.constant 0.000000e+00 : f32
    %662 = vector.broadcast %cst_53 : f32 to vector<16x16xf32>
    %663 = arith.select %17, %662, %661 : vector<16x16xi1>, vector<16x16xf32>
    %c30 = arith.constant 30 : index
    %664 = memref.load %arg1[%c30] : memref<144xf32, #tpu.memory_space<smem>>
    %665 = vector.broadcast %664 : f32 to vector<16x16xf32>
    %666 = arith.mulf %665, %658 : vector<16x16xf32>
    %667 = arith.addf %641, %666 : vector<16x16xf32>
    %c66 = arith.constant 66 : index
    %668 = memref.load %arg1[%c66] : memref<144xf32, #tpu.memory_space<smem>>
    %669 = vector.broadcast %668 : f32 to vector<16x16xf32>
    %670 = arith.mulf %669, %658 : vector<16x16xf32>
    %671 = arith.addf %645, %670 : vector<16x16xf32>
    %c102 = arith.constant 102 : index
    %672 = memref.load %arg1[%c102] : memref<144xf32, #tpu.memory_space<smem>>
    %673 = vector.broadcast %672 : f32 to vector<16x16xf32>
    %674 = arith.mulf %673, %658 : vector<16x16xf32>
    %675 = arith.addf %649, %674 : vector<16x16xf32>
    %c138 = arith.constant 138 : index
    %676 = memref.load %arg1[%c138] : memref<144xf32, #tpu.memory_space<smem>>
    %677 = vector.broadcast %676 : f32 to vector<16x16xf32>
    %678 = arith.mulf %677, %658 : vector<16x16xf32>
    %679 = arith.addf %653, %678 : vector<16x16xf32>
    %c31 = arith.constant 31 : index
    %680 = memref.load %arg1[%c31] : memref<144xf32, #tpu.memory_space<smem>>
    %681 = vector.broadcast %680 : f32 to vector<16x16xf32>
    %682 = arith.mulf %681, %25 : vector<16x16xf32>
    %683 = arith.addf %667, %682 : vector<16x16xf32>
    %c67 = arith.constant 67 : index
    %684 = memref.load %arg1[%c67] : memref<144xf32, #tpu.memory_space<smem>>
    %685 = vector.broadcast %684 : f32 to vector<16x16xf32>
    %686 = arith.mulf %685, %25 : vector<16x16xf32>
    %687 = arith.addf %671, %686 : vector<16x16xf32>
    %c103 = arith.constant 103 : index
    %688 = memref.load %arg1[%c103] : memref<144xf32, #tpu.memory_space<smem>>
    %689 = vector.broadcast %688 : f32 to vector<16x16xf32>
    %690 = arith.mulf %689, %25 : vector<16x16xf32>
    %691 = arith.addf %675, %690 : vector<16x16xf32>
    %c139 = arith.constant 139 : index
    %692 = memref.load %arg1[%c139] : memref<144xf32, #tpu.memory_space<smem>>
    %693 = vector.broadcast %692 : f32 to vector<16x16xf32>
    %694 = arith.mulf %693, %25 : vector<16x16xf32>
    %695 = arith.addf %679, %694 : vector<16x16xf32>
    %c32 = arith.constant 32 : index
    %696 = memref.load %arg1[%c32] : memref<144xf32, #tpu.memory_space<smem>>
    %697 = vector.broadcast %696 : f32 to vector<16x16xf32>
    %698 = arith.mulf %697, %663 : vector<16x16xf32>
    %699 = arith.addf %683, %698 : vector<16x16xf32>
    %c68 = arith.constant 68 : index
    %700 = memref.load %arg1[%c68] : memref<144xf32, #tpu.memory_space<smem>>
    %701 = vector.broadcast %700 : f32 to vector<16x16xf32>
    %702 = arith.mulf %701, %663 : vector<16x16xf32>
    %703 = arith.addf %687, %702 : vector<16x16xf32>
    %c104 = arith.constant 104 : index
    %704 = memref.load %arg1[%c104] : memref<144xf32, #tpu.memory_space<smem>>
    %705 = vector.broadcast %704 : f32 to vector<16x16xf32>
    %706 = arith.mulf %705, %663 : vector<16x16xf32>
    %707 = arith.addf %691, %706 : vector<16x16xf32>
    %c140 = arith.constant 140 : index
    %708 = memref.load %arg1[%c140] : memref<144xf32, #tpu.memory_space<smem>>
    %709 = vector.broadcast %708 : f32 to vector<16x16xf32>
    %710 = arith.mulf %709, %663 : vector<16x16xf32>
    %711 = arith.addf %695, %710 : vector<16x16xf32>
    %712 = vector.extract_strided_slice %595 {offsets = [0, 15], sizes = [16, 1], strides = [1, 1]} : vector<16x16xf32> to vector<16x1xf32>
    %713 = vector.extract_strided_slice %595 {offsets = [0, 0], sizes = [16, 15], strides = [1, 1]} : vector<16x16xf32> to vector<16x15xf32>
    %714 = tpu.concatenate %712, %713 in 1 : vector<16x1xf32>, vector<16x15xf32> -> vector<16x16xf32>
    %cst_54 = arith.constant 0.000000e+00 : f32
    %715 = vector.broadcast %cst_54 : f32 to vector<16x16xf32>
    %716 = arith.select %15, %715, %714 : vector<16x16xi1>, vector<16x16xf32>
    %717 = vector.extract_strided_slice %595 {offsets = [0, 1], sizes = [16, 15], strides = [1, 1]} : vector<16x16xf32> to vector<16x15xf32>
    %718 = vector.extract_strided_slice %595 {offsets = [0, 0], sizes = [16, 1], strides = [1, 1]} : vector<16x16xf32> to vector<16x1xf32>
    %719 = tpu.concatenate %717, %718 in 1 : vector<16x15xf32>, vector<16x1xf32> -> vector<16x16xf32>
    %cst_55 = arith.constant 0.000000e+00 : f32
    %720 = vector.broadcast %cst_55 : f32 to vector<16x16xf32>
    %721 = arith.select %17, %720, %719 : vector<16x16xi1>, vector<16x16xf32>
    %c33 = arith.constant 33 : index
    %722 = memref.load %arg1[%c33] : memref<144xf32, #tpu.memory_space<smem>>
    %723 = vector.broadcast %722 : f32 to vector<16x16xf32>
    %724 = arith.mulf %723, %716 : vector<16x16xf32>
    %725 = arith.addf %699, %724 : vector<16x16xf32>
    %c69 = arith.constant 69 : index
    %726 = memref.load %arg1[%c69] : memref<144xf32, #tpu.memory_space<smem>>
    %727 = vector.broadcast %726 : f32 to vector<16x16xf32>
    %728 = arith.mulf %727, %716 : vector<16x16xf32>
    %729 = arith.addf %703, %728 : vector<16x16xf32>
    %c105 = arith.constant 105 : index
    %730 = memref.load %arg1[%c105] : memref<144xf32, #tpu.memory_space<smem>>
    %731 = vector.broadcast %730 : f32 to vector<16x16xf32>
    %732 = arith.mulf %731, %716 : vector<16x16xf32>
    %733 = arith.addf %707, %732 : vector<16x16xf32>
    %c141 = arith.constant 141 : index
    %734 = memref.load %arg1[%c141] : memref<144xf32, #tpu.memory_space<smem>>
    %735 = vector.broadcast %734 : f32 to vector<16x16xf32>
    %736 = arith.mulf %735, %716 : vector<16x16xf32>
    %737 = arith.addf %711, %736 : vector<16x16xf32>
    %c34 = arith.constant 34 : index
    %738 = memref.load %arg1[%c34] : memref<144xf32, #tpu.memory_space<smem>>
    %739 = vector.broadcast %738 : f32 to vector<16x16xf32>
    %740 = arith.mulf %739, %595 : vector<16x16xf32>
    %741 = arith.addf %725, %740 : vector<16x16xf32>
    %c70 = arith.constant 70 : index
    %742 = memref.load %arg1[%c70] : memref<144xf32, #tpu.memory_space<smem>>
    %743 = vector.broadcast %742 : f32 to vector<16x16xf32>
    %744 = arith.mulf %743, %595 : vector<16x16xf32>
    %745 = arith.addf %729, %744 : vector<16x16xf32>
    %c106 = arith.constant 106 : index
    %746 = memref.load %arg1[%c106] : memref<144xf32, #tpu.memory_space<smem>>
    %747 = vector.broadcast %746 : f32 to vector<16x16xf32>
    %748 = arith.mulf %747, %595 : vector<16x16xf32>
    %749 = arith.addf %733, %748 : vector<16x16xf32>
    %c142 = arith.constant 142 : index
    %750 = memref.load %arg1[%c142] : memref<144xf32, #tpu.memory_space<smem>>
    %751 = vector.broadcast %750 : f32 to vector<16x16xf32>
    %752 = arith.mulf %751, %595 : vector<16x16xf32>
    %753 = arith.addf %737, %752 : vector<16x16xf32>
    %c35 = arith.constant 35 : index
    %754 = memref.load %arg1[%c35] : memref<144xf32, #tpu.memory_space<smem>>
    %755 = vector.broadcast %754 : f32 to vector<16x16xf32>
    %756 = arith.mulf %755, %721 : vector<16x16xf32>
    %757 = arith.addf %741, %756 : vector<16x16xf32>
    %c71 = arith.constant 71 : index
    %758 = memref.load %arg1[%c71] : memref<144xf32, #tpu.memory_space<smem>>
    %759 = vector.broadcast %758 : f32 to vector<16x16xf32>
    %760 = arith.mulf %759, %721 : vector<16x16xf32>
    %761 = arith.addf %745, %760 : vector<16x16xf32>
    %c107 = arith.constant 107 : index
    %762 = memref.load %arg1[%c107] : memref<144xf32, #tpu.memory_space<smem>>
    %763 = vector.broadcast %762 : f32 to vector<16x16xf32>
    %764 = arith.mulf %763, %721 : vector<16x16xf32>
    %765 = arith.addf %749, %764 : vector<16x16xf32>
    %c143 = arith.constant 143 : index
    %766 = memref.load %arg1[%c143] : memref<144xf32, #tpu.memory_space<smem>>
    %767 = vector.broadcast %766 : f32 to vector<16x16xf32>
    %768 = arith.mulf %767, %721 : vector<16x16xf32>
    %769 = arith.addf %753, %768 : vector<16x16xf32>
    %cst_56 = arith.constant 0.000000e+00 : f32
    %770 = vector.broadcast %cst_56 : f32 to vector<16x16xf32>
    %cst_57 = arith.constant 0.000000e+00 : f32
    %771 = vector.broadcast %cst_57 : f32 to vector<16x16xf32>
    %772 = arith.maximumf %757, %771 : vector<16x16xf32>
    %773 = vector.extract_strided_slice %772 {offsets = [0, 1], sizes = [16, 15], strides = [1, 1]} : vector<16x16xf32> to vector<16x15xf32>
    %774 = vector.extract_strided_slice %772 {offsets = [0, 0], sizes = [16, 1], strides = [1, 1]} : vector<16x16xf32> to vector<16x1xf32>
    %775 = tpu.concatenate %773, %774 in 1 : vector<16x15xf32>, vector<16x1xf32> -> vector<16x16xf32>
    %776 = vector.extract_strided_slice %772 {offsets = [0, 15], sizes = [16, 1], strides = [1, 1]} : vector<16x16xf32> to vector<16x1xf32>
    %777 = vector.extract_strided_slice %772 {offsets = [0, 0], sizes = [16, 15], strides = [1, 1]} : vector<16x16xf32> to vector<16x15xf32>
    %778 = tpu.concatenate %776, %777 in 1 : vector<16x1xf32>, vector<16x15xf32> -> vector<16x16xf32>
    %779 = arith.select %9, %775, %778 : vector<16x16xi1>, vector<16x16xf32>
    %780 = vector.extract_strided_slice %772 {offsets = [1, 0], sizes = [15, 16], strides = [1, 1]} : vector<16x16xf32> to vector<15x16xf32>
    %781 = vector.extract_strided_slice %772 {offsets = [0, 0], sizes = [1, 16], strides = [1, 1]} : vector<16x16xf32> to vector<1x16xf32>
    %782 = tpu.concatenate %780, %781 in 0 : vector<15x16xf32>, vector<1x16xf32> -> vector<16x16xf32>
    %783 = vector.extract_strided_slice %772 {offsets = [15, 0], sizes = [1, 16], strides = [1, 1]} : vector<16x16xf32> to vector<1x16xf32>
    %784 = vector.extract_strided_slice %772 {offsets = [0, 0], sizes = [15, 16], strides = [1, 1]} : vector<16x16xf32> to vector<15x16xf32>
    %785 = tpu.concatenate %783, %784 in 0 : vector<1x16xf32>, vector<15x16xf32> -> vector<16x16xf32>
    %786 = arith.select %5, %782, %785 : vector<16x16xi1>, vector<16x16xf32>
    %787 = vector.extract_strided_slice %786 {offsets = [0, 1], sizes = [16, 15], strides = [1, 1]} : vector<16x16xf32> to vector<16x15xf32>
    %788 = vector.extract_strided_slice %786 {offsets = [0, 0], sizes = [16, 1], strides = [1, 1]} : vector<16x16xf32> to vector<16x1xf32>
    %789 = tpu.concatenate %787, %788 in 1 : vector<16x15xf32>, vector<16x1xf32> -> vector<16x16xf32>
    %790 = vector.extract_strided_slice %786 {offsets = [0, 15], sizes = [16, 1], strides = [1, 1]} : vector<16x16xf32> to vector<16x1xf32>
    %791 = vector.extract_strided_slice %786 {offsets = [0, 0], sizes = [16, 15], strides = [1, 1]} : vector<16x16xf32> to vector<16x15xf32>
    %792 = tpu.concatenate %790, %791 in 1 : vector<16x1xf32>, vector<16x15xf32> -> vector<16x16xf32>
    %793 = arith.select %9, %789, %792 : vector<16x16xi1>, vector<16x16xf32>
    %794 = arith.addf %772, %779 : vector<16x16xf32>
    %795 = arith.addf %794, %786 : vector<16x16xf32>
    %796 = arith.addf %795, %793 : vector<16x16xf32>
    %cst_58 = arith.constant 2.500000e-01 : f32
    %797 = vector.broadcast %cst_58 : f32 to vector<16x16xf32>
    %798 = arith.mulf %796, %797 : vector<16x16xf32>
    %799 = arith.maximumf %772, %779 : vector<16x16xf32>
    %800 = arith.maximumf %786, %793 : vector<16x16xf32>
    %801 = arith.maximumf %799, %800 : vector<16x16xf32>
    %802 = arith.subf %798, %801 : vector<16x16xf32>
    %803 = arith.mulf %802, %802 : vector<16x16xf32>
    %804 = arith.addf %770, %803 : vector<16x16xf32>
    %cst_59 = arith.constant 0.000000e+00 : f32
    %805 = vector.broadcast %cst_59 : f32 to vector<16x16xf32>
    %806 = arith.maximumf %761, %805 : vector<16x16xf32>
    %807 = vector.extract_strided_slice %806 {offsets = [0, 1], sizes = [16, 15], strides = [1, 1]} : vector<16x16xf32> to vector<16x15xf32>
    %808 = vector.extract_strided_slice %806 {offsets = [0, 0], sizes = [16, 1], strides = [1, 1]} : vector<16x16xf32> to vector<16x1xf32>
    %809 = tpu.concatenate %807, %808 in 1 : vector<16x15xf32>, vector<16x1xf32> -> vector<16x16xf32>
    %810 = vector.extract_strided_slice %806 {offsets = [0, 15], sizes = [16, 1], strides = [1, 1]} : vector<16x16xf32> to vector<16x1xf32>
    %811 = vector.extract_strided_slice %806 {offsets = [0, 0], sizes = [16, 15], strides = [1, 1]} : vector<16x16xf32> to vector<16x15xf32>
    %812 = tpu.concatenate %810, %811 in 1 : vector<16x1xf32>, vector<16x15xf32> -> vector<16x16xf32>
    %813 = arith.select %9, %809, %812 : vector<16x16xi1>, vector<16x16xf32>
    %814 = vector.extract_strided_slice %806 {offsets = [1, 0], sizes = [15, 16], strides = [1, 1]} : vector<16x16xf32> to vector<15x16xf32>
    %815 = vector.extract_strided_slice %806 {offsets = [0, 0], sizes = [1, 16], strides = [1, 1]} : vector<16x16xf32> to vector<1x16xf32>
    %816 = tpu.concatenate %814, %815 in 0 : vector<15x16xf32>, vector<1x16xf32> -> vector<16x16xf32>
    %817 = vector.extract_strided_slice %806 {offsets = [15, 0], sizes = [1, 16], strides = [1, 1]} : vector<16x16xf32> to vector<1x16xf32>
    %818 = vector.extract_strided_slice %806 {offsets = [0, 0], sizes = [15, 16], strides = [1, 1]} : vector<16x16xf32> to vector<15x16xf32>
    %819 = tpu.concatenate %817, %818 in 0 : vector<1x16xf32>, vector<15x16xf32> -> vector<16x16xf32>
    %820 = arith.select %5, %816, %819 : vector<16x16xi1>, vector<16x16xf32>
    %821 = vector.extract_strided_slice %820 {offsets = [0, 1], sizes = [16, 15], strides = [1, 1]} : vector<16x16xf32> to vector<16x15xf32>
    %822 = vector.extract_strided_slice %820 {offsets = [0, 0], sizes = [16, 1], strides = [1, 1]} : vector<16x16xf32> to vector<16x1xf32>
    %823 = tpu.concatenate %821, %822 in 1 : vector<16x15xf32>, vector<16x1xf32> -> vector<16x16xf32>
    %824 = vector.extract_strided_slice %820 {offsets = [0, 15], sizes = [16, 1], strides = [1, 1]} : vector<16x16xf32> to vector<16x1xf32>
    %825 = vector.extract_strided_slice %820 {offsets = [0, 0], sizes = [16, 15], strides = [1, 1]} : vector<16x16xf32> to vector<16x15xf32>
    %826 = tpu.concatenate %824, %825 in 1 : vector<16x1xf32>, vector<16x15xf32> -> vector<16x16xf32>
    %827 = arith.select %9, %823, %826 : vector<16x16xi1>, vector<16x16xf32>
    %828 = arith.addf %806, %813 : vector<16x16xf32>
    %829 = arith.addf %828, %820 : vector<16x16xf32>
    %830 = arith.addf %829, %827 : vector<16x16xf32>
    %cst_60 = arith.constant 2.500000e-01 : f32
    %831 = vector.broadcast %cst_60 : f32 to vector<16x16xf32>
    %832 = arith.mulf %830, %831 : vector<16x16xf32>
    %833 = arith.maximumf %806, %813 : vector<16x16xf32>
    %834 = arith.maximumf %820, %827 : vector<16x16xf32>
    %835 = arith.maximumf %833, %834 : vector<16x16xf32>
    %836 = arith.subf %832, %835 : vector<16x16xf32>
    %837 = arith.mulf %836, %836 : vector<16x16xf32>
    %838 = arith.addf %804, %837 : vector<16x16xf32>
    %cst_61 = arith.constant 0.000000e+00 : f32
    %839 = vector.broadcast %cst_61 : f32 to vector<16x16xf32>
    %840 = arith.maximumf %765, %839 : vector<16x16xf32>
    %841 = vector.extract_strided_slice %840 {offsets = [0, 1], sizes = [16, 15], strides = [1, 1]} : vector<16x16xf32> to vector<16x15xf32>
    %842 = vector.extract_strided_slice %840 {offsets = [0, 0], sizes = [16, 1], strides = [1, 1]} : vector<16x16xf32> to vector<16x1xf32>
    %843 = tpu.concatenate %841, %842 in 1 : vector<16x15xf32>, vector<16x1xf32> -> vector<16x16xf32>
    %844 = vector.extract_strided_slice %840 {offsets = [0, 15], sizes = [16, 1], strides = [1, 1]} : vector<16x16xf32> to vector<16x1xf32>
    %845 = vector.extract_strided_slice %840 {offsets = [0, 0], sizes = [16, 15], strides = [1, 1]} : vector<16x16xf32> to vector<16x15xf32>
    %846 = tpu.concatenate %844, %845 in 1 : vector<16x1xf32>, vector<16x15xf32> -> vector<16x16xf32>
    %847 = arith.select %9, %843, %846 : vector<16x16xi1>, vector<16x16xf32>
    %848 = vector.extract_strided_slice %840 {offsets = [1, 0], sizes = [15, 16], strides = [1, 1]} : vector<16x16xf32> to vector<15x16xf32>
    %849 = vector.extract_strided_slice %840 {offsets = [0, 0], sizes = [1, 16], strides = [1, 1]} : vector<16x16xf32> to vector<1x16xf32>
    %850 = tpu.concatenate %848, %849 in 0 : vector<15x16xf32>, vector<1x16xf32> -> vector<16x16xf32>
    %851 = vector.extract_strided_slice %840 {offsets = [15, 0], sizes = [1, 16], strides = [1, 1]} : vector<16x16xf32> to vector<1x16xf32>
    %852 = vector.extract_strided_slice %840 {offsets = [0, 0], sizes = [15, 16], strides = [1, 1]} : vector<16x16xf32> to vector<15x16xf32>
    %853 = tpu.concatenate %851, %852 in 0 : vector<1x16xf32>, vector<15x16xf32> -> vector<16x16xf32>
    %854 = arith.select %5, %850, %853 : vector<16x16xi1>, vector<16x16xf32>
    %855 = vector.extract_strided_slice %854 {offsets = [0, 1], sizes = [16, 15], strides = [1, 1]} : vector<16x16xf32> to vector<16x15xf32>
    %856 = vector.extract_strided_slice %854 {offsets = [0, 0], sizes = [16, 1], strides = [1, 1]} : vector<16x16xf32> to vector<16x1xf32>
    %857 = tpu.concatenate %855, %856 in 1 : vector<16x15xf32>, vector<16x1xf32> -> vector<16x16xf32>
    %858 = vector.extract_strided_slice %854 {offsets = [0, 15], sizes = [16, 1], strides = [1, 1]} : vector<16x16xf32> to vector<16x1xf32>
    %859 = vector.extract_strided_slice %854 {offsets = [0, 0], sizes = [16, 15], strides = [1, 1]} : vector<16x16xf32> to vector<16x15xf32>
    %860 = tpu.concatenate %858, %859 in 1 : vector<16x1xf32>, vector<16x15xf32> -> vector<16x16xf32>
    %861 = arith.select %9, %857, %860 : vector<16x16xi1>, vector<16x16xf32>
    %862 = arith.addf %840, %847 : vector<16x16xf32>
    %863 = arith.addf %862, %854 : vector<16x16xf32>
    %864 = arith.addf %863, %861 : vector<16x16xf32>
    %cst_62 = arith.constant 2.500000e-01 : f32
    %865 = vector.broadcast %cst_62 : f32 to vector<16x16xf32>
    %866 = arith.mulf %864, %865 : vector<16x16xf32>
    %867 = arith.maximumf %840, %847 : vector<16x16xf32>
    %868 = arith.maximumf %854, %861 : vector<16x16xf32>
    %869 = arith.maximumf %867, %868 : vector<16x16xf32>
    %870 = arith.subf %866, %869 : vector<16x16xf32>
    %871 = arith.mulf %870, %870 : vector<16x16xf32>
    %872 = arith.addf %838, %871 : vector<16x16xf32>
    %cst_63 = arith.constant 0.000000e+00 : f32
    %873 = vector.broadcast %cst_63 : f32 to vector<16x16xf32>
    %874 = arith.maximumf %769, %873 : vector<16x16xf32>
    %875 = vector.extract_strided_slice %874 {offsets = [0, 1], sizes = [16, 15], strides = [1, 1]} : vector<16x16xf32> to vector<16x15xf32>
    %876 = vector.extract_strided_slice %874 {offsets = [0, 0], sizes = [16, 1], strides = [1, 1]} : vector<16x16xf32> to vector<16x1xf32>
    %877 = tpu.concatenate %875, %876 in 1 : vector<16x15xf32>, vector<16x1xf32> -> vector<16x16xf32>
    %878 = vector.extract_strided_slice %874 {offsets = [0, 15], sizes = [16, 1], strides = [1, 1]} : vector<16x16xf32> to vector<16x1xf32>
    %879 = vector.extract_strided_slice %874 {offsets = [0, 0], sizes = [16, 15], strides = [1, 1]} : vector<16x16xf32> to vector<16x15xf32>
    %880 = tpu.concatenate %878, %879 in 1 : vector<16x1xf32>, vector<16x15xf32> -> vector<16x16xf32>
    %881 = arith.select %9, %877, %880 : vector<16x16xi1>, vector<16x16xf32>
    %882 = vector.extract_strided_slice %874 {offsets = [1, 0], sizes = [15, 16], strides = [1, 1]} : vector<16x16xf32> to vector<15x16xf32>
    %883 = vector.extract_strided_slice %874 {offsets = [0, 0], sizes = [1, 16], strides = [1, 1]} : vector<16x16xf32> to vector<1x16xf32>
    %884 = tpu.concatenate %882, %883 in 0 : vector<15x16xf32>, vector<1x16xf32> -> vector<16x16xf32>
    %885 = vector.extract_strided_slice %874 {offsets = [15, 0], sizes = [1, 16], strides = [1, 1]} : vector<16x16xf32> to vector<1x16xf32>
    %886 = vector.extract_strided_slice %874 {offsets = [0, 0], sizes = [15, 16], strides = [1, 1]} : vector<16x16xf32> to vector<15x16xf32>
    %887 = tpu.concatenate %885, %886 in 0 : vector<1x16xf32>, vector<15x16xf32> -> vector<16x16xf32>
    %888 = arith.select %5, %884, %887 : vector<16x16xi1>, vector<16x16xf32>
    %889 = vector.extract_strided_slice %888 {offsets = [0, 1], sizes = [16, 15], strides = [1, 1]} : vector<16x16xf32> to vector<16x15xf32>
    %890 = vector.extract_strided_slice %888 {offsets = [0, 0], sizes = [16, 1], strides = [1, 1]} : vector<16x16xf32> to vector<16x1xf32>
    %891 = tpu.concatenate %889, %890 in 1 : vector<16x15xf32>, vector<16x1xf32> -> vector<16x16xf32>
    %892 = vector.extract_strided_slice %888 {offsets = [0, 15], sizes = [16, 1], strides = [1, 1]} : vector<16x16xf32> to vector<16x1xf32>
    %893 = vector.extract_strided_slice %888 {offsets = [0, 0], sizes = [16, 15], strides = [1, 1]} : vector<16x16xf32> to vector<16x15xf32>
    %894 = tpu.concatenate %892, %893 in 1 : vector<16x1xf32>, vector<16x15xf32> -> vector<16x16xf32>
    %895 = arith.select %9, %891, %894 : vector<16x16xi1>, vector<16x16xf32>
    %896 = arith.addf %874, %881 : vector<16x16xf32>
    %897 = arith.addf %896, %888 : vector<16x16xf32>
    %898 = arith.addf %897, %895 : vector<16x16xf32>
    %cst_64 = arith.constant 2.500000e-01 : f32
    %899 = vector.broadcast %cst_64 : f32 to vector<16x16xf32>
    %900 = arith.mulf %898, %899 : vector<16x16xf32>
    %901 = arith.maximumf %874, %881 : vector<16x16xf32>
    %902 = arith.maximumf %888, %895 : vector<16x16xf32>
    %903 = arith.maximumf %901, %902 : vector<16x16xf32>
    %904 = arith.subf %900, %903 : vector<16x16xf32>
    %905 = arith.mulf %904, %904 : vector<16x16xf32>
    %906 = arith.addf %872, %905 : vector<16x16xf32>
    %907 = math.sqrt %906 : vector<16x16xf32>
    %908 = vector.extract_strided_slice %907 {offsets = [15, 0], sizes = [1, 16], strides = [1, 1]} : vector<16x16xf32> to vector<1x16xf32>
    %909 = vector.extract_strided_slice %907 {offsets = [0, 0], sizes = [15, 16], strides = [1, 1]} : vector<16x16xf32> to vector<15x16xf32>
    %910 = tpu.concatenate %908, %909 in 0 : vector<1x16xf32>, vector<15x16xf32> -> vector<16x16xf32>
    %911 = vector.extract_strided_slice %907 {offsets = [1, 0], sizes = [15, 16], strides = [1, 1]} : vector<16x16xf32> to vector<15x16xf32>
    %912 = vector.extract_strided_slice %907 {offsets = [0, 0], sizes = [1, 16], strides = [1, 1]} : vector<16x16xf32> to vector<1x16xf32>
    %913 = tpu.concatenate %911, %912 in 0 : vector<15x16xf32>, vector<1x16xf32> -> vector<16x16xf32>
    %914 = arith.select %5, %910, %913 : vector<16x16xi1>, vector<16x16xf32>
    %915 = arith.ori %11, %13 : vector<16x16xi1>
    %916 = arith.select %915, %907, %914 : vector<16x16xi1>, vector<16x16xf32>
    %cst_65 = arith.constant 7.500000e-01 : f32
    %917 = vector.broadcast %cst_65 : f32 to vector<16x16xf32>
    %918 = arith.mulf %917, %907 : vector<16x16xf32>
    %cst_66 = arith.constant 2.500000e-01 : f32
    %919 = vector.broadcast %cst_66 : f32 to vector<16x16xf32>
    %920 = arith.mulf %919, %916 : vector<16x16xf32>
    %921 = arith.addf %918, %920 : vector<16x16xf32>
    %922 = vector.extract_strided_slice %921 {offsets = [0, 15], sizes = [16, 1], strides = [1, 1]} : vector<16x16xf32> to vector<16x1xf32>
    %923 = vector.extract_strided_slice %921 {offsets = [0, 0], sizes = [16, 15], strides = [1, 1]} : vector<16x16xf32> to vector<16x15xf32>
    %924 = tpu.concatenate %922, %923 in 1 : vector<16x1xf32>, vector<16x15xf32> -> vector<16x16xf32>
    %925 = vector.extract_strided_slice %921 {offsets = [0, 1], sizes = [16, 15], strides = [1, 1]} : vector<16x16xf32> to vector<16x15xf32>
    %926 = vector.extract_strided_slice %921 {offsets = [0, 0], sizes = [16, 1], strides = [1, 1]} : vector<16x16xf32> to vector<16x1xf32>
    %927 = tpu.concatenate %925, %926 in 1 : vector<16x15xf32>, vector<16x1xf32> -> vector<16x16xf32>
    %928 = arith.select %9, %924, %927 : vector<16x16xi1>, vector<16x16xf32>
    %929 = arith.ori %15, %17 : vector<16x16xi1>
    %930 = arith.select %929, %921, %928 : vector<16x16xi1>, vector<16x16xf32>
    %cst_67 = arith.constant 7.500000e-01 : f32
    %931 = vector.broadcast %cst_67 : f32 to vector<16x16xf32>
    %932 = arith.mulf %931, %921 : vector<16x16xf32>
    %cst_68 = arith.constant 2.500000e-01 : f32
    %933 = vector.broadcast %cst_68 : f32 to vector<16x16xf32>
    %934 = arith.mulf %933, %930 : vector<16x16xf32>
    %935 = arith.addf %932, %934 : vector<16x16xf32>
    %936 = arith.negf %935 : vector<16x16xf32>
    %937 = math.exp %936 : vector<16x16xf32>
    %cst_69 = arith.constant 1.000000e+00 : f32
    %938 = vector.broadcast %cst_69 : f32 to vector<16x16xf32>
    %939 = arith.addf %938, %937 : vector<16x16xf32>
    %940 = arith.divf %938, %939 : vector<16x16xf32>
    %941 = arith.mulf %19, %940 : vector<16x16xf32>
    %c0_70 = arith.constant 0 : index
    %c0_71 = arith.constant 0 : index
    %c0_72 = arith.constant 0 : index
    %c0_73 = arith.constant 0 : index
    %942 = vector.load %arg4[%c0_70, %c0_71, %c0_72, %c0_73] : memref<1x4x16x16xf32, #tpu.memory_space<vmem>>, vector<1x1x16x16xf32>
    %943 = vector.shape_cast %942 : vector<1x1x16x16xf32> to vector<16x16xf32>
    %944 = vector.shape_cast %941 : vector<16x16xf32> to vector<1x1x16x16xf32>
    tpu.vector_store %arg4[%c0_70, %c0_71, %c0_72, %c0_73], %944 {strides = array<i32>} : memref<1x4x16x16xf32, #tpu.memory_space<vmem>>, vector<1x1x16x16xf32>,
    %945 = arith.mulf %21, %940 : vector<16x16xf32>
    %c0_74 = arith.constant 0 : index
    %c1_75 = arith.constant 1 : index
    %c0_76 = arith.constant 0 : index
    %c0_77 = arith.constant 0 : index
    %946 = vector.load %arg4[%c0_74, %c1_75, %c0_76, %c0_77] : memref<1x4x16x16xf32, #tpu.memory_space<vmem>>, vector<1x1x16x16xf32>
    %947 = vector.shape_cast %946 : vector<1x1x16x16xf32> to vector<16x16xf32>
    %948 = vector.shape_cast %945 : vector<16x16xf32> to vector<1x1x16x16xf32>
    tpu.vector_store %arg4[%c0_74, %c1_75, %c0_76, %c0_77], %948 {strides = array<i32>} : memref<1x4x16x16xf32, #tpu.memory_space<vmem>>, vector<1x1x16x16xf32>,
    %949 = arith.mulf %23, %940 : vector<16x16xf32>
    %c0_78 = arith.constant 0 : index
    %c2_79 = arith.constant 2 : index
    %c0_80 = arith.constant 0 : index
    %c0_81 = arith.constant 0 : index
    %950 = vector.load %arg4[%c0_78, %c2_79, %c0_80, %c0_81] : memref<1x4x16x16xf32, #tpu.memory_space<vmem>>, vector<1x1x16x16xf32>
    %951 = vector.shape_cast %950 : vector<1x1x16x16xf32> to vector<16x16xf32>
    %952 = vector.shape_cast %949 : vector<16x16xf32> to vector<1x1x16x16xf32>
    tpu.vector_store %arg4[%c0_78, %c2_79, %c0_80, %c0_81], %952 {strides = array<i32>} : memref<1x4x16x16xf32, #tpu.memory_space<vmem>>, vector<1x1x16x16xf32>,
    %953 = arith.mulf %25, %940 : vector<16x16xf32>
    %c0_82 = arith.constant 0 : index
    %c3_83 = arith.constant 3 : index
    %c0_84 = arith.constant 0 : index
    %c0_85 = arith.constant 0 : index
    %954 = vector.load %arg4[%c0_82, %c3_83, %c0_84, %c0_85] : memref<1x4x16x16xf32, #tpu.memory_space<vmem>>, vector<1x1x16x16xf32>
    %955 = vector.shape_cast %954 : vector<1x1x16x16xf32> to vector<16x16xf32>
    %956 = vector.shape_cast %953 : vector<16x16xf32> to vector<1x1x16x16xf32>
    tpu.vector_store %arg4[%c0_82, %c3_83, %c0_84, %c0_85], %956 {strides = array<i32>} : memref<1x4x16x16xf32, #tpu.memory_space<vmem>>, vector<1x1x16x16xf32>,
    return
  }
  func.func @transform_0(%arg0: i32) -> i32 {
    %c0_i32 = arith.constant 0 : i32
    %c0_i32_0 = arith.constant 0 : i32
    return %c0_i32 : i32
  }
  func.func @transform_1(%arg0: i32) -> i32 {
    %c0_i32 = arith.constant 0 : i32
    %c0_i32_0 = arith.constant 0 : i32
    return %c0_i32 : i32
  }
  func.func @transform_2(%arg0: i32) -> (i32, i32, i32, i32) {
    %c0_i32 = arith.constant 0 : i32
    %c0_i32_0 = arith.constant 0 : i32
    %c0_i32_1 = arith.constant 0 : i32
    %c0_i32_2 = arith.constant 0 : i32
    return %arg0, %c0_i32, %c0_i32_0, %c0_i32_1 : i32, i32, i32, i32
  }
  func.func @transform_3(%arg0: i32) -> (i32, i32, i32, i32) {
    %c0_i32 = arith.constant 0 : i32
    %c0_i32_0 = arith.constant 0 : i32
    %c0_i32_1 = arith.constant 0 : i32
    %c0_i32_2 = arith.constant 0 : i32
    return %arg0, %c0_i32, %c0_i32_0, %c0_i32_1 : i32, i32, i32, i32
  }
}

</mosaic_0001>

<llo_original>
// kernel: tpu_custom_call.1
$region0: #{tpu_custom_call.1}
  #allocation0 [shape = 'u32[]', space=smem, size = 0x4, offset = 0x4, fixed_abs, tag = 'smem constant byte address 0x4 - core index']
  #allocation1 [shape = 'u32[144,128]{1,0:T(1,128)}', space=vmem, size = 0x12000, scoped, tag = 'internal scratch']
  %s0 = inlined_call_operand.hbm [shape: f32[144], index: 0, kind: input, shape index: {}]
  %s1 = inlined_call_operand.vmem [shape: f32[4], index: 1, kind: input, shape index: {}]
  %s2 = inlined_call_operand.hbm [shape: f32[2,4,16,16], index: 2, kind: input, shape index: {}]
  %s3 = inlined_call_operand.hbm [shape: f32[2,4,16,16], index: 3, kind: output, shape index: {}]
  %s4 = sld [smem:[#allocation0]]
  $region57: #{tpu_custom_call.1} parent=0
    _
  %s6 = ssub.s32 1, %s4
  %s7 = scalar_select 0, %s6, %s4
  $region1: #{tpu_custom_call.1} parent=0
    #allocation2 [shape = 'u8[1024]{0}', space=smem, size = 0x400, scoped, tag = 'input window, operand 0, single buffered']
    #allocation3 [shape = 's32[2]{0}', space=sflag, size = 0x8, scoped, tag = 'scoped memory for tpu_custom_call.1']
    #allocation4 [shape = 's32[2]{0}', space=sflag, size = 0x8, scoped, tag = 'scoped memory for tpu_custom_call.1']
    #allocation5 [shape = 's32[2]{0}', space=sflag, size = 0x8, scoped, tag = 'scoped memory for tpu_custom_call.1']
    #allocation6 [shape = 's32[2]{0}', space=sflag, size = 0x8, scoped, tag = 'scoped memory for tpu_custom_call.1']
    #allocation7 [shape = 'u8[512]{0}', space=smem, size = 0x200, scoped, tag = 'input window, operand 1, single buffered']
    #allocation8 [shape = 'u8[65536]{0}', space=vmem, size = 0x10000, scoped, tag = 'input window, operand 2']
    #allocation9 [shape = 'u8[65536]{0}', space=vmem, size = 0x10000, scoped, tag = 'output window, operand 0']
    %8 = vsyncpa [#allocation5], 0
    %9 = vsyncpa [#allocation6], 0
    %10 = vsyncpa [#allocation3], 0
    %s11 = scalar_lea.sflag [#allocation3], 1
    %12 = vsyncpa %s11, 0
    %13 = vsyncpa [#allocation4], 0
    %s14 = scalar_lea.sflag [#allocation4], 1
    %15 = vsyncpa %s14, 0
    loop: start=0, step=1, limit=4
    $region2: #{tpu_custom_call.1} parent=1 // loop_pre_header
      _
    $region3: #{tpu_custom_call.1} parent=1 // loop_header
      %s17 = sphi 0, %s21
      %p18 = scmp.ge.s32.totalorder %s17, 4
      %s25 = sphi 0, %s25
      %s27 = sphi 0, %s25
      %s28 = sphi 0, %s27
      %s42 = sphi 0, %s28
      %s46 = sphi 0, %s46
      %s48 = sphi 0, %s46
      %s49 = sphi 0, %s48
      %s63 = sphi 0, %s49
      %s69 = sphi 0, %s71
      %s72 = sphi 0, %s69
      %s73 = sphi 0, %s72
      %s89 = sphi 0, %s73
      %s95 = sphi 0, %s97
      %s98 = sphi 0, %s95
      %s99 = sphi 0, %s98
      %s115 = sphi 0, %s99
    $region4: #{tpu_custom_call.1} parent=1 // loop_header_branch
      %20 = sbr.rel (%p18) target = $region8
    $region5: #{tpu_custom_call.1} parent=1 // loop_body
      %s22 = ssub.s32 %s17, 1
      %s23 = ssub.s32 %s17, 2
      %s24 = sadd.s32 %s17, 1
      %s26 = sadd.s32 %s25, 1
      %p29 = scmp.eq.s32.totalorder %s17, 1
      %p30 = scmp.ne.s32.totalorder %s25, %s27
      %p31 = scmp.eq.s32.totalorder %s17, 0
      %p32 = por %p30, %p31
      %p33 = scmp.ne.s32.totalorder %s25, %s27
      %p34 = scmp.eq.s32.totalorder %s22, 1
      %p35 = por %p33, %p34
      %p36 = scmp.ne.s32.totalorder %s27, %s28
      %p37 = scmp.eq.s32.totalorder %s22, 0
      %p38 = por %p36, %p37
      %p39 = scmp.ne.s32.totalorder %s27, %s28
      %p40 = scmp.eq.s32.totalorder %s23, 1
      %p41 = por %p39, %p40
      %p43 = scmp.ne.s32.totalorder %s28, %s42
      %p44 = scmp.eq.s32.totalorder %s23, 0
      %p45 = por %p43, %p44
      %s47 = sadd.s32 %s46, 1
      %p50 = scmp.eq.s32.totalorder %s17, 1
      %p51 = scmp.ne.s32.totalorder %s46, %s48
      %p52 = scmp.eq.s32.totalorder %s17, 0
      %p53 = por %p51, %p52
      %p54 = scmp.ne.s32.totalorder %s46, %s48
      %p55 = scmp.eq.s32.totalorder %s22, 1
      %p56 = por %p54, %p55
      %p57 = scmp.ne.s32.totalorder %s48, %s49
      %p58 = scmp.eq.s32.totalorder %s22, 0
      %p59 = por %p57, %p58
      %p60 = scmp.ne.s32.totalorder %s48, %s49
      %p61 = scmp.eq.s32.totalorder %s23, 1
      %p62 = por %p60, %p61
      %p64 = scmp.ne.s32.totalorder %s49, %s63
      %p65 = scmp.eq.s32.totalorder %s23, 0
      %p66 = por %p64, %p65
      %s67 = ssub.s32 %s17, %s24
      %p68 = scmp.eq.s32.totalorder %s67, 0
      %s70 = sadd.s32 %s69, 1
      %s71 = scalar_select %p68, %s69, %s70
      %p74 = pneg %p68
      %p75 = scmp.eq.s32.totalorder %s17, 1
      %p76 = por %p74, %p75
      %p77 = scmp.ne.s32.totalorder %s69, %s72
      %p78 = scmp.eq.s32.totalorder %s17, 0
      %p79 = por %p77, %p78
      %p80 = scmp.ne.s32.totalorder %s69, %s72
      %p81 = scmp.eq.s32.totalorder %s22, 1
      %p82 = por %p80, %p81
      %p83 = scmp.ne.s32.totalorder %s72, %s73
      %p84 = scmp.eq.s32.totalorder %s22, 0
      %p85 = por %p83, %p84
      %p86 = scmp.ne.s32.totalorder %s72, %s73
      %p87 = scmp.eq.s32.totalorder %s23, 1
      %p88 = por %p86, %p87
      %p90 = scmp.ne.s32.totalorder %s73, %s89
      %p91 = scmp.eq.s32.totalorder %s23, 0
      %p92 = por %p90, %p91
      %s93 = ssub.s32 %s17, %s24
      %p94 = scmp.eq.s32.totalorder %s93, 0
      %s96 = sadd.s32 %s95, 1
      %s97 = scalar_select %p94, %s95, %s96
      %p100 = pneg %p94
      %p101 = scmp.eq.s32.totalorder %s17, 1
      %p102 = por %p100, %p101
      %p103 = scmp.ne.s32.totalorder %s95, %s98
      %p104 = scmp.eq.s32.totalorder %s17, 0
      %p105 = por %p103, %p104
      %p106 = scmp.ne.s32.totalorder %s95, %s98
      %p107 = scmp.eq.s32.totalorder %s22, 1
      %p108 = por %p106, %p107
      %p109 = scmp.ne.s32.totalorder %s98, %s99
      %p110 = scmp.eq.s32.totalorder %s22, 0
      %p111 = por %p109, %p110
      %p112 = scmp.ne.s32.totalorder %s98, %s99
      %p113 = scmp.eq.s32.totalorder %s23, 1
      %p114 = por %p112, %p113
      %p116 = scmp.ne.s32.totalorder %s99, %s115
      %p117 = scmp.eq.s32.totalorder %s23, 0
      %p118 = por %p116, %p117
      %p119 = scmp.le.s32.totalorder 1, %s17
      %p120 = scmp.lt.s32.totalorder %s17, 3
      %p121 = pnand %p119, %p120
      %p122 = pneg %p121
      // Predicated region
      $region9: #{tpu_custom_call.1} parent=5 // pred_check
        _
      $region10: #{tpu_custom_call.1} parent=5 // pred_check_branch
        %124 = sbr.rel (%p121) target = $region12
      $region11: #{tpu_custom_call.1} parent=5 // pred_region
        %s125 = ssub.s32 %s17, 1
        // Predicated region
        $region13: #{tpu_custom_call.1} parent=11 // pred_check
          %p126 = pneg %p38
        $region14: #{tpu_custom_call.1} parent=11 // pred_check_branch
          %128 = sbr.rel (%p126) target = $region16
        $region15: #{tpu_custom_call.1} parent=11 // pred_region
          %s130 = ssub.s32 32, 32
          %131 = vsyncadd [#allocation5], %s130
          %134 = dma.hbm_to_smem %s0, 32, [#allocation2], [#allocation5]
        $region16: #{tpu_custom_call.1} parent=11 // pred_fallthru
          _
        // Predicated region
        $region17: #{tpu_custom_call.1} parent=11 // pred_check
          %p135 = pneg %p59
        $region18: #{tpu_custom_call.1} parent=11 // pred_check_branch
          %137 = sbr.rel (%p135) target = $region20
        $region19: #{tpu_custom_call.1} parent=11 // pred_region
          %s139 = ssub.s32 16, 16
          %140 = vsyncadd [#allocation6], %s139
          %s142 = sshll.u32 %s1, 4
          %s143 = int_to_ptr.vmem [resolvable:$true] %s142
          %145 = dma.vmem_to_smem %s143, 16, [#allocation7], [#allocation6]
        $region20: #{tpu_custom_call.1} parent=11 // pred_fallthru
          _
      $region12: #{tpu_custom_call.1} parent=5 // pred_fallthru
        _
      %p146 = scmp.lt.s32.totalorder %s17, 2
      // Predicated region
      $region21: #{tpu_custom_call.1} parent=5 // pred_check
        %p147 = pneg %p146
      $region22: #{tpu_custom_call.1} parent=5 // pred_check_branch
        %149 = sbr.rel (%p147) target = $region24
      $region23: #{tpu_custom_call.1} parent=5 // pred_region
        // Predicated region
        $region25: #{tpu_custom_call.1} parent=23 // pred_check
          %p150 = pneg %p79
        $region26: #{tpu_custom_call.1} parent=23 // pred_check_branch
          %152 = sbr.rel (%p150) target = $region28
        $region27: #{tpu_custom_call.1} parent=23 // pred_region
          %s153 = sand.u32 %s69, 1
          %s154 = scalar_lea.sflag [#allocation3], %s153
          %s155 = sand.u32 %s69, 1
          %s156 = smul.addr %s155, 64
          %s157 = scalar_lea.vmem [#allocation8], %s156
          %s159 = ssub.s32 1024, 1024
          %160 = vsyncadd %s154, %s159
          %s161 = smul.addr %s17, 8
          %s162 = smul.addr %s161, 128
          %s163 = scalar_lea.hbm %s2, %s162
          %s164 = sshll.u32 %s157, 4
          %s165 = int_to_ptr.vmem [resolvable:$true] %s164
          %170 = dma.hbm_to_vmem [thread:$0]  %s163, 1024, %s165, %s154, 128, 128, 8
        $region28: #{tpu_custom_call.1} parent=23 // pred_fallthru
          _
      $region24: #{tpu_custom_call.1} parent=5 // pred_fallthru
        _
      %p171 = scmp.le.s32.totalorder 1, %s17
      %p172 = scmp.lt.s32.totalorder %s17, 3
      %p173 = pnand %p171, %p172
      %p174 = pneg %p173
      // Predicated region
      $region29: #{tpu_custom_call.1} parent=5 // pred_check
        _
      $region30: #{tpu_custom_call.1} parent=5 // pred_check_branch
        %176 = sbr.rel (%p173) target = $region32
      $region31: #{tpu_custom_call.1} parent=5 // pred_region
        %s177 = ssub.s32 %s17, 1
        // Predicated region
        $region33: #{tpu_custom_call.1} parent=31 // pred_check
          %p178 = pneg %p38
        $region34: #{tpu_custom_call.1} parent=31 // pred_check_branch
          %180 = sbr.rel (%p178) target = $region36
        $region35: #{tpu_custom_call.1} parent=31 // pred_region
          %181 = dma.done [#allocation5], 32
        $region36: #{tpu_custom_call.1} parent=31 // pred_fallthru
          _
        // Predicated region
        $region37: #{tpu_custom_call.1} parent=31 // pred_check
          %p182 = pneg %p59
        $region38: #{tpu_custom_call.1} parent=31 // pred_check_branch
          %184 = sbr.rel (%p182) target = $region40
        $region39: #{tpu_custom_call.1} parent=31 // pred_region
          %185 = dma.done [#allocation6], 16
        $region40: #{tpu_custom_call.1} parent=31 // pred_fallthru
          _
        %s186 = sand.u32 %s72, 1
        %s187 = scalar_lea.sflag [#allocation3], %s186
        %s188 = sand.u32 %s72, 1
        %s189 = smul.addr %s188, 64
        %s190 = scalar_lea.vmem [#allocation8], %s189
        // Predicated region
        $region41: #{tpu_custom_call.1} parent=31 // pred_check
          %p191 = pneg %p85
        $region42: #{tpu_custom_call.1} parent=31 // pred_check_branch
          %193 = sbr.rel (%p191) target = $region44
        $region43: #{tpu_custom_call.1} parent=31 // pred_region
          %194 = dma.done %s187, 1024
        $region44: #{tpu_custom_call.1} parent=31 // pred_fallthru
          _
        %195 = sfence
        %p196 = pneg %p38
        %p197 = pneg %p35
        %p198 = pneg %p59
        %p199 = pneg %p56
        %s200 = sand.u32 %s72, 1
        %s201 = scalar_lea.sflag [#allocation3], %s200
        %s202 = sand.u32 %s72, 1
        %s203 = smul.addr %s202, 64
        %s204 = scalar_lea.vmem [#allocation8], %s203
        %p205 = pneg %p85
        %p206 = pneg %p82
        %p207 = pneg %p111
        %p208 = pneg %p108
        %s209 = sand.u32 %s98, 1
        %s210 = scalar_lea.sflag [#allocation4], %s209
        %s211 = sand.u32 %s98, 1
        %s212 = smul.addr %s211, 64
        %s213 = scalar_lea.vmem [#allocation9], %s212
        %v214 = vlaneseq
        %v215 = vshrl.u32 %v214, 7
        %v216 = vadd.s32 %v215, 8
        %v217 = vlaneseq
        %v218 = vand.u32 %v217, 127
        %v219 = vand.u32 %v215, 1
        %v220 = vand.u32 %v216, 1
        %vm221 = vcmp.eq.s32.totalorder %v219, 0
        %vm222 = vcmp.eq.s32.totalorder %v220, 0
        %v223 = vand.u32 %v218, 1
        %vm224 = vcmp.eq.s32.totalorder %v223, 0
        %vm225 = vcmp.eq.s32.totalorder %v215, 0
        %vm226 = vcmp.eq.s32.totalorder %v216, 0
        %vm227 = vcmp.eq.s32.totalorder %v215, 15
        %vm228 = vcmp.eq.s32.totalorder %v216, 15
        %vm229 = vcmp.eq.s32.totalorder %v218, 0
        %vm230 = vcmp.eq.s32.totalorder %v218, 15
        %v231 = vld [vmem:[%s190] sm:$0xff]
        %v232 = vld [vmem:[%s190 + $0x8] sm:$0xff]
        %s233 = scalar_lea.vmem %s190, 16 [#allocation8]
        %v234 = vld [vmem:[%s233] sm:$0xff]
        %v235 = vld [vmem:[%s233 + $0x8] sm:$0xff]
        %s236 = scalar_lea.vmem %s190, 32 [#allocation8]
        %v237 = vld [vmem:[%s236] sm:$0xff]
        %v238 = vld [vmem:[%s236 + $0x8] sm:$0xff]
        %s239 = scalar_lea.vmem %s190, 48 [#allocation8]
        %v240 = vld [vmem:[%s239] sm:$0xff]
        %v241 = vld [vmem:[%s239 + $0x8] sm:$0xff]
        %s242 = sld [smem:[#allocation7]]
        %v243 = vstv %s242
        %s244 = sld [smem:[#allocation7 + $0x1]]
        %v245 = vstv %s244
        %s246 = sld [smem:[#allocation7 + $0x2]]
        %v247 = vstv %s246
        %s248 = sld [smem:[#allocation7 + $0x3]]
        %v249 = vstv %s248
        %v251 = vrot.slane %v232, 7
        %vm254 = vcmask 1040384
        %v255 = vrot.slane %v231, 7
        %v256 = vsel %vm254, %v255, %v251
        %v259 = vsel %vm254, %v251, %v255
        %v260 = vsel %vm225, 0.0, %v259
        %v261 = vsel %vm226, 0.0, %v256
        %vm262 = vcmask 1046528
        %v263 = vrot.slane %v231, 1
        %v264 = vrot.slane %v232, 1
        %v265 = vsel %vm262, %v263, %v264
        %v269 = vsel %vm262, %v264, %v263
        %v270 = vsel %vm227, 0.0, %v265
        %v271 = vsel %vm228, 0.0, %v269
        %274 = vrot.lane.b32.xlu0 %v260, 113
        %v275 = vpop.permute.xlu0 %274
        %276 = vrot.lane.b32.xlu0 %v261, 113
        %v277 = vpop.permute.xlu0 %276
        %280 = vrot.lane.b32.xlu0 %v260, 1
        %v281 = vpop.permute.xlu0 %280
        %282 = vrot.lane.b32.xlu0 %v261, 1
        %v283 = vpop.permute.xlu0 %282
        %vm286 = vcmask 7168
        %v287 = vsel %vm286, %v275, %v281
        %v288 = vsel %vm286, %v277, %v283
        %v289 = vsel %vm229, 0.0, %v287
        %v290 = vsel %vm229, 0.0, %v288
        %291 = vrot.lane.b32.xlu0 %v260, 127
        %v292 = vpop.permute.xlu0 %291
        %293 = vrot.lane.b32.xlu0 %v261, 127
        %v294 = vpop.permute.xlu0 %293
        %297 = vrot.lane.b32.xlu0 %v260, 15
        %v298 = vpop.permute.xlu0 %297
        %299 = vrot.lane.b32.xlu0 %v261, 15
        %v300 = vpop.permute.xlu0 %299
        %vm303 = vcmask 121856
        %v304 = vsel %vm303, %v292, %v298
        %v305 = vsel %vm303, %v294, %v300
        %v306 = vsel %vm230, 0.0, %v304
        %v307 = vsel %vm230, 0.0, %v305
        %s308 = sld [smem:[#allocation2]]
        %v309 = vstv %s308
        %v310 = vmul.f32 %v309, %v289
        %v311 = vmul.f32 %v309, %v290
        %v312 = vadd.f32 %v243, %v310
        %v313 = vadd.f32 %v243, %v311
        %s314 = sld [smem:[#allocation2 + $0x24]]
        %v315 = vstv %s314
        %v316 = vmul.f32 %v315, %v289
        %v317 = vmul.f32 %v315, %v290
        %v318 = vadd.f32 %v245, %v316
        %v319 = vadd.f32 %v245, %v317
        %s320 = sld [smem:[#allocation2 + $0x48]]
        %v321 = vstv %s320
        %v322 = vmul.f32 %v321, %v289
        %v323 = vmul.f32 %v321, %v290
        %v324 = vadd.f32 %v247, %v322
        %v325 = vadd.f32 %v247, %v323
        %s326 = sld [smem:[#allocation2 + $0x6c]]
        %v327 = vstv %s326
        %v328 = vmul.f32 %v327, %v289
        %v329 = vmul.f32 %v327, %v290
        %v330 = vadd.f32 %v249, %v328
        %v331 = vadd.f32 %v249, %v329
        %s332 = sld [smem:[#allocation2 + $0x1]]
        %v333 = vstv %s332
        %v334 = vmul.f32 %v333, %v260
        %v335 = vmul.f32 %v333, %v261
        %v336 = vadd.f32 %v312, %v334
        %v337 = vadd.f32 %v313, %v335
        %s338 = sld [smem:[#allocation2 + $0x25]]
        %v339 = vstv %s338
        %v340 = vmul.f32 %v339, %v260
        %v341 = vmul.f32 %v339, %v261
        %v342 = vadd.f32 %v318, %v340
        %v343 = vadd.f32 %v319, %v341
        %s344 = sld [smem:[#allocation2 + $0x49]]
        %v345 = vstv %s344
        %v346 = vmul.f32 %v345, %v260
        %v347 = vmul.f32 %v345, %v261
        %v348 = vadd.f32 %v324, %v346
        %v349 = vadd.f32 %v325, %v347
        %s350 = sld [smem:[#allocation2 + $0x6d]]
        %v351 = vstv %s350
        %v352 = vmul.f32 %v351, %v260
        %v353 = vmul.f32 %v351, %v261
        %v354 = vadd.f32 %v330, %v352
        %v355 = vadd.f32 %v331, %v353
        %s356 = sld [smem:[#allocation2 + $0x2]]
        %v357 = vstv %s356
        %v358 = vmul.f32 %v357, %v306
        %v359 = vmul.f32 %v357, %v307
        %v360 = vadd.f32 %v336, %v358
        %v361 = vadd.f32 %v337, %v359
        %s362 = sld [smem:[#allocation2 + $0x26]]
        %v363 = vstv %s362
        %v364 = vmul.f32 %v363, %v306
        %v365 = vmul.f32 %v363, %v307
        %v366 = vadd.f32 %v342, %v364
        %v367 = vadd.f32 %v343, %v365
        %s368 = sld [smem:[#allocation2 + $0x4a]]
        %v369 = vstv %s368
        %v370 = vmul.f32 %v369, %v306
        %v371 = vmul.f32 %v369, %v307
        %v372 = vadd.f32 %v348, %v370
        %v373 = vadd.f32 %v349, %v371
        %s374 = sld [smem:[#allocation2 + $0x6e]]
        %v375 = vstv %s374
        %v376 = vmul.f32 %v375, %v306
        %v377 = vmul.f32 %v375, %v307
        %v378 = vadd.f32 %v354, %v376
        %v379 = vadd.f32 %v355, %v377
        %380 = vrot.lane.b32.xlu0 %v231, 113
        %v381 = vpop.permute.xlu0 %380
        %382 = vrot.lane.b32.xlu0 %v232, 113
        %v383 = vpop.permute.xlu0 %382
        %386 = vrot.lane.b32.xlu0 %v231, 1
        %v387 = vpop.permute.xlu0 %386
        %388 = vrot.lane.b32.xlu0 %v232, 1
        %v389 = vpop.permute.xlu0 %388
        %v392 = vsel %vm286, %v381, %v387
        %v393 = vsel %vm286, %v383, %v389
        %v394 = vsel %vm229, 0.0, %v392
        %v395 = vsel %vm229, 0.0, %v393
        %396 = vrot.lane.b32.xlu0 %v231, 127
        %v397 = vpop.permute.xlu0 %396
        %398 = vrot.lane.b32.xlu0 %v232, 127
        %v399 = vpop.permute.xlu0 %398
        %402 = vrot.lane.b32.xlu0 %v231, 15
        %v403 = vpop.permute.xlu0 %402
        %404 = vrot.lane.b32.xlu0 %v232, 15
        %v405 = vpop.permute.xlu0 %404
        %v408 = vsel %vm303, %v397, %v403
        %v409 = vsel %vm303, %v399, %v405
        %v410 = vsel %vm230, 0.0, %v408
        %v411 = vsel %vm230, 0.0, %v409
        %s412 = sld [smem:[#allocation2 + $0x3]]
        %v413 = vstv %s412
        %v414 = vmul.f32 %v413, %v394
        %v415 = vmul.f32 %v413, %v395
        %v416 = vadd.f32 %v360, %v414
        %v417 = vadd.f32 %v361, %v415
        %s418 = sld [smem:[#allocation2 + $0x27]]
        %v419 = vstv %s418
        %v420 = vmul.f32 %v419, %v394
        %v421 = vmul.f32 %v419, %v395
        %v422 = vadd.f32 %v366, %v420
        %v423 = vadd.f32 %v367, %v421
        %s424 = sld [smem:[#allocation2 + $0x4b]]
        %v425 = vstv %s424
        %v426 = vmul.f32 %v425, %v394
        %v427 = vmul.f32 %v425, %v395
        %v428 = vadd.f32 %v372, %v426
        %v429 = vadd.f32 %v373, %v427
        %s430 = sld [smem:[#allocation2 + $0x6f]]
        %v431 = vstv %s430
        %v432 = vmul.f32 %v431, %v394
        %v433 = vmul.f32 %v431, %v395
        %v434 = vadd.f32 %v378, %v432
        %v435 = vadd.f32 %v379, %v433
        %s436 = sld [smem:[#allocation2 + $0x4]]
        %v437 = vstv %s436
        %v438 = vmul.f32 %v437, %v231
        %v439 = vmul.f32 %v437, %v232
        %v440 = vadd.f32 %v416, %v438
        %v441 = vadd.f32 %v417, %v439
        %s442 = sld [smem:[#allocation2 + $0x28]]
        %v443 = vstv %s442
        %v444 = vmul.f32 %v443, %v231
        %v445 = vmul.f32 %v443, %v232
        %v446 = vadd.f32 %v422, %v444
        %v447 = vadd.f32 %v423, %v445
        %s448 = sld [smem:[#allocation2 + $0x4c]]
        %v449 = vstv %s448
        %v450 = vmul.f32 %v449, %v231
        %v451 = vmul.f32 %v449, %v232
        %v452 = vadd.f32 %v428, %v450
        %v453 = vadd.f32 %v429, %v451
        %s454 = sld [smem:[#allocation2 + $0x70]]
        %v455 = vstv %s454
        %v456 = vmul.f32 %v455, %v231
        %v457 = vmul.f32 %v455, %v232
        %v458 = vadd.f32 %v434, %v456
        %v459 = vadd.f32 %v435, %v457
        %s460 = sld [smem:[#allocation2 + $0x5]]
        %v461 = vstv %s460
        %v462 = vmul.f32 %v461, %v410
        %v463 = vmul.f32 %v461, %v411
        %v464 = vadd.f32 %v440, %v462
        %v465 = vadd.f32 %v441, %v463
        %s466 = sld [smem:[#allocation2 + $0x29]]
        %v467 = vstv %s466
        %v468 = vmul.f32 %v467, %v410
        %v469 = vmul.f32 %v467, %v411
        %v470 = vadd.f32 %v446, %v468
        %v471 = vadd.f32 %v447, %v469
        %s472 = sld [smem:[#allocation2 + $0x4d]]
        %v473 = vstv %s472
        %v474 = vmul.f32 %v473, %v410
        %v475 = vmul.f32 %v473, %v411
        %v476 = vadd.f32 %v452, %v474
        %v477 = vadd.f32 %v453, %v475
        %s478 = sld [smem:[#allocation2 + $0x71]]
        %v479 = vstv %s478
        %v480 = vmul.f32 %v479, %v410
        %v481 = vmul.f32 %v479, %v411
        %v482 = vadd.f32 %v458, %v480
        %v483 = vadd.f32 %v459, %v481
        %486 = vrot.lane.b32.xlu0 %v270, 113
        %v487 = vpop.permute.xlu0 %486
        %488 = vrot.lane.b32.xlu0 %v271, 113
        %v489 = vpop.permute.xlu0 %488
        %492 = vrot.lane.b32.xlu0 %v270, 1
        %v493 = vpop.permute.xlu0 %492
        %494 = vrot.lane.b32.xlu0 %v271, 1
        %v495 = vpop.permute.xlu0 %494
        %v498 = vsel %vm286, %v487, %v493
        %v499 = vsel %vm286, %v489, %v495
        %v500 = vsel %vm229, 0.0, %v498
        %v501 = vsel %vm229, 0.0, %v499
        %502 = vrot.lane.b32.xlu0 %v270, 127
        %v503 = vpop.permute.xlu0 %502
        %504 = vrot.lane.b32.xlu0 %v271, 127
        %v505 = vpop.permute.xlu0 %504
        %508 = vrot.lane.b32.xlu0 %v270, 15
        %v509 = vpop.permute.xlu0 %508
        %510 = vrot.lane.b32.xlu0 %v271, 15
        %v511 = vpop.permute.xlu0 %510
        %v514 = vsel %vm303, %v503, %v509
        %v515 = vsel %vm303, %v505, %v511
        %v516 = vsel %vm230, 0.0, %v514
        %v517 = vsel %vm230, 0.0, %v515
        %s518 = sld [smem:[#allocation2 + $0x6]]
        %v519 = vstv %s518
        %v520 = vmul.f32 %v519, %v500
        %v521 = vmul.f32 %v519, %v501
        %v522 = vadd.f32 %v464, %v520
        %v523 = vadd.f32 %v465, %v521
        %s524 = sld [smem:[#allocation2 + $0x2a]]
        %v525 = vstv %s524
        %v526 = vmul.f32 %v525, %v500
        %v527 = vmul.f32 %v525, %v501
        %v528 = vadd.f32 %v470, %v526
        %v529 = vadd.f32 %v471, %v527
        %s530 = sld [smem:[#allocation2 + $0x4e]]
        %v531 = vstv %s530
        %v532 = vmul.f32 %v531, %v500
        %v533 = vmul.f32 %v531, %v501
        %v534 = vadd.f32 %v476, %v532
        %v535 = vadd.f32 %v477, %v533
        %s536 = sld [smem:[#allocation2 + $0x72]]
        %v537 = vstv %s536
        %v538 = vmul.f32 %v537, %v500
        %v539 = vmul.f32 %v537, %v501
        %v540 = vadd.f32 %v482, %v538
        %v541 = vadd.f32 %v483, %v539
        %s542 = sld [smem:[#allocation2 + $0x7]]
        %v543 = vstv %s542
        %v544 = vmul.f32 %v543, %v270
        %v545 = vmul.f32 %v543, %v271
        %v546 = vadd.f32 %v522, %v544
        %v547 = vadd.f32 %v523, %v545
        %s548 = sld [smem:[#allocation2 + $0x2b]]
        %v549 = vstv %s548
        %v550 = vmul.f32 %v549, %v270
        %v551 = vmul.f32 %v549, %v271
        %v552 = vadd.f32 %v528, %v550
        %v553 = vadd.f32 %v529, %v551
        %s554 = sld [smem:[#allocation2 + $0x4f]]
        %v555 = vstv %s554
        %v556 = vmul.f32 %v555, %v270
        %v557 = vmul.f32 %v555, %v271
        %v558 = vadd.f32 %v534, %v556
        %v559 = vadd.f32 %v535, %v557
        %s560 = sld [smem:[#allocation2 + $0x73]]
        %v561 = vstv %s560
        %v562 = vmul.f32 %v561, %v270
        %v563 = vmul.f32 %v561, %v271
        %v564 = vadd.f32 %v540, %v562
        %v565 = vadd.f32 %v541, %v563
        %s566 = sld [smem:[#allocation2 + $0x8]]
        %v567 = vstv %s566
        %v568 = vmul.f32 %v567, %v516
        %v569 = vmul.f32 %v567, %v517
        %v570 = vadd.f32 %v546, %v568
        %v571 = vadd.f32 %v547, %v569
        %s572 = sld [smem:[#allocation2 + $0x2c]]
        %v573 = vstv %s572
        %v574 = vmul.f32 %v573, %v516
        %v575 = vmul.f32 %v573, %v517
        %v576 = vadd.f32 %v552, %v574
        %v577 = vadd.f32 %v553, %v575
        %s578 = sld [smem:[#allocation2 + $0x50]]
        %v579 = vstv %s578
        %v580 = vmul.f32 %v579, %v516
        %v581 = vmul.f32 %v579, %v517
        %v582 = vadd.f32 %v558, %v580
        %v583 = vadd.f32 %v559, %v581
        %s584 = sld [smem:[#allocation2 + $0x74]]
        %v585 = vstv %s584
        %v586 = vmul.f32 %v585, %v516
        %v587 = vmul.f32 %v585, %v517
        %v588 = vadd.f32 %v564, %v586
        %v589 = vadd.f32 %v565, %v587
        %v591 = vrot.slane %v235, 7
        %v594 = vrot.slane %v234, 7
        %v595 = vsel %vm254, %v594, %v591
        %v598 = vsel %vm254, %v591, %v594
        %v599 = vsel %vm225, 0.0, %v598
        %v600 = vsel %vm226, 0.0, %v595
        %v601 = vrot.slane %v234, 1
        %v602 = vrot.slane %v235, 1
        %v603 = vsel %vm262, %v601, %v602
        %v607 = vsel %vm262, %v602, %v601
        %v608 = vsel %vm227, 0.0, %v603
        %v609 = vsel %vm228, 0.0, %v607
        %612 = vrot.lane.b32.xlu0 %v599, 113
        %v613 = vpop.permute.xlu0 %612
        %614 = vrot.lane.b32.xlu0 %v600, 113
        %v615 = vpop.permute.xlu0 %614
        %618 = vrot.lane.b32.xlu0 %v599, 1
        %v619 = vpop.permute.xlu0 %618
        %620 = vrot.lane.b32.xlu0 %v600, 1
        %v621 = vpop.permute.xlu0 %620
        %v624 = vsel %vm286, %v613, %v619
        %v625 = vsel %vm286, %v615, %v621
        %v626 = vsel %vm229, 0.0, %v624
        %v627 = vsel %vm229, 0.0, %v625
        %628 = vrot.lane.b32.xlu0 %v599, 127
        %v629 = vpop.permute.xlu0 %628
        %630 = vrot.lane.b32.xlu0 %v600, 127
        %v631 = vpop.permute.xlu0 %630
        %634 = vrot.lane.b32.xlu0 %v599, 15
        %v635 = vpop.permute.xlu0 %634
        %636 = vrot.lane.b32.xlu0 %v600, 15
        %v637 = vpop.permute.xlu0 %636
        %v640 = vsel %vm303, %v629, %v635
        %v641 = vsel %vm303, %v631, %v637
        %v642 = vsel %vm230, 0.0, %v640
        %v643 = vsel %vm230, 0.0, %v641
        %s644 = sld [smem:[#allocation2 + $0x9]]
        %v645 = vstv %s644
        %v646 = vmul.f32 %v645, %v626
        %v647 = vmul.f32 %v645, %v627
        %v648 = vadd.f32 %v570, %v646
        %v649 = vadd.f32 %v571, %v647
        %s650 = sld [smem:[#allocation2 + $0x2d]]
        %v651 = vstv %s650
        %v652 = vmul.f32 %v651, %v626
        %v653 = vmul.f32 %v651, %v627
        %v654 = vadd.f32 %v576, %v652
        %v655 = vadd.f32 %v577, %v653
        %s656 = sld [smem:[#allocation2 + $0x51]]
        %v657 = vstv %s656
        %v658 = vmul.f32 %v657, %v626
        %v659 = vmul.f32 %v657, %v627
        %v660 = vadd.f32 %v582, %v658
        %v661 = vadd.f32 %v583, %v659
        %s662 = sld [smem:[#allocation2 + $0x75]]
        %v663 = vstv %s662
        %v664 = vmul.f32 %v663, %v626
        %v665 = vmul.f32 %v663, %v627
        %v666 = vadd.f32 %v588, %v664
        %v667 = vadd.f32 %v589, %v665
        %s668 = sld [smem:[#allocation2 + $0xa]]
        %v669 = vstv %s668
        %v670 = vmul.f32 %v669, %v599
        %v671 = vmul.f32 %v669, %v600
        %v672 = vadd.f32 %v648, %v670
        %v673 = vadd.f32 %v649, %v671
        %s674 = sld [smem:[#allocation2 + $0x2e]]
        %v675 = vstv %s674
        %v676 = vmul.f32 %v675, %v599
        %v677 = vmul.f32 %v675, %v600
        %v678 = vadd.f32 %v654, %v676
        %v679 = vadd.f32 %v655, %v677
        %s680 = sld [smem:[#allocation2 + $0x52]]
        %v681 = vstv %s680
        %v682 = vmul.f32 %v681, %v599
        %v683 = vmul.f32 %v681, %v600
        %v684 = vadd.f32 %v660, %v682
        %v685 = vadd.f32 %v661, %v683
        %s686 = sld [smem:[#allocation2 + $0x76]]
        %v687 = vstv %s686
        %v688 = vmul.f32 %v687, %v599
        %v689 = vmul.f32 %v687, %v600
        %v690 = vadd.f32 %v666, %v688
        %v691 = vadd.f32 %v667, %v689
        %s692 = sld [smem:[#allocation2 + $0xb]]
        %v693 = vstv %s692
        %v694 = vmul.f32 %v693, %v642
        %v695 = vmul.f32 %v693, %v643
        %v696 = vadd.f32 %v672, %v694
        %v697 = vadd.f32 %v673, %v695
        %s698 = sld [smem:[#allocation2 + $0x2f]]
        %v699 = vstv %s698
        %v700 = vmul.f32 %v699, %v642
        %v701 = vmul.f32 %v699, %v643
        %v702 = vadd.f32 %v678, %v700
        %v703 = vadd.f32 %v679, %v701
        %s704 = sld [smem:[#allocation2 + $0x53]]
        %v705 = vstv %s704
        %v706 = vmul.f32 %v705, %v642
        %v707 = vmul.f32 %v705, %v643
        %v708 = vadd.f32 %v684, %v706
        %v709 = vadd.f32 %v685, %v707
        %s710 = sld [smem:[#allocation2 + $0x77]]
        %v711 = vstv %s710
        %v712 = vmul.f32 %v711, %v642
        %v713 = vmul.f32 %v711, %v643
        %v714 = vadd.f32 %v690, %v712
        %v715 = vadd.f32 %v691, %v713
        %716 = vrot.lane.b32.xlu0 %v234, 113
        %v717 = vpop.permute.xlu0 %716
        %718 = vrot.lane.b32.xlu0 %v235, 113
        %v719 = vpop.permute.xlu0 %718
        %722 = vrot.lane.b32.xlu0 %v234, 1
        %v723 = vpop.permute.xlu0 %722
        %724 = vrot.lane.b32.xlu0 %v235, 1
        %v725 = vpop.permute.xlu0 %724
        %v728 = vsel %vm286, %v717, %v723
        %v729 = vsel %vm286, %v719, %v725
        %v730 = vsel %vm229, 0.0, %v728
        %v731 = vsel %vm229, 0.0, %v729
        %732 = vrot.lane.b32.xlu0 %v234, 127
        %v733 = vpop.permute.xlu0 %732
        %734 = vrot.lane.b32.xlu0 %v235, 127
        %v735 = vpop.permute.xlu0 %734
        %738 = vrot.lane.b32.xlu0 %v234, 15
        %v739 = vpop.permute.xlu0 %738
        %740 = vrot.lane.b32.xlu0 %v235, 15
        %v741 = vpop.permute.xlu0 %740
        %v744 = vsel %vm303, %v733, %v739
        %v745 = vsel %vm303, %v735, %v741
        %v746 = vsel %vm230, 0.0, %v744
        %v747 = vsel %vm230, 0.0, %v745
        %s748 = sld [smem:[#allocation2 + $0xc]]
        %v749 = vstv %s748
        %v750 = vmul.f32 %v749, %v730
        %v751 = vmul.f32 %v749, %v731
        %v752 = vadd.f32 %v696, %v750
        %v753 = vadd.f32 %v697, %v751
        %s754 = sld [smem:[#allocation2 + $0x30]]
        %v755 = vstv %s754
        %v756 = vmul.f32 %v755, %v730
        %v757 = vmul.f32 %v755, %v731
        %v758 = vadd.f32 %v702, %v756
        %v759 = vadd.f32 %v703, %v757
        %s760 = sld [smem:[#allocation2 + $0x54]]
        %v761 = vstv %s760
        %v762 = vmul.f32 %v761, %v730
        %v763 = vmul.f32 %v761, %v731
        %v764 = vadd.f32 %v708, %v762
        %v765 = vadd.f32 %v709, %v763
        %s766 = sld [smem:[#allocation2 + $0x78]]
        %v767 = vstv %s766
        %v768 = vmul.f32 %v767, %v730
        %v769 = vmul.f32 %v767, %v731
        %v770 = vadd.f32 %v714, %v768
        %v771 = vadd.f32 %v715, %v769
        %s772 = sld [smem:[#allocation2 + $0xd]]
        %v773 = vstv %s772
        %v774 = vmul.f32 %v773, %v234
        %v775 = vmul.f32 %v773, %v235
        %v776 = vadd.f32 %v752, %v774
        %v777 = vadd.f32 %v753, %v775
        %s778 = sld [smem:[#allocation2 + $0x31]]
        %v779 = vstv %s778
        %v780 = vmul.f32 %v779, %v234
        %v781 = vmul.f32 %v779, %v235
        %v782 = vadd.f32 %v758, %v780
        %v783 = vadd.f32 %v759, %v781
        %s784 = sld [smem:[#allocation2 + $0x55]]
        %v785 = vstv %s784
        %v786 = vmul.f32 %v785, %v234
        %v787 = vmul.f32 %v785, %v235
        %v788 = vadd.f32 %v764, %v786
        %v789 = vadd.f32 %v765, %v787
        %s790 = sld [smem:[#allocation2 + $0x79]]
        %v791 = vstv %s790
        %v792 = vmul.f32 %v791, %v234
        %v793 = vmul.f32 %v791, %v235
        %v794 = vadd.f32 %v770, %v792
        %v795 = vadd.f32 %v771, %v793
        %s796 = sld [smem:[#allocation2 + $0xe]]
        %v797 = vstv %s796
        %v798 = vmul.f32 %v797, %v746
        %v799 = vmul.f32 %v797, %v747
        %v800 = vadd.f32 %v776, %v798
        %v801 = vadd.f32 %v777, %v799
        %s802 = sld [smem:[#allocation2 + $0x32]]
        %v803 = vstv %s802
        %v804 = vmul.f32 %v803, %v746
        %v805 = vmul.f32 %v803, %v747
        %v806 = vadd.f32 %v782, %v804
        %v807 = vadd.f32 %v783, %v805
        %s808 = sld [smem:[#allocation2 + $0x56]]
        %v809 = vstv %s808
        %v810 = vmul.f32 %v809, %v746
        %v811 = vmul.f32 %v809, %v747
        %v812 = vadd.f32 %v788, %v810
        %v813 = vadd.f32 %v789, %v811
        %s814 = sld [smem:[#allocation2 + $0x7a]]
        %v815 = vstv %s814
        %v816 = vmul.f32 %v815, %v746
        %v817 = vmul.f32 %v815, %v747
        %v818 = vadd.f32 %v794, %v816
        %v819 = vadd.f32 %v795, %v817
        %822 = vrot.lane.b32.xlu0 %v608, 113
        %v823 = vpop.permute.xlu0 %822
        %824 = vrot.lane.b32.xlu0 %v609, 113
        %v825 = vpop.permute.xlu0 %824
        %828 = vrot.lane.b32.xlu0 %v608, 1
        %v829 = vpop.permute.xlu0 %828
        %830 = vrot.lane.b32.xlu0 %v609, 1
        %v831 = vpop.permute.xlu0 %830
        %v834 = vsel %vm286, %v823, %v829
        %v835 = vsel %vm286, %v825, %v831
        %v836 = vsel %vm229, 0.0, %v834
        %v837 = vsel %vm229, 0.0, %v835
        %838 = vrot.lane.b32.xlu0 %v608, 127
        %v839 = vpop.permute.xlu0 %838
        %840 = vrot.lane.b32.xlu0 %v609, 127
        %v841 = vpop.permute.xlu0 %840
        %844 = vrot.lane.b32.xlu0 %v608, 15
        %v845 = vpop.permute.xlu0 %844
        %846 = vrot.lane.b32.xlu0 %v609, 15
        %v847 = vpop.permute.xlu0 %846
        %v850 = vsel %vm303, %v839, %v845
        %v851 = vsel %vm303, %v841, %v847
        %v852 = vsel %vm230, 0.0, %v850
        %v853 = vsel %vm230, 0.0, %v851
        %s854 = sld [smem:[#allocation2 + $0xf]]
        %v855 = vstv %s854
        %v856 = vmul.f32 %v855, %v836
        %v857 = vmul.f32 %v855, %v837
        %v858 = vadd.f32 %v800, %v856
        %v859 = vadd.f32 %v801, %v857
        %s860 = sld [smem:[#allocation2 + $0x33]]
        %v861 = vstv %s860
        %v862 = vmul.f32 %v861, %v836
        %v863 = vmul.f32 %v861, %v837
        %v864 = vadd.f32 %v806, %v862
        %v865 = vadd.f32 %v807, %v863
        %s866 = sld [smem:[#allocation2 + $0x57]]
        %v867 = vstv %s866
        %v868 = vmul.f32 %v867, %v836
        %v869 = vmul.f32 %v867, %v837
        %v870 = vadd.f32 %v812, %v868
        %v871 = vadd.f32 %v813, %v869
        %s872 = sld [smem:[#allocation2 + $0x7b]]
        %v873 = vstv %s872
        %v874 = vmul.f32 %v873, %v836
        %v875 = vmul.f32 %v873, %v837
        %v876 = vadd.f32 %v818, %v874
        %v877 = vadd.f32 %v819, %v875
        %s878 = sld [smem:[#allocation2 + $0x10]]
        %v879 = vstv %s878
        %v880 = vmul.f32 %v879, %v608
        %v881 = vmul.f32 %v879, %v609
        %v882 = vadd.f32 %v858, %v880
        %v883 = vadd.f32 %v859, %v881
        %s884 = sld [smem:[#allocation2 + $0x34]]
        %v885 = vstv %s884
        %v886 = vmul.f32 %v885, %v608
        %v887 = vmul.f32 %v885, %v609
        %v888 = vadd.f32 %v864, %v886
        %v889 = vadd.f32 %v865, %v887
        %s890 = sld [smem:[#allocation2 + $0x58]]
        %v891 = vstv %s890
        %v892 = vmul.f32 %v891, %v608
        %v893 = vmul.f32 %v891, %v609
        %v894 = vadd.f32 %v870, %v892
        %v895 = vadd.f32 %v871, %v893
        %s896 = sld [smem:[#allocation2 + $0x7c]]
        %v897 = vstv %s896
        %v898 = vmul.f32 %v897, %v608
        %v899 = vmul.f32 %v897, %v609
        %v900 = vadd.f32 %v876, %v898
        %v901 = vadd.f32 %v877, %v899
        %s902 = sld [smem:[#allocation2 + $0x11]]
        %v903 = vstv %s902
        %v904 = vmul.f32 %v903, %v852
        %v905 = vmul.f32 %v903, %v853
        %v906 = vadd.f32 %v882, %v904
        %v907 = vadd.f32 %v883, %v905
        %s908 = sld [smem:[#allocation2 + $0x35]]
        %v909 = vstv %s908
        %v910 = vmul.f32 %v909, %v852
        %v911 = vmul.f32 %v909, %v853
        %v912 = vadd.f32 %v888, %v910
        %v913 = vadd.f32 %v889, %v911
        %s914 = sld [smem:[#allocation2 + $0x59]]
        %v915 = vstv %s914
        %v916 = vmul.f32 %v915, %v852
        %v917 = vmul.f32 %v915, %v853
        %v918 = vadd.f32 %v894, %v916
        %v919 = vadd.f32 %v895, %v917
        %s920 = sld [smem:[#allocation2 + $0x7d]]
        %v921 = vstv %s920
        %v922 = vmul.f32 %v921, %v852
        %v923 = vmul.f32 %v921, %v853
        %v924 = vadd.f32 %v900, %v922
        %v925 = vadd.f32 %v901, %v923
        %v927 = vrot.slane %v238, 7
        %v930 = vrot.slane %v237, 7
        %v931 = vsel %vm254, %v930, %v927
        %v934 = vsel %vm254, %v927, %v930
        %v935 = vsel %vm225, 0.0, %v934
        %v936 = vsel %vm226, 0.0, %v931
        %v937 = vrot.slane %v237, 1
        %v938 = vrot.slane %v238, 1
        %v939 = vsel %vm262, %v937, %v938
        %v943 = vsel %vm262, %v938, %v937
        %v944 = vsel %vm227, 0.0, %v939
        %v945 = vsel %vm228, 0.0, %v943
        %948 = vrot.lane.b32.xlu0 %v935, 113
        %v949 = vpop.permute.xlu0 %948
        %950 = vrot.lane.b32.xlu0 %v936, 113
        %v951 = vpop.permute.xlu0 %950
        %954 = vrot.lane.b32.xlu0 %v935, 1
        %v955 = vpop.permute.xlu0 %954
        %956 = vrot.lane.b32.xlu0 %v936, 1
        %v957 = vpop.permute.xlu0 %956
        %v960 = vsel %vm286, %v949, %v955
        %v961 = vsel %vm286, %v951, %v957
        %v962 = vsel %vm229, 0.0, %v960
        %v963 = vsel %vm229, 0.0, %v961
        %964 = vrot.lane.b32.xlu0 %v935, 127
        %v965 = vpop.permute.xlu0 %964
        %966 = vrot.lane.b32.xlu0 %v936, 127
        %v967 = vpop.permute.xlu0 %966
        %970 = vrot.lane.b32.xlu0 %v935, 15
        %v971 = vpop.permute.xlu0 %970
        %972 = vrot.lane.b32.xlu0 %v936, 15
        %v973 = vpop.permute.xlu0 %972
        %v976 = vsel %vm303, %v965, %v971
        %v977 = vsel %vm303, %v967, %v973
        %v978 = vsel %vm230, 0.0, %v976
        %v979 = vsel %vm230, 0.0, %v977
        %s980 = sld [smem:[#allocation2 + $0x12]]
        %v981 = vstv %s980
        %v982 = vmul.f32 %v981, %v962
        %v983 = vmul.f32 %v981, %v963
        %v984 = vadd.f32 %v906, %v982
        %v985 = vadd.f32 %v907, %v983
        %s986 = sld [smem:[#allocation2 + $0x36]]
        %v987 = vstv %s986
        %v988 = vmul.f32 %v987, %v962
        %v989 = vmul.f32 %v987, %v963
        %v990 = vadd.f32 %v912, %v988
        %v991 = vadd.f32 %v913, %v989
        %s992 = sld [smem:[#allocation2 + $0x5a]]
        %v993 = vstv %s992
        %v994 = vmul.f32 %v993, %v962
        %v995 = vmul.f32 %v993, %v963
        %v996 = vadd.f32 %v918, %v994
        %v997 = vadd.f32 %v919, %v995
        %s998 = sld [smem:[#allocation2 + $0x7e]]
        %v999 = vstv %s998
        %v1000 = vmul.f32 %v999, %v962
        %v1001 = vmul.f32 %v999, %v963
        %v1002 = vadd.f32 %v924, %v1000
        %v1003 = vadd.f32 %v925, %v1001
        %s1004 = sld [smem:[#allocation2 + $0x13]]
        %v1005 = vstv %s1004
        %v1006 = vmul.f32 %v1005, %v935
        %v1007 = vmul.f32 %v1005, %v936
        %v1008 = vadd.f32 %v984, %v1006
        %v1009 = vadd.f32 %v985, %v1007
        %s1010 = sld [smem:[#allocation2 + $0x37]]
        %v1011 = vstv %s1010
        %v1012 = vmul.f32 %v1011, %v935
        %v1013 = vmul.f32 %v1011, %v936
        %v1014 = vadd.f32 %v990, %v1012
        %v1015 = vadd.f32 %v991, %v1013
        %s1016 = sld [smem:[#allocation2 + $0x5b]]
        %v1017 = vstv %s1016
        %v1018 = vmul.f32 %v1017, %v935
        %v1019 = vmul.f32 %v1017, %v936
        %v1020 = vadd.f32 %v996, %v1018
        %v1021 = vadd.f32 %v997, %v1019
        %s1022 = sld [smem:[#allocation2 + $0x7f]]
        %v1023 = vstv %s1022
        %v1024 = vmul.f32 %v1023, %v935
        %v1025 = vmul.f32 %v1023, %v936
        %v1026 = vadd.f32 %v1002, %v1024
        %v1027 = vadd.f32 %v1003, %v1025
        %s1028 = sld [smem:[#allocation2 + $0x14]]
        %v1029 = vstv %s1028
        %v1030 = vmul.f32 %v1029, %v978
        %v1031 = vmul.f32 %v1029, %v979
        %v1032 = vadd.f32 %v1008, %v1030
        %v1033 = vadd.f32 %v1009, %v1031
        %s1034 = sld [smem:[#allocation2 + $0x38]]
        %v1035 = vstv %s1034
        %v1036 = vmul.f32 %v1035, %v978
        %v1037 = vmul.f32 %v1035, %v979
        %v1038 = vadd.f32 %v1014, %v1036
        %v1039 = vadd.f32 %v1015, %v1037
        %s1040 = sld [smem:[#allocation2 + $0x5c]]
        %v1041 = vstv %s1040
        %v1042 = vmul.f32 %v1041, %v978
        %v1043 = vmul.f32 %v1041, %v979
        %v1044 = vadd.f32 %v1020, %v1042
        %v1045 = vadd.f32 %v1021, %v1043
        %s1046 = sld [smem:[#allocation2 + $0x80]]
        %v1047 = vstv %s1046
        %v1048 = vmul.f32 %v1047, %v978
        %v1049 = vmul.f32 %v1047, %v979
        %v1050 = vadd.f32 %v1026, %v1048
        %v1051 = vadd.f32 %v1027, %v1049
        %1052 = vrot.lane.b32.xlu0 %v237, 113
        %v1053 = vpop.permute.xlu0 %1052
        %1054 = vrot.lane.b32.xlu0 %v238, 113
        %v1055 = vpop.permute.xlu0 %1054
        %1058 = vrot.lane.b32.xlu0 %v237, 1
        %v1059 = vpop.permute.xlu0 %1058
        %1060 = vrot.lane.b32.xlu0 %v238, 1
        %v1061 = vpop.permute.xlu0 %1060
        %v1064 = vsel %vm286, %v1053, %v1059
        %v1065 = vsel %vm286, %v1055, %v1061
        %v1066 = vsel %vm229, 0.0, %v1064
        %v1067 = vsel %vm229, 0.0, %v1065
        %1068 = vrot.lane.b32.xlu0 %v237, 127
        %v1069 = vpop.permute.xlu0 %1068
        %1070 = vrot.lane.b32.xlu0 %v238, 127
        %v1071 = vpop.permute.xlu0 %1070
        %1074 = vrot.lane.b32.xlu0 %v237, 15
        %v1075 = vpop.permute.xlu0 %1074
        %1076 = vrot.lane.b32.xlu0 %v238, 15
        %v1077 = vpop.permute.xlu0 %1076
        %v1080 = vsel %vm303, %v1069, %v1075
        %v1081 = vsel %vm303, %v1071, %v1077
        %v1082 = vsel %vm230, 0.0, %v1080
        %v1083 = vsel %vm230, 0.0, %v1081
        %s1084 = sld [smem:[#allocation2 + $0x15]]
        %v1085 = vstv %s1084
        %v1086 = vmul.f32 %v1085, %v1066
        %v1087 = vmul.f32 %v1085, %v1067
        %v1088 = vadd.f32 %v1032, %v1086
        %v1089 = vadd.f32 %v1033, %v1087
        %s1090 = sld [smem:[#allocation2 + $0x39]]
        %v1091 = vstv %s1090
        %v1092 = vmul.f32 %v1091, %v1066
        %v1093 = vmul.f32 %v1091, %v1067
        %v1094 = vadd.f32 %v1038, %v1092
        %v1095 = vadd.f32 %v1039, %v1093
        %s1096 = sld [smem:[#allocation2 + $0x5d]]
        %v1097 = vstv %s1096
        %v1098 = vmul.f32 %v1097, %v1066
        %v1099 = vmul.f32 %v1097, %v1067
        %v1100 = vadd.f32 %v1044, %v1098
        %v1101 = vadd.f32 %v1045, %v1099
        %s1102 = sld [smem:[#allocation2 + $0x81]]
        %v1103 = vstv %s1102
        %v1104 = vmul.f32 %v1103, %v1066
        %v1105 = vmul.f32 %v1103, %v1067
        %v1106 = vadd.f32 %v1050, %v1104
        %v1107 = vadd.f32 %v1051, %v1105
        %s1108 = sld [smem:[#allocation2 + $0x16]]
        %v1109 = vstv %s1108
        %v1110 = vmul.f32 %v1109, %v237
        %v1111 = vmul.f32 %v1109, %v238
        %v1112 = vadd.f32 %v1088, %v1110
        %v1113 = vadd.f32 %v1089, %v1111
        %s1114 = sld [smem:[#allocation2 + $0x3a]]
        %v1115 = vstv %s1114
        %v1116 = vmul.f32 %v1115, %v237
        %v1117 = vmul.f32 %v1115, %v238
        %v1118 = vadd.f32 %v1094, %v1116
        %v1119 = vadd.f32 %v1095, %v1117
        %s1120 = sld [smem:[#allocation2 + $0x5e]]
        %v1121 = vstv %s1120
        %v1122 = vmul.f32 %v1121, %v237
        %v1123 = vmul.f32 %v1121, %v238
        %v1124 = vadd.f32 %v1100, %v1122
        %v1125 = vadd.f32 %v1101, %v1123
        %s1126 = sld [smem:[#allocation2 + $0x82]]
        %v1127 = vstv %s1126
        %v1128 = vmul.f32 %v1127, %v237
        %v1129 = vmul.f32 %v1127, %v238
        %v1130 = vadd.f32 %v1106, %v1128
        %v1131 = vadd.f32 %v1107, %v1129
        %s1132 = sld [smem:[#allocation2 + $0x17]]
        %v1133 = vstv %s1132
        %v1134 = vmul.f32 %v1133, %v1082
        %v1135 = vmul.f32 %v1133, %v1083
        %v1136 = vadd.f32 %v1112, %v1134
        %v1137 = vadd.f32 %v1113, %v1135
        %s1138 = sld [smem:[#allocation2 + $0x3b]]
        %v1139 = vstv %s1138
        %v1140 = vmul.f32 %v1139, %v1082
        %v1141 = vmul.f32 %v1139, %v1083
        %v1142 = vadd.f32 %v1118, %v1140
        %v1143 = vadd.f32 %v1119, %v1141
        %s1144 = sld [smem:[#allocation2 + $0x5f]]
        %v1145 = vstv %s1144
        %v1146 = vmul.f32 %v1145, %v1082
        %v1147 = vmul.f32 %v1145, %v1083
        %v1148 = vadd.f32 %v1124, %v1146
        %v1149 = vadd.f32 %v1125, %v1147
        %s1150 = sld [smem:[#allocation2 + $0x83]]
        %v1151 = vstv %s1150
        %v1152 = vmul.f32 %v1151, %v1082
        %v1153 = vmul.f32 %v1151, %v1083
        %v1154 = vadd.f32 %v1130, %v1152
        %v1155 = vadd.f32 %v1131, %v1153
        %1158 = vrot.lane.b32.xlu0 %v944, 113
        %v1159 = vpop.permute.xlu0 %1158
        %1160 = vrot.lane.b32.xlu0 %v945, 113
        %v1161 = vpop.permute.xlu0 %1160
        %1164 = vrot.lane.b32.xlu0 %v944, 1
        %v1165 = vpop.permute.xlu0 %1164
        %1166 = vrot.lane.b32.xlu0 %v945, 1
        %v1167 = vpop.permute.xlu0 %1166
        %v1170 = vsel %vm286, %v1159, %v1165
        %v1171 = vsel %vm286, %v1161, %v1167
        %v1172 = vsel %vm229, 0.0, %v1170
        %v1173 = vsel %vm229, 0.0, %v1171
        %1174 = vrot.lane.b32.xlu0 %v944, 127
        %v1175 = vpop.permute.xlu0 %1174
        %1176 = vrot.lane.b32.xlu0 %v945, 127
        %v1177 = vpop.permute.xlu0 %1176
        %1180 = vrot.lane.b32.xlu0 %v944, 15
        %v1181 = vpop.permute.xlu0 %1180
        %1182 = vrot.lane.b32.xlu0 %v945, 15
        %v1183 = vpop.permute.xlu0 %1182
        %v1186 = vsel %vm303, %v1175, %v1181
        %v1187 = vsel %vm303, %v1177, %v1183
        %v1188 = vsel %vm230, 0.0, %v1186
        %v1189 = vsel %vm230, 0.0, %v1187
        %s1190 = sld [smem:[#allocation2 + $0x18]]
        %v1191 = vstv %s1190
        %v1192 = vmul.f32 %v1191, %v1172
        %v1193 = vmul.f32 %v1191, %v1173
        %v1194 = vadd.f32 %v1136, %v1192
        %v1195 = vadd.f32 %v1137, %v1193
        %s1196 = sld [smem:[#allocation2 + $0x3c]]
        %v1197 = vstv %s1196
        %v1198 = vmul.f32 %v1197, %v1172
        %v1199 = vmul.f32 %v1197, %v1173
        %v1200 = vadd.f32 %v1142, %v1198
        %v1201 = vadd.f32 %v1143, %v1199
        %s1202 = sld [smem:[#allocation2 + $0x60]]
        %v1203 = vstv %s1202
        %v1204 = vmul.f32 %v1203, %v1172
        %v1205 = vmul.f32 %v1203, %v1173
        %v1206 = vadd.f32 %v1148, %v1204
        %v1207 = vadd.f32 %v1149, %v1205
        %s1208 = sld [smem:[#allocation2 + $0x84]]
        %v1209 = vstv %s1208
        %v1210 = vmul.f32 %v1209, %v1172
        %v1211 = vmul.f32 %v1209, %v1173
        %v1212 = vadd.f32 %v1154, %v1210
        %v1213 = vadd.f32 %v1155, %v1211
        %s1214 = sld [smem:[#allocation2 + $0x19]]
        %v1215 = vstv %s1214
        %v1216 = vmul.f32 %v1215, %v944
        %v1217 = vmul.f32 %v1215, %v945
        %v1218 = vadd.f32 %v1194, %v1216
        %v1219 = vadd.f32 %v1195, %v1217
        %s1220 = sld [smem:[#allocation2 + $0x3d]]
        %v1221 = vstv %s1220
        %v1222 = vmul.f32 %v1221, %v944
        %v1223 = vmul.f32 %v1221, %v945
        %v1224 = vadd.f32 %v1200, %v1222
        %v1225 = vadd.f32 %v1201, %v1223
        %s1226 = sld [smem:[#allocation2 + $0x61]]
        %v1227 = vstv %s1226
        %v1228 = vmul.f32 %v1227, %v944
        %v1229 = vmul.f32 %v1227, %v945
        %v1230 = vadd.f32 %v1206, %v1228
        %v1231 = vadd.f32 %v1207, %v1229
        %s1232 = sld [smem:[#allocation2 + $0x85]]
        %v1233 = vstv %s1232
        %v1234 = vmul.f32 %v1233, %v944
        %v1235 = vmul.f32 %v1233, %v945
        %v1236 = vadd.f32 %v1212, %v1234
        %v1237 = vadd.f32 %v1213, %v1235
        %s1238 = sld [smem:[#allocation2 + $0x1a]]
        %v1239 = vstv %s1238
        %v1240 = vmul.f32 %v1239, %v1188
        %v1241 = vmul.f32 %v1239, %v1189
        %v1242 = vadd.f32 %v1218, %v1240
        %v1243 = vadd.f32 %v1219, %v1241
        %s1244 = sld [smem:[#allocation2 + $0x3e]]
        %v1245 = vstv %s1244
        %v1246 = vmul.f32 %v1245, %v1188
        %v1247 = vmul.f32 %v1245, %v1189
        %v1248 = vadd.f32 %v1224, %v1246
        %v1249 = vadd.f32 %v1225, %v1247
        %s1250 = sld [smem:[#allocation2 + $0x62]]
        %v1251 = vstv %s1250
        %v1252 = vmul.f32 %v1251, %v1188
        %v1253 = vmul.f32 %v1251, %v1189
        %v1254 = vadd.f32 %v1230, %v1252
        %v1255 = vadd.f32 %v1231, %v1253
        %s1256 = sld [smem:[#allocation2 + $0x86]]
        %v1257 = vstv %s1256
        %v1258 = vmul.f32 %v1257, %v1188
        %v1259 = vmul.f32 %v1257, %v1189
        %v1260 = vadd.f32 %v1236, %v1258
        %v1261 = vadd.f32 %v1237, %v1259
        %v1263 = vrot.slane %v241, 7
        %v1266 = vrot.slane %v240, 7
        %v1267 = vsel %vm254, %v1266, %v1263
        %v1270 = vsel %vm254, %v1263, %v1266
        %v1271 = vsel %vm225, 0.0, %v1270
        %v1272 = vsel %vm226, 0.0, %v1267
        %v1273 = vrot.slane %v240, 1
        %v1274 = vrot.slane %v241, 1
        %v1275 = vsel %vm262, %v1273, %v1274
        %v1279 = vsel %vm262, %v1274, %v1273
        %v1280 = vsel %vm227, 0.0, %v1275
        %v1281 = vsel %vm228, 0.0, %v1279
        %1284 = vrot.lane.b32.xlu0 %v1271, 113
        %v1285 = vpop.permute.xlu0 %1284
        %1286 = vrot.lane.b32.xlu0 %v1272, 113
        %v1287 = vpop.permute.xlu0 %1286
        %1290 = vrot.lane.b32.xlu0 %v1271, 1
        %v1291 = vpop.permute.xlu0 %1290
        %1292 = vrot.lane.b32.xlu0 %v1272, 1
        %v1293 = vpop.permute.xlu0 %1292
        %v1296 = vsel %vm286, %v1285, %v1291
        %v1297 = vsel %vm286, %v1287, %v1293
        %v1298 = vsel %vm229, 0.0, %v1296
        %v1299 = vsel %vm229, 0.0, %v1297
        %1300 = vrot.lane.b32.xlu0 %v1271, 127
        %v1301 = vpop.permute.xlu0 %1300
        %1302 = vrot.lane.b32.xlu0 %v1272, 127
        %v1303 = vpop.permute.xlu0 %1302
        %1306 = vrot.lane.b32.xlu0 %v1271, 15
        %v1307 = vpop.permute.xlu0 %1306
        %1308 = vrot.lane.b32.xlu0 %v1272, 15
        %v1309 = vpop.permute.xlu0 %1308
        %v1312 = vsel %vm303, %v1301, %v1307
        %v1313 = vsel %vm303, %v1303, %v1309
        %v1314 = vsel %vm230, 0.0, %v1312
        %v1315 = vsel %vm230, 0.0, %v1313
        %s1316 = sld [smem:[#allocation2 + $0x1b]]
        %v1317 = vstv %s1316
        %v1318 = vmul.f32 %v1317, %v1298
        %v1319 = vmul.f32 %v1317, %v1299
        %v1320 = vadd.f32 %v1242, %v1318
        %v1321 = vadd.f32 %v1243, %v1319
        %s1322 = sld [smem:[#allocation2 + $0x3f]]
        %v1323 = vstv %s1322
        %v1324 = vmul.f32 %v1323, %v1298
        %v1325 = vmul.f32 %v1323, %v1299
        %v1326 = vadd.f32 %v1248, %v1324
        %v1327 = vadd.f32 %v1249, %v1325
        %s1328 = sld [smem:[#allocation2 + $0x63]]
        %v1329 = vstv %s1328
        %v1330 = vmul.f32 %v1329, %v1298
        %v1331 = vmul.f32 %v1329, %v1299
        %v1332 = vadd.f32 %v1254, %v1330
        %v1333 = vadd.f32 %v1255, %v1331
        %s1334 = sld [smem:[#allocation2 + $0x87]]
        %v1335 = vstv %s1334
        %v1336 = vmul.f32 %v1335, %v1298
        %v1337 = vmul.f32 %v1335, %v1299
        %v1338 = vadd.f32 %v1260, %v1336
        %v1339 = vadd.f32 %v1261, %v1337
        %s1340 = sld [smem:[#allocation2 + $0x1c]]
        %v1341 = vstv %s1340
        %v1342 = vmul.f32 %v1341, %v1271
        %v1343 = vmul.f32 %v1341, %v1272
        %v1344 = vadd.f32 %v1320, %v1342
        %v1345 = vadd.f32 %v1321, %v1343
        %s1346 = sld [smem:[#allocation2 + $0x40]]
        %v1347 = vstv %s1346
        %v1348 = vmul.f32 %v1347, %v1271
        %v1349 = vmul.f32 %v1347, %v1272
        %v1350 = vadd.f32 %v1326, %v1348
        %v1351 = vadd.f32 %v1327, %v1349
        %s1352 = sld [smem:[#allocation2 + $0x64]]
        %v1353 = vstv %s1352
        %v1354 = vmul.f32 %v1353, %v1271
        %v1355 = vmul.f32 %v1353, %v1272
        %v1356 = vadd.f32 %v1332, %v1354
        %v1357 = vadd.f32 %v1333, %v1355
        %s1358 = sld [smem:[#allocation2 + $0x88]]
        %v1359 = vstv %s1358
        %v1360 = vmul.f32 %v1359, %v1271
        %v1361 = vmul.f32 %v1359, %v1272
        %v1362 = vadd.f32 %v1338, %v1360
        %v1363 = vadd.f32 %v1339, %v1361
        %s1364 = sld [smem:[#allocation2 + $0x1d]]
        %v1365 = vstv %s1364
        %v1366 = vmul.f32 %v1365, %v1314
        %v1367 = vmul.f32 %v1365, %v1315
        %v1368 = vadd.f32 %v1344, %v1366
        %v1369 = vadd.f32 %v1345, %v1367
        %s1370 = sld [smem:[#allocation2 + $0x41]]
        %v1371 = vstv %s1370
        %v1372 = vmul.f32 %v1371, %v1314
        %v1373 = vmul.f32 %v1371, %v1315
        %v1374 = vadd.f32 %v1350, %v1372
        %v1375 = vadd.f32 %v1351, %v1373
        %s1376 = sld [smem:[#allocation2 + $0x65]]
        %v1377 = vstv %s1376
        %v1378 = vmul.f32 %v1377, %v1314
        %v1379 = vmul.f32 %v1377, %v1315
        %v1380 = vadd.f32 %v1356, %v1378
        %v1381 = vadd.f32 %v1357, %v1379
        %s1382 = sld [smem:[#allocation2 + $0x89]]
        %v1383 = vstv %s1382
        %v1384 = vmul.f32 %v1383, %v1314
        %v1385 = vmul.f32 %v1383, %v1315
        %v1386 = vadd.f32 %v1362, %v1384
        %v1387 = vadd.f32 %v1363, %v1385
        %1388 = vrot.lane.b32.xlu0 %v240, 113
        %v1389 = vpop.permute.xlu0 %1388
        %1390 = vrot.lane.b32.xlu0 %v241, 113
        %v1391 = vpop.permute.xlu0 %1390
        %1394 = vrot.lane.b32.xlu0 %v240, 1
        %v1395 = vpop.permute.xlu0 %1394
        %1396 = vrot.lane.b32.xlu0 %v241, 1
        %v1397 = vpop.permute.xlu0 %1396
        %v1400 = vsel %vm286, %v1389, %v1395
        %v1401 = vsel %vm286, %v1391, %v1397
        %v1402 = vsel %vm229, 0.0, %v1400
        %v1403 = vsel %vm229, 0.0, %v1401
        %1404 = vrot.lane.b32.xlu0 %v240, 127
        %v1405 = vpop.permute.xlu0 %1404
        %1406 = vrot.lane.b32.xlu0 %v241, 127
        %v1407 = vpop.permute.xlu0 %1406
        %1410 = vrot.lane.b32.xlu0 %v240, 15
        %v1411 = vpop.permute.xlu0 %1410
        %1412 = vrot.lane.b32.xlu0 %v241, 15
        %v1413 = vpop.permute.xlu0 %1412
        %v1416 = vsel %vm303, %v1405, %v1411
        %v1417 = vsel %vm303, %v1407, %v1413
        %v1418 = vsel %vm230, 0.0, %v1416
        %v1419 = vsel %vm230, 0.0, %v1417
        %s1420 = sld [smem:[#allocation2 + $0x1e]]
        %v1421 = vstv %s1420
        %v1422 = vmul.f32 %v1421, %v1402
        %v1423 = vmul.f32 %v1421, %v1403
        %v1424 = vadd.f32 %v1368, %v1422
        %v1425 = vadd.f32 %v1369, %v1423
        %s1426 = sld [smem:[#allocation2 + $0x42]]
        %v1427 = vstv %s1426
        %v1428 = vmul.f32 %v1427, %v1402
        %v1429 = vmul.f32 %v1427, %v1403
        %v1430 = vadd.f32 %v1374, %v1428
        %v1431 = vadd.f32 %v1375, %v1429
        %s1432 = sld [smem:[#allocation2 + $0x66]]
        %v1433 = vstv %s1432
        %v1434 = vmul.f32 %v1433, %v1402
        %v1435 = vmul.f32 %v1433, %v1403
        %v1436 = vadd.f32 %v1380, %v1434
        %v1437 = vadd.f32 %v1381, %v1435
        %s1438 = sld [smem:[#allocation2 + $0x8a]]
        %v1439 = vstv %s1438
        %v1440 = vmul.f32 %v1439, %v1402
        %v1441 = vmul.f32 %v1439, %v1403
        %v1442 = vadd.f32 %v1386, %v1440
        %v1443 = vadd.f32 %v1387, %v1441
        %s1444 = sld [smem:[#allocation2 + $0x1f]]
        %v1445 = vstv %s1444
        %v1446 = vmul.f32 %v1445, %v240
        %v1447 = vmul.f32 %v1445, %v241
        %v1448 = vadd.f32 %v1424, %v1446
        %v1449 = vadd.f32 %v1425, %v1447
        %s1450 = sld [smem:[#allocation2 + $0x43]]
        %v1451 = vstv %s1450
        %v1452 = vmul.f32 %v1451, %v240
        %v1453 = vmul.f32 %v1451, %v241
        %v1454 = vadd.f32 %v1430, %v1452
        %v1455 = vadd.f32 %v1431, %v1453
        %s1456 = sld [smem:[#allocation2 + $0x67]]
        %v1457 = vstv %s1456
        %v1458 = vmul.f32 %v1457, %v240
        %v1459 = vmul.f32 %v1457, %v241
        %v1460 = vadd.f32 %v1436, %v1458
        %v1461 = vadd.f32 %v1437, %v1459
        %s1462 = sld [smem:[#allocation2 + $0x8b]]
        %v1463 = vstv %s1462
        %v1464 = vmul.f32 %v1463, %v240
        %v1465 = vmul.f32 %v1463, %v241
        %v1466 = vadd.f32 %v1442, %v1464
        %v1467 = vadd.f32 %v1443, %v1465
        %s1468 = sld [smem:[#allocation2 + $0x20]]
        %v1469 = vstv %s1468
        %v1470 = vmul.f32 %v1469, %v1418
        %v1471 = vmul.f32 %v1469, %v1419
        %v1472 = vadd.f32 %v1448, %v1470
        %v1473 = vadd.f32 %v1449, %v1471
        %s1474 = sld [smem:[#allocation2 + $0x44]]
        %v1475 = vstv %s1474
        %v1476 = vmul.f32 %v1475, %v1418
        %v1477 = vmul.f32 %v1475, %v1419
        %v1478 = vadd.f32 %v1454, %v1476
        %v1479 = vadd.f32 %v1455, %v1477
        %s1480 = sld [smem:[#allocation2 + $0x68]]
        %v1481 = vstv %s1480
        %v1482 = vmul.f32 %v1481, %v1418
        %v1483 = vmul.f32 %v1481, %v1419
        %v1484 = vadd.f32 %v1460, %v1482
        %v1485 = vadd.f32 %v1461, %v1483
        %s1486 = sld [smem:[#allocation2 + $0x8c]]
        %v1487 = vstv %s1486
        %v1488 = vmul.f32 %v1487, %v1418
        %v1489 = vmul.f32 %v1487, %v1419
        %v1490 = vadd.f32 %v1466, %v1488
        %v1491 = vadd.f32 %v1467, %v1489
        %1494 = vrot.lane.b32.xlu0 %v1280, 113
        %v1495 = vpop.permute.xlu0 %1494
        %1496 = vrot.lane.b32.xlu0 %v1281, 113
        %v1497 = vpop.permute.xlu0 %1496
        %1500 = vrot.lane.b32.xlu0 %v1280, 1
        %v1501 = vpop.permute.xlu0 %1500
        %1502 = vrot.lane.b32.xlu0 %v1281, 1
        %v1503 = vpop.permute.xlu0 %1502
        %v1506 = vsel %vm286, %v1495, %v1501
        %v1507 = vsel %vm286, %v1497, %v1503
        %v1508 = vsel %vm229, 0.0, %v1506
        %v1509 = vsel %vm229, 0.0, %v1507
        %1510 = vrot.lane.b32.xlu0 %v1280, 127
        %v1511 = vpop.permute.xlu0 %1510
        %1512 = vrot.lane.b32.xlu0 %v1281, 127
        %v1513 = vpop.permute.xlu0 %1512
        %1516 = vrot.lane.b32.xlu0 %v1280, 15
        %v1517 = vpop.permute.xlu0 %1516
        %1518 = vrot.lane.b32.xlu0 %v1281, 15
        %v1519 = vpop.permute.xlu0 %1518
        %v1522 = vsel %vm303, %v1511, %v1517
        %v1523 = vsel %vm303, %v1513, %v1519
        %v1524 = vsel %vm230, 0.0, %v1522
        %v1525 = vsel %vm230, 0.0, %v1523
        %s1526 = sld [smem:[#allocation2 + $0x21]]
        %v1527 = vstv %s1526
        %v1528 = vmul.f32 %v1527, %v1508
        %v1529 = vmul.f32 %v1527, %v1509
        %v1530 = vadd.f32 %v1472, %v1528
        %v1531 = vadd.f32 %v1473, %v1529
        %s1532 = sld [smem:[#allocation2 + $0x45]]
        %v1533 = vstv %s1532
        %v1534 = vmul.f32 %v1533, %v1508
        %v1535 = vmul.f32 %v1533, %v1509
        %v1536 = vadd.f32 %v1478, %v1534
        %v1537 = vadd.f32 %v1479, %v1535
        %s1538 = sld [smem:[#allocation2 + $0x69]]
        %v1539 = vstv %s1538
        %v1540 = vmul.f32 %v1539, %v1508
        %v1541 = vmul.f32 %v1539, %v1509
        %v1542 = vadd.f32 %v1484, %v1540
        %v1543 = vadd.f32 %v1485, %v1541
        %s1544 = sld [smem:[#allocation2 + $0x8d]]
        %v1545 = vstv %s1544
        %v1546 = vmul.f32 %v1545, %v1508
        %v1547 = vmul.f32 %v1545, %v1509
        %v1548 = vadd.f32 %v1490, %v1546
        %v1549 = vadd.f32 %v1491, %v1547
        %s1550 = sld [smem:[#allocation2 + $0x22]]
        %v1551 = vstv %s1550
        %v1552 = vmul.f32 %v1551, %v1280
        %v1553 = vmul.f32 %v1551, %v1281
        %v1554 = vadd.f32 %v1530, %v1552
        %v1555 = vadd.f32 %v1531, %v1553
        %s1556 = sld [smem:[#allocation2 + $0x46]]
        %v1557 = vstv %s1556
        %v1558 = vmul.f32 %v1557, %v1280
        %v1559 = vmul.f32 %v1557, %v1281
        %v1560 = vadd.f32 %v1536, %v1558
        %v1561 = vadd.f32 %v1537, %v1559
        %s1562 = sld [smem:[#allocation2 + $0x6a]]
        %v1563 = vstv %s1562
        %v1564 = vmul.f32 %v1563, %v1280
        %v1565 = vmul.f32 %v1563, %v1281
        %v1566 = vadd.f32 %v1542, %v1564
        %v1567 = vadd.f32 %v1543, %v1565
        %s1568 = sld [smem:[#allocation2 + $0x8e]]
        %v1569 = vstv %s1568
        %v1570 = vmul.f32 %v1569, %v1280
        %v1571 = vmul.f32 %v1569, %v1281
        %v1572 = vadd.f32 %v1548, %v1570
        %v1573 = vadd.f32 %v1549, %v1571
        %s1574 = sld [smem:[#allocation2 + $0x23]]
        %v1575 = vstv %s1574
        %v1576 = vmul.f32 %v1575, %v1524
        %v1577 = vmul.f32 %v1575, %v1525
        %v1578 = vadd.f32 %v1554, %v1576
        %v1579 = vadd.f32 %v1555, %v1577
        %s1580 = sld [smem:[#allocation2 + $0x47]]
        %v1581 = vstv %s1580
        %v1582 = vmul.f32 %v1581, %v1524
        %v1583 = vmul.f32 %v1581, %v1525
        %v1584 = vadd.f32 %v1560, %v1582
        %v1585 = vadd.f32 %v1561, %v1583
        %s1586 = sld [smem:[#allocation2 + $0x6b]]
        %v1587 = vstv %s1586
        %v1588 = vmul.f32 %v1587, %v1524
        %v1589 = vmul.f32 %v1587, %v1525
        %v1590 = vadd.f32 %v1566, %v1588
        %v1591 = vadd.f32 %v1567, %v1589
        %s1592 = sld [smem:[#allocation2 + $0x8f]]
        %v1593 = vstv %s1592
        %v1594 = vmul.f32 %v1593, %v1524
        %v1595 = vmul.f32 %v1593, %v1525
        %v1596 = vadd.f32 %v1572, %v1594
        %v1597 = vadd.f32 %v1573, %v1595
        %v1598 = vmax.f32 %v1578, 0.0
        %v1599 = vmax.f32 %v1579, 0.0
        %1602 = vrot.lane.b32.xlu0 %v1598, 127
        %v1603 = vpop.permute.xlu0 %1602
        %1604 = vrot.lane.b32.xlu0 %v1599, 127
        %v1605 = vpop.permute.xlu0 %1604
        %1608 = vrot.lane.b32.xlu0 %v1598, 15
        %v1609 = vpop.permute.xlu0 %1608
        %1610 = vrot.lane.b32.xlu0 %v1599, 15
        %v1611 = vpop.permute.xlu0 %1610
        %v1614 = vsel %vm303, %v1603, %v1609
        %v1615 = vsel %vm303, %v1605, %v1611
        %1616 = vrot.lane.b32.xlu0 %v1598, 113
        %v1617 = vpop.permute.xlu0 %1616
        %1618 = vrot.lane.b32.xlu0 %v1599, 113
        %v1619 = vpop.permute.xlu0 %1618
        %1622 = vrot.lane.b32.xlu0 %v1598, 1
        %v1623 = vpop.permute.xlu0 %1622
        %1624 = vrot.lane.b32.xlu0 %v1599, 1
        %v1625 = vpop.permute.xlu0 %1624
        %v1628 = vsel %vm286, %v1617, %v1623
        %v1629 = vsel %vm286, %v1619, %v1625
        %v1630 = vsel %vm224, %v1614, %v1628
        %v1631 = vsel %vm224, %v1615, %v1629
        %v1632 = vrot.slane %v1598, 1
        %v1633 = vrot.slane %v1599, 1
        %v1634 = vsel %vm262, %v1632, %v1633
        %v1638 = vsel %vm262, %v1633, %v1632
        %v1639 = vrot.slane %v1599, 7
        %v1641 = vrot.slane %v1598, 7
        %v1642 = vsel %vm254, %v1641, %v1639
        %v1645 = vsel %vm254, %v1639, %v1641
        %v1646 = vsel %vm221, %v1634, %v1645
        %v1647 = vsel %vm222, %v1638, %v1642
        %1650 = vrot.lane.b32.xlu0 %v1646, 127
        %v1651 = vpop.permute.xlu0 %1650
        %1652 = vrot.lane.b32.xlu0 %v1647, 127
        %v1653 = vpop.permute.xlu0 %1652
        %1656 = vrot.lane.b32.xlu0 %v1646, 15
        %v1657 = vpop.permute.xlu0 %1656
        %1658 = vrot.lane.b32.xlu0 %v1647, 15
        %v1659 = vpop.permute.xlu0 %1658
        %v1662 = vsel %vm303, %v1651, %v1657
        %v1663 = vsel %vm303, %v1653, %v1659
        %1664 = vrot.lane.b32.xlu0 %v1646, 113
        %v1665 = vpop.permute.xlu0 %1664
        %1666 = vrot.lane.b32.xlu0 %v1647, 113
        %v1667 = vpop.permute.xlu0 %1666
        %1670 = vrot.lane.b32.xlu0 %v1646, 1
        %v1671 = vpop.permute.xlu0 %1670
        %1672 = vrot.lane.b32.xlu0 %v1647, 1
        %v1673 = vpop.permute.xlu0 %1672
        %v1676 = vsel %vm286, %v1665, %v1671
        %v1677 = vsel %vm286, %v1667, %v1673
        %v1678 = vsel %vm224, %v1662, %v1676
        %v1679 = vsel %vm224, %v1663, %v1677
        %v1680 = vadd.f32 %v1598, %v1630
        %v1681 = vadd.f32 %v1599, %v1631
        %v1682 = vadd.f32 %v1680, %v1646
        %v1683 = vadd.f32 %v1681, %v1647
        %v1684 = vadd.f32 %v1682, %v1678
        %v1685 = vadd.f32 %v1683, %v1679
        %v1686 = vmul.f32 %v1684, 0.25
        %v1687 = vmul.f32 %v1685, 0.25
        %v1688 = vmax.f32 %v1598, %v1630
        %v1689 = vmax.f32 %v1599, %v1631
        %v1690 = vmax.f32 %v1646, %v1678
        %v1691 = vmax.f32 %v1647, %v1679
        %v1692 = vmax.f32 %v1688, %v1690
        %v1693 = vmax.f32 %v1689, %v1691
        %v1694 = vsub.f32 %v1686, %v1692
        %v1695 = vsub.f32 %v1687, %v1693
        %v1696 = vmul.f32 %v1694, %v1694
        %v1697 = vmul.f32 %v1695, %v1695
        %v1698 = vadd.f32 %v1696, 0.0
        %v1699 = vadd.f32 %v1697, 0.0
        %v1700 = vmax.f32 %v1584, 0.0
        %v1701 = vmax.f32 %v1585, 0.0
        %1704 = vrot.lane.b32.xlu0 %v1700, 127
        %v1705 = vpop.permute.xlu0 %1704
        %1706 = vrot.lane.b32.xlu0 %v1701, 127
        %v1707 = vpop.permute.xlu0 %1706
        %1710 = vrot.lane.b32.xlu0 %v1700, 15
        %v1711 = vpop.permute.xlu0 %1710
        %1712 = vrot.lane.b32.xlu0 %v1701, 15
        %v1713 = vpop.permute.xlu0 %1712
        %v1716 = vsel %vm303, %v1705, %v1711
        %v1717 = vsel %vm303, %v1707, %v1713
        %1718 = vrot.lane.b32.xlu0 %v1700, 113
        %v1719 = vpop.permute.xlu0 %1718
        %1720 = vrot.lane.b32.xlu0 %v1701, 113
        %v1721 = vpop.permute.xlu0 %1720
        %1724 = vrot.lane.b32.xlu0 %v1700, 1
        %v1725 = vpop.permute.xlu0 %1724
        %1726 = vrot.lane.b32.xlu0 %v1701, 1
        %v1727 = vpop.permute.xlu0 %1726
        %v1730 = vsel %vm286, %v1719, %v1725
        %v1731 = vsel %vm286, %v1721, %v1727
        %v1732 = vsel %vm224, %v1716, %v1730
        %v1733 = vsel %vm224, %v1717, %v1731
        %v1734 = vrot.slane %v1700, 1
        %v1735 = vrot.slane %v1701, 1
        %v1736 = vsel %vm262, %v1734, %v1735
        %v1740 = vsel %vm262, %v1735, %v1734
        %v1741 = vrot.slane %v1701, 7
        %v1743 = vrot.slane %v1700, 7
        %v1744 = vsel %vm254, %v1743, %v1741
        %v1747 = vsel %vm254, %v1741, %v1743
        %v1748 = vsel %vm221, %v1736, %v1747
        %v1749 = vsel %vm222, %v1740, %v1744
        %1752 = vrot.lane.b32.xlu0 %v1748, 127
        %v1753 = vpop.permute.xlu0 %1752
        %1754 = vrot.lane.b32.xlu0 %v1749, 127
        %v1755 = vpop.permute.xlu0 %1754
        %1758 = vrot.lane.b32.xlu0 %v1748, 15
        %v1759 = vpop.permute.xlu0 %1758
        %1760 = vrot.lane.b32.xlu0 %v1749, 15
        %v1761 = vpop.permute.xlu0 %1760
        %v1764 = vsel %vm303, %v1753, %v1759
        %v1765 = vsel %vm303, %v1755, %v1761
        %1766 = vrot.lane.b32.xlu0 %v1748, 113
        %v1767 = vpop.permute.xlu0 %1766
        %1768 = vrot.lane.b32.xlu0 %v1749, 113
        %v1769 = vpop.permute.xlu0 %1768
        %1772 = vrot.lane.b32.xlu0 %v1748, 1
        %v1773 = vpop.permute.xlu0 %1772
        %1774 = vrot.lane.b32.xlu0 %v1749, 1
        %v1775 = vpop.permute.xlu0 %1774
        %v1778 = vsel %vm286, %v1767, %v1773
        %v1779 = vsel %vm286, %v1769, %v1775
        %v1780 = vsel %vm224, %v1764, %v1778
        %v1781 = vsel %vm224, %v1765, %v1779
        %v1782 = vadd.f32 %v1700, %v1732
        %v1783 = vadd.f32 %v1701, %v1733
        %v1784 = vadd.f32 %v1782, %v1748
        %v1785 = vadd.f32 %v1783, %v1749
        %v1786 = vadd.f32 %v1784, %v1780
        %v1787 = vadd.f32 %v1785, %v1781
        %v1788 = vmul.f32 %v1786, 0.25
        %v1789 = vmul.f32 %v1787, 0.25
        %v1790 = vmax.f32 %v1700, %v1732
        %v1791 = vmax.f32 %v1701, %v1733
        %v1792 = vmax.f32 %v1748, %v1780
        %v1793 = vmax.f32 %v1749, %v1781
        %v1794 = vmax.f32 %v1790, %v1792
        %v1795 = vmax.f32 %v1791, %v1793
        %v1796 = vsub.f32 %v1788, %v1794
        %v1797 = vsub.f32 %v1789, %v1795
        %v1798 = vmul.f32 %v1796, %v1796
        %v1799 = vmul.f32 %v1797, %v1797
        %v1800 = vadd.f32 %v1698, %v1798
        %v1801 = vadd.f32 %v1699, %v1799
        %v1802 = vmax.f32 %v1590, 0.0
        %v1803 = vmax.f32 %v1591, 0.0
        %1806 = vrot.lane.b32.xlu0 %v1802, 127
        %v1807 = vpop.permute.xlu0 %1806
        %1808 = vrot.lane.b32.xlu0 %v1803, 127
        %v1809 = vpop.permute.xlu0 %1808
        %1812 = vrot.lane.b32.xlu0 %v1802, 15
        %v1813 = vpop.permute.xlu0 %1812
        %1814 = vrot.lane.b32.xlu0 %v1803, 15
        %v1815 = vpop.permute.xlu0 %1814
        %v1818 = vsel %vm303, %v1807, %v1813
        %v1819 = vsel %vm303, %v1809, %v1815
        %1820 = vrot.lane.b32.xlu0 %v1802, 113
        %v1821 = vpop.permute.xlu0 %1820
        %1822 = vrot.lane.b32.xlu0 %v1803, 113
        %v1823 = vpop.permute.xlu0 %1822
        %1826 = vrot.lane.b32.xlu0 %v1802, 1
        %v1827 = vpop.permute.xlu0 %1826
        %1828 = vrot.lane.b32.xlu0 %v1803, 1
        %v1829 = vpop.permute.xlu0 %1828
        %v1832 = vsel %vm286, %v1821, %v1827
        %v1833 = vsel %vm286, %v1823, %v1829
        %v1834 = vsel %vm224, %v1818, %v1832
        %v1835 = vsel %vm224, %v1819, %v1833
        %v1836 = vrot.slane %v1802, 1
        %v1837 = vrot.slane %v1803, 1
        %v1838 = vsel %vm262, %v1836, %v1837
        %v1842 = vsel %vm262, %v1837, %v1836
        %v1843 = vrot.slane %v1803, 7
        %v1845 = vrot.slane %v1802, 7
        %v1846 = vsel %vm254, %v1845, %v1843
        %v1849 = vsel %vm254, %v1843, %v1845
        %v1850 = vsel %vm221, %v1838, %v1849
        %v1851 = vsel %vm222, %v1842, %v1846
        %1854 = vrot.lane.b32.xlu0 %v1850, 127
        %v1855 = vpop.permute.xlu0 %1854
        %1856 = vrot.lane.b32.xlu0 %v1851, 127
        %v1857 = vpop.permute.xlu0 %1856
        %1860 = vrot.lane.b32.xlu0 %v1850, 15
        %v1861 = vpop.permute.xlu0 %1860
        %1862 = vrot.lane.b32.xlu0 %v1851, 15
        %v1863 = vpop.permute.xlu0 %1862
        %v1866 = vsel %vm303, %v1855, %v1861
        %v1867 = vsel %vm303, %v1857, %v1863
        %1868 = vrot.lane.b32.xlu0 %v1850, 113
        %v1869 = vpop.permute.xlu0 %1868
        %1870 = vrot.lane.b32.xlu0 %v1851, 113
        %v1871 = vpop.permute.xlu0 %1870
        %1874 = vrot.lane.b32.xlu0 %v1850, 1
        %v1875 = vpop.permute.xlu0 %1874
        %1876 = vrot.lane.b32.xlu0 %v1851, 1
        %v1877 = vpop.permute.xlu0 %1876
        %v1880 = vsel %vm286, %v1869, %v1875
        %v1881 = vsel %vm286, %v1871, %v1877
        %v1882 = vsel %vm224, %v1866, %v1880
        %v1883 = vsel %vm224, %v1867, %v1881
        %v1884 = vadd.f32 %v1802, %v1834
        %v1885 = vadd.f32 %v1803, %v1835
        %v1886 = vadd.f32 %v1884, %v1850
        %v1887 = vadd.f32 %v1885, %v1851
        %v1888 = vadd.f32 %v1886, %v1882
        %v1889 = vadd.f32 %v1887, %v1883
        %v1890 = vmul.f32 %v1888, 0.25
        %v1891 = vmul.f32 %v1889, 0.25
        %v1892 = vmax.f32 %v1802, %v1834
        %v1893 = vmax.f32 %v1803, %v1835
        %v1894 = vmax.f32 %v1850, %v1882
        %v1895 = vmax.f32 %v1851, %v1883
        %v1896 = vmax.f32 %v1892, %v1894
        %v1897 = vmax.f32 %v1893, %v1895
        %v1898 = vsub.f32 %v1890, %v1896
        %v1899 = vsub.f32 %v1891, %v1897
        %v1900 = vmul.f32 %v1898, %v1898
        %v1901 = vmul.f32 %v1899, %v1899
        %v1902 = vadd.f32 %v1800, %v1900
        %v1903 = vadd.f32 %v1801, %v1901
        %v1904 = vmax.f32 %v1596, 0.0
        %v1905 = vmax.f32 %v1597, 0.0
        %1908 = vrot.lane.b32.xlu0 %v1904, 127
        %v1909 = vpop.permute.xlu0 %1908
        %1910 = vrot.lane.b32.xlu0 %v1905, 127
        %v1911 = vpop.permute.xlu0 %1910
        %1914 = vrot.lane.b32.xlu0 %v1904, 15
        %v1915 = vpop.permute.xlu0 %1914
        %1916 = vrot.lane.b32.xlu0 %v1905, 15
        %v1917 = vpop.permute.xlu0 %1916
        %v1920 = vsel %vm303, %v1909, %v1915
        %v1921 = vsel %vm303, %v1911, %v1917
        %1922 = vrot.lane.b32.xlu0 %v1904, 113
        %v1923 = vpop.permute.xlu0 %1922
        %1924 = vrot.lane.b32.xlu0 %v1905, 113
        %v1925 = vpop.permute.xlu0 %1924
        %1928 = vrot.lane.b32.xlu0 %v1904, 1
        %v1929 = vpop.permute.xlu0 %1928
        %1930 = vrot.lane.b32.xlu0 %v1905, 1
        %v1931 = vpop.permute.xlu0 %1930
        %v1934 = vsel %vm286, %v1923, %v1929
        %v1935 = vsel %vm286, %v1925, %v1931
        %v1936 = vsel %vm224, %v1920, %v1934
        %v1937 = vsel %vm224, %v1921, %v1935
        %v1938 = vrot.slane %v1904, 1
        %v1939 = vrot.slane %v1905, 1
        %v1940 = vsel %vm262, %v1938, %v1939
        %v1944 = vsel %vm262, %v1939, %v1938
        %v1945 = vrot.slane %v1905, 7
        %v1947 = vrot.slane %v1904, 7
        %v1948 = vsel %vm254, %v1947, %v1945
        %v1951 = vsel %vm254, %v1945, %v1947
        %v1952 = vsel %vm221, %v1940, %v1951
        %v1953 = vsel %vm222, %v1944, %v1948
        %1956 = vrot.lane.b32.xlu0 %v1952, 127
        %v1957 = vpop.permute.xlu0 %1956
        %1958 = vrot.lane.b32.xlu0 %v1953, 127
        %v1959 = vpop.permute.xlu0 %1958
        %1962 = vrot.lane.b32.xlu0 %v1952, 15
        %v1963 = vpop.permute.xlu0 %1962
        %1964 = vrot.lane.b32.xlu0 %v1953, 15
        %v1965 = vpop.permute.xlu0 %1964
        %v1968 = vsel %vm303, %v1957, %v1963
        %v1969 = vsel %vm303, %v1959, %v1965
        %1970 = vrot.lane.b32.xlu0 %v1952, 113
        %v1971 = vpop.permute.xlu0 %1970
        %1972 = vrot.lane.b32.xlu0 %v1953, 113
        %v1973 = vpop.permute.xlu0 %1972
        %1976 = vrot.lane.b32.xlu0 %v1952, 1
        %v1977 = vpop.permute.xlu0 %1976
        %1978 = vrot.lane.b32.xlu0 %v1953, 1
        %v1979 = vpop.permute.xlu0 %1978
        %v1982 = vsel %vm286, %v1971, %v1977
        %v1983 = vsel %vm286, %v1973, %v1979
        %v1984 = vsel %vm224, %v1968, %v1982
        %v1985 = vsel %vm224, %v1969, %v1983
        %v1986 = vadd.f32 %v1904, %v1936
        %v1987 = vadd.f32 %v1905, %v1937
        %v1988 = vadd.f32 %v1986, %v1952
        %v1989 = vadd.f32 %v1987, %v1953
        %v1990 = vadd.f32 %v1988, %v1984
        %v1991 = vadd.f32 %v1989, %v1985
        %v1992 = vmul.f32 %v1990, 0.25
        %v1993 = vmul.f32 %v1991, 0.25
        %v1994 = vmax.f32 %v1904, %v1936
        %v1995 = vmax.f32 %v1905, %v1937
        %v1996 = vmax.f32 %v1952, %v1984
        %v1997 = vmax.f32 %v1953, %v1985
        %v1998 = vmax.f32 %v1994, %v1996
        %v1999 = vmax.f32 %v1995, %v1997
        %v2000 = vsub.f32 %v1992, %v1998
        %v2001 = vsub.f32 %v1993, %v1999
        %v2002 = vmul.f32 %v2000, %v2000
        %v2003 = vmul.f32 %v2001, %v2001
        %v2004 = vadd.f32 %v1902, %v2002
        %v2005 = vadd.f32 %v1903, %v2003
        %v2006 = vrsqrt.pop %v2004
        %v2007 = vmul.f32 %v2004, %v2006
        %vm2008 = vcmp.eq.f32.partialorder %v2004, inf
        %v2009 = vsel %vm2008, %v2004, %v2007
        %vm2010 = vcmp.eq.f32.partialorder %v2004, 0.0
        %v2011 = vand.u32 %v2004, 2147483648
        %v2012 = vsel %vm2010, %v2011, %v2009
        %v2013 = vrsqrt.pop %v2005
        %v2014 = vmul.f32 %v2005, %v2013
        %vm2015 = vcmp.eq.f32.partialorder %v2005, inf
        %v2016 = vsel %vm2015, %v2005, %v2014
        %vm2017 = vcmp.eq.f32.partialorder %v2005, 0.0
        %v2018 = vand.u32 %v2005, 2147483648
        %v2019 = vsel %vm2017, %v2018, %v2016
        %v2021 = vrot.slane %v2019, 7
        %v2024 = vrot.slane %v2012, 7
        %v2025 = vsel %vm254, %v2024, %v2021
        %v2028 = vsel %vm254, %v2021, %v2024
        %v2029 = vrot.slane %v2012, 1
        %v2030 = vrot.slane %v2019, 1
        %v2031 = vsel %vm262, %v2029, %v2030
        %v2035 = vsel %vm262, %v2030, %v2029
        %v2036 = vsel %vm221, %v2028, %v2031
        %v2037 = vsel %vm222, %v2025, %v2035
        %vm2038 = vmor %vm225, %vm227
        %vm2039 = vmor %vm226, %vm228
        %v2040 = vsel %vm2038, %v2012, %v2036
        %v2041 = vsel %vm2039, %v2019, %v2037
        %v2042 = vmul.f32 %v2012, 0.75
        %v2043 = vmul.f32 %v2019, 0.75
        %v2044 = vmul.f32 %v2040, 0.25
        %v2045 = vmul.f32 %v2041, 0.25
        %v2046 = vadd.f32 %v2042, %v2044
        %v2047 = vadd.f32 %v2043, %v2045
        %2050 = vrot.lane.b32.xlu0 %v2046, 113
        %v2051 = vpop.permute.xlu0 %2050
        %2052 = vrot.lane.b32.xlu0 %v2047, 113
        %v2053 = vpop.permute.xlu0 %2052
        %2056 = vrot.lane.b32.xlu0 %v2046, 1
        %v2057 = vpop.permute.xlu0 %2056
        %2058 = vrot.lane.b32.xlu0 %v2047, 1
        %v2059 = vpop.permute.xlu0 %2058
        %v2062 = vsel %vm286, %v2051, %v2057
        %v2063 = vsel %vm286, %v2053, %v2059
        %2064 = vrot.lane.b32.xlu0 %v2046, 127
        %v2065 = vpop.permute.xlu0 %2064
        %2066 = vrot.lane.b32.xlu0 %v2047, 127
        %v2067 = vpop.permute.xlu0 %2066
        %2070 = vrot.lane.b32.xlu0 %v2046, 15
        %v2071 = vpop.permute.xlu0 %2070
        %2072 = vrot.lane.b32.xlu0 %v2047, 15
        %v2073 = vpop.permute.xlu0 %2072
        %v2076 = vsel %vm303, %v2065, %v2071
        %v2077 = vsel %vm303, %v2067, %v2073
        %v2078 = vsel %vm224, %v2062, %v2076
        %v2079 = vsel %vm224, %v2063, %v2077
        %vm2080 = vmor %vm229, %vm230
        %v2081 = vsel %vm2080, %v2046, %v2078
        %v2082 = vsel %vm2080, %v2047, %v2079
        %v2083 = vmul.f32 %v2046, 0.75
        %v2084 = vmul.f32 %v2047, 0.75
        %v2085 = vmul.f32 %v2081, 0.25
        %v2086 = vmul.f32 %v2082, 0.25
        %v2087 = vadd.f32 %v2083, %v2085
        %v2088 = vadd.f32 %v2084, %v2086
        %v2089 = vxor.u32 %v2087, 2147483648
        %v2090 = vxor.u32 %v2088, 2147483648
        %v2091 = vmul.f32 %v2089, 1.442695
        %v2092 = vpow.pop %v2091
        %v2093 = vmul.f32 %v2090, 1.442695
        %v2094 = vpow.pop %v2093
        %v2095 = vadd.f32 %v2092, 1.0
        %v2096 = vadd.f32 %v2094, 1.0
        %v2097 = vrcp.pop %v2095
        %v2098 = vmul.f32 1.0, %v2097
        %v2099 = vrcp.pop %v2096
        %v2100 = vmul.f32 1.0, %v2099
        %v2101 = vmul.f32 %v231, %v2098
        %v2102 = vmul.f32 %v232, %v2100
        %vm2103 = vcmask 130048
        %2104 = vst.msk [vmem:[%s213] sm:$0xff] %vm2103, %v2101
        %2105 = vst.msk [vmem:[%s213 + $0x8] sm:$0xff] %vm2103, %v2102
        %v2106 = vmul.f32 %v234, %v2098
        %v2107 = vmul.f32 %v235, %v2100
        %s2108 = scalar_lea.vmem %s213, 16 [#allocation9]
        %2109 = vst.msk [vmem:[%s2108] sm:$0xff] %vm2103, %v2106
        %2110 = vst.msk [vmem:[%s2108 + $0x8] sm:$0xff] %vm2103, %v2107
        %v2111 = vmul.f32 %v237, %v2098
        %v2112 = vmul.f32 %v238, %v2100
        %s2113 = scalar_lea.vmem %s213, 32 [#allocation9]
        %2114 = vst.msk [vmem:[%s2113] sm:$0xff] %vm2103, %v2111
        %2115 = vst.msk [vmem:[%s2113 + $0x8] sm:$0xff] %vm2103, %v2112
        %v2116 = vmul.f32 %v240, %v2098
        %v2117 = vmul.f32 %v241, %v2100
        %s2118 = scalar_lea.vmem %s213, 48 [#allocation9]
        %2119 = vst.msk [vmem:[%s2118] sm:$0xff] %vm2103, %v2116
        %2120 = vst.msk [vmem:[%s2118 + $0x8] sm:$0xff] %vm2103, %v2117
        %s2121 = sand.u32 %s98, 1
        %s2122 = scalar_lea.sflag [#allocation4], %s2121
        %s2123 = sand.u32 %s98, 1
        %s2124 = smul.addr %s2123, 64
        %s2125 = scalar_lea.vmem [#allocation9], %s2124
        // Predicated region
        $region45: #{tpu_custom_call.1} parent=31 // pred_check
          %p2126 = pneg %p108
        $region46: #{tpu_custom_call.1} parent=31 // pred_check_branch
          %2128 = sbr.rel (%p2126) target = $region48
        $region47: #{tpu_custom_call.1} parent=31 // pred_region
          %s2130 = ssub.s32 1024, 1024
          %2131 = vsyncadd %s2122, %s2130
          %s2132 = smul.addr %s22, 8
          %s2133 = smul.addr %s2132, 128
          %s2134 = scalar_lea.hbm %s3, %s2133
          %s2135 = sshll.u32 %s2125, 4
          %s2136 = int_to_ptr.vmem [resolvable:$true] %s2135
          %2141 = dma.vmem_to_hbm [thread:$0]  %s2136, 1024, %s2134, %s2122, 128, 128, 8
        $region48: #{tpu_custom_call.1} parent=31 // pred_fallthru
          _
      $region32: #{tpu_custom_call.1} parent=5 // pred_fallthru
        _
      %p2142 = scmp.le.s32.totalorder 2, %s17
      // Predicated region
      $region49: #{tpu_custom_call.1} parent=5 // pred_check
        %p2143 = pneg %p2142
      $region50: #{tpu_custom_call.1} parent=5 // pred_check_branch
        %2145 = sbr.rel (%p2143) target = $region52
      $region51: #{tpu_custom_call.1} parent=5 // pred_region
        %s2146 = ssub.s32 %s17, 2
        // Predicated region
        $region53: #{tpu_custom_call.1} parent=51 // pred_check
          %p2147 = pneg %p114
        $region54: #{tpu_custom_call.1} parent=51 // pred_check_branch
          %2149 = sbr.rel (%p2147) target = $region56
        $region55: #{tpu_custom_call.1} parent=51 // pred_region
          %s2150 = sand.u32 %s99, 1
          %s2151 = scalar_lea.sflag [#allocation4], %s2150
          %s2152 = sand.u32 %s99, 1
          %s2153 = smul.addr %s2152, 64
          %s2154 = scalar_lea.vmem [#allocation9], %s2153
          %2155 = dma.done %s2151, 1024
        $region56: #{tpu_custom_call.1} parent=51 // pred_fallthru
          _
      $region52: #{tpu_custom_call.1} parent=5 // pred_fallthru
        _
    $region6: #{tpu_custom_call.1} parent=1 // loop_footer
      %s21 = sadd.s32 1, %s17
    $region7: #{tpu_custom_call.1} parent=1 // loop_footer_branch
      %16 = sbr.rel target = $region3
    $region8: #{tpu_custom_call.1} parent=1 // loop_exit
      _
    %2156 = vsyncpa [#allocation3], 1
    %s2157 = scalar_lea.sflag [#allocation3], 1
    %2158 = vsyncpa %s2157, 1
    %2159 = vsyncpa [#allocation4], 1
    %s2160 = scalar_lea.sflag [#allocation4], 1
    %2161 = vsyncpa %s2160, 1
    %2162 = vsyncpa [#allocation5], 1
    %s2163 = scalar_lea.sflag [#allocation5], 1
    %2164 = vsyncpa %s2163, 1
    %2165 = vsyncpa [#allocation6], 1
    %s2166 = scalar_lea.sflag [#allocation6], 1
    %2167 = vsyncpa %s2166, 1

</llo_original>
